<compile_context>
chip_gen: v7x
topology: tpu7x:2x2x1
jax: 0.10.0
libtpu: 0.0.40
codegen_flags: <defaults>
</compile_context>

<pallas_src>
import math
import functools

import jax
import jax.numpy as jnp
from jax.experimental import pallas as pl
from jax.experimental.pallas import tpu as pltpu


# ----------------------------- Pallas kernel --------------------------------

def _attn_kernel(q_ref, k_ref, v_ref, o_ref, *, scale):
    # Blocks: q (L, E, Nb), k/v (S, E, Nb), o (L, E, Nb).  N on lanes.
    q = q_ref[...].astype(jnp.float32)
    k = k_ref[...].astype(jnp.float32)
    v = v_ref[...].astype(jnp.float32)

    # scores[l, s, n] = scale * sum_e q[l, e, n] * k[s, e, n]
    # Lane-batched VPU multiply + sublane reduce over E (true f32 math).
    s = jnp.sum(q[:, None, :, :] * k[None, :, :, :], axis=2) * scale   # (L,S,Nb)

    # Softmax over the key axis (sublane axis) -- per-lane independent.
    m = jnp.max(s, axis=1, keepdims=True)                              # (L,1,Nb)
    p = jnp.exp(s - m)                                                 # (L,S,Nb)
    denom = jnp.sum(p, axis=1, keepdims=True)                          # (L,1,Nb)

    # out[l, e, n] = sum_s p[l, s, n] * v[s, e, n]; normalise AFTER the
    # contraction (saves a (L,S,Nb) multiply), EUP approximate reciprocal.
    o = jnp.sum(p[:, :, None, :] * v[None, :, :, :], axis=1)           # (L,E,Nb)
    o = o * pl.reciprocal(denom, approx=True)
    o_ref[...] = o.astype(o_ref.dtype)


# --------------------------- block / VMEM sizing -----------------------------

def _vmem_limit_bytes():
    """Generation-aware scoped-VMEM limit: ~75% of physical per-core VMEM
    (v5e/v6e: 128 MiB -> 96 MiB; v7x: 64 MiB -> 48 MiB); safe fallback."""
    try:
        phys = int(pltpu.get_tpu_info().vmem_capacity_bytes)
    except Exception:
        phys = 64 * 1024 * 1024           # conservative (v7x per-core)
    phys = min(phys, 128 * 1024 * 1024)
    return max(32 * 1024 * 1024, (phys * 3) // 4)


def _pick_block_n(N, L, S, E, in_item, out_item, vmem_limit):
    """Lane-block size (multiple of 128 when N allows), sized from the real
    per-step footprint against the VMEM budget."""
    if N <= 128:
        return N                          # single full-extent block
    # Per-lane bytes: double-buffered q/k/v/o blocks + f32 intermediates
    # (scores & probs (L,S) plus the worst-case materialised (L,S,E) product).
    io = 2 * ((L + 2 * S) * E * in_item + L * E * out_item)
    inter = 4 * (2 * L * S + L * S * E + 2 * L * E)
    budget = (vmem_limit * 11) // 20      # ~55% of the scoped limit
    nb = budget // (io + inter)
    nb = max(128, (nb // 128) * 128)
    # Keep >= 2 grid steps when there is enough work so the "parallel" axis
    # can shard across TensorCores (v7x megacore) and the pipeline has depth.
    if N >= 256:
        nb = min(nb, max(128, ((N // 2) // 128) * 128))
    # Full-width blocks only; Pallas masks the ragged trailing block.
    nb = min(nb, (N // 128) * 128)
    return int(max(nb, 128))


# ------------------------------ pallas wrapper -------------------------------

def _batched_attention(q, k, v, scale):
    """q: (L, E, N), k/v: (S, E, N) -> (L, E, N) softmax attention per lane n."""
    L, E, N = q.shape
    S = k.shape[0]
    out_dtype = q.dtype

    # bf16 transfer halves HBM bytes on this bandwidth-bound op; all in-kernel
    # math is f32 and the output is produced in the original dtype.
    tdt = jnp.bfloat16 if q.dtype == jnp.float32 else q.dtype
    q, k, v = q.astype(tdt), k.astype(tdt), v.astype(tdt)
    in_item = jnp.dtype(tdt).itemsize
    out_item = jnp.dtype(out_dtype).itemsize

    vmem_limit = _vmem_limit_bytes()
    Nb = _pick_block_n(N, L, S, E, in_item, out_item, vmem_limit)
    grid_n = pl.cdiv(N, Nb)

    cost = pl.CostEstimate(
        flops=4 * N * L * S * E,
        transcendentals=N * L * S,
        bytes_accessed=in_item * N * E * (L + 2 * S) + out_item * N * L * E,
    )

    spec_kwargs = {}
    if grid_n >= 4:
        # Deeper prefetch when the pipeline actually has depth; cheap to revert.
        spec_kwargs = dict(pipeline_mode=pl.Buffered(3))

    kern = functools.partial(_attn_kernel, scale=scale)
    return pl.pallas_call(
        kern,
        out_shape=jax.ShapeDtypeStruct((L, E, N), out_dtype),
        grid=(grid_n,),
        in_specs=[
            pl.BlockSpec((L, E, Nb), lambda n: (0, 0, n), **spec_kwargs),
            pl.BlockSpec((S, E, Nb), lambda n: (0, 0, n), **spec_kwargs),
            pl.BlockSpec((S, E, Nb), lambda n: (0, 0, n), **spec_kwargs),
        ],
        out_specs=pl.BlockSpec((L, E, Nb), lambda n: (0, 0, n)),
        compiler_params=pltpu.CompilerParams(
            dimension_semantics=("parallel",),
            vmem_limit_bytes=vmem_limit,
        ),
        cost_estimate=cost,
    )(q, k, v)


# --------------------------- layout (XLA glue) -------------------------------

def _to_len(x):
    # (B, V, L, H, E) -> (L, E, B*V*H)
    B, V, L, H, E = x.shape
    return jnp.transpose(x, (2, 4, 0, 1, 3)).reshape(L, E, B * V * H)


def _from_len(o, B, V, L, H, E):
    # (L, E, B*V*H) -> (B, V, L, H, E)
    return jnp.transpose(o.reshape(L, E, B, V, H), (2, 3, 0, 4, 1))


def _to_len_pieces(x, P, ap):
    # (B, V, P*ap, H, E) -> (ap, E, B*V*H*P)
    B, V, Li, H, E = x.shape
    x = x.reshape(B, V, P, ap, H, E)
    return jnp.transpose(x, (3, 5, 0, 1, 4, 2)).reshape(ap, E, B * V * H * P)


def _from_len_pieces(o, B, V, P, ap, H, E):
    # (ap, E, B*V*H*P) -> (B, V, P*ap, H, E)
    o = o.reshape(ap, E, B, V, H, P)
    return jnp.transpose(o, (2, 3, 5, 0, 4, 1)).reshape(B, V, P * ap, H, E)


# ------------------------------ module wrapper -------------------------------

def full_attention(queries, keys, values, flag, attn_pieces=6):
    """JAX/Pallas equivalent of FullAttention.forward (eval mode)."""
    B, V, L, H, E = queries.shape
    scale = 1.0 / math.sqrt(E)
    # TODO(synk): nn.Dropout(0.1) is modeled in eval mode (identity); training
    # dropout depends on the framework RNG and is not reproduced.
    if flag == 'full':
        out = _batched_attention(_to_len(queries), _to_len(keys),
                                 _to_len(values), scale)       # (L, E, BVH)
        return _from_len(out, B, V, L, H, E)
    elif flag == 'local':
        if L % attn_pieces != 0:
            raise ValueError(f"'local' requires L ({L}) divisible by "
                             f"attn_pieces ({attn_pieces})")
        P = L // attn_pieces
        out = _batched_attention(
            _to_len_pieces(queries, P, attn_pieces),
            _to_len_pieces(keys, P, attn_pieces),
            _to_len_pieces(values, P, attn_pieces), scale)
        return _from_len_pieces(out, B, V, P, attn_pieces, H, E)
    elif flag == 'neighbour':
        if attn_pieces % 2 != 0 or L % attn_pieces != 0 or L < 2 * attn_pieces:
            raise ValueError(f"'neighbour' requires even attn_pieces and "
                             f"L ({L}) a multiple of attn_pieces "
                             f"({attn_pieces}) with L >= 2*attn_pieces")
        half = attn_pieces // 2

        def se(x):
            return jnp.concatenate([x[:, :, :half], x[:, :, -half:]], axis=2)

        # start/end pieces attend to each other with full attention
        se_out = full_attention(se(queries), se(keys), se(values), 'full',
                                attn_pieces)                   # (B,V,ap,H,E)

        # interior: shifted local attention
        P = L // attn_pieces - 1

        def interior(x):
            return x[:, :, half:L - half]

        out = _batched_attention(
            _to_len_pieces(interior(queries), P, attn_pieces),
            _to_len_pieces(interior(keys), P, attn_pieces),
            _to_len_pieces(interior(values), P, attn_pieces), scale)
        out = _from_len_pieces(out, B, V, P, attn_pieces, H, E)  # (B,V,L-ap,H,E)
        return jnp.concatenate(
            [se_out[:, :, :half], out, se_out[:, :, -half:]], axis=2)
    else:
        raise ValueError('no flag!')


# ---------------- pure-JAX references for sanity checking -------------------

def _ref_full(q, k, v):
    E = q.shape[-1]
    scale = 1.0 / math.sqrt(E)
    scores = jnp.einsum('bvlhe,bvshe->bvhls', q, k,
                        precision=jax.lax.Precision.HIGHEST)
    A = jax.nn.softmax(scale * scores, axis=-1)
    return jnp.einsum('bvhls,bvshd->bvlhd', A, v,
                      precision=jax.lax.Precision.HIGHEST)


def _ref_local(q, k, v, attn_pieces):
    B, V, L, H, E = q.shape
    P = L // attn_pieces
    scale = 1.0 / math.sqrt(E)

    def prep(x):
        return jnp.transpose(x, (0, 1, 3, 2, 4)).reshape(
            B, V, H, P, attn_pieces, E)

    qp, kp, vp = prep(q), prep(k), prep(v)
    scores = jnp.einsum('bvhple,bvhpse->bvhpls', qp, kp,
                        precision=jax.lax.Precision.HIGHEST)
    A = jax.nn.softmax(scale * scores, axis=-1)
    out = jnp.einsum('bvhpls,bvhpse->bvhple', A, vp,
                     precision=jax.lax.Precision.HIGHEST)
    return jnp.transpose(out.reshape(B, V, H, L, E), (0, 1, 3, 2, 4))


def _ref_neighbour(q, k, v, attn_pieces):
    B, V, L, H, E = q.shape
    half = attn_pieces // 2

    def se(x):
        return jnp.concatenate([x[:, :, :half], x[:, :, -half:]], axis=2)

    se_out = _ref_full(se(q), se(k), se(v))
    qi, ki, vi = (x[:, :, half:L - half] for x in (q, k, v))
    inner = _ref_local(qi, ki, vi, attn_pieces)
    return jnp.concatenate(
        [se_out[:, :, :half], inner, se_out[:, :, -half:]], axis=2)


if __name__ == "__main__":
    B, V, L, H, E = 2, 2, 12, 2, 32
    attn_pieces = 6

    key = jax.random.PRNGKey(0)
    kq, kk, kv = jax.random.split(key, 3)
    queries = jax.random.normal(kq, (B, V, L, H, E), dtype=jnp.float32)
    keys = jax.random.normal(kk, (B, V, L, H, E), dtype=jnp.float32)
    values = jax.random.normal(kv, (B, V, L, H, E), dtype=jnp.float32)

    out_full = jax.block_until_ready(
        full_attention(queries, keys, values, 'full', attn_pieces))
    out_local = jax.block_until_ready(
        full_attention(queries, keys, values, 'local', attn_pieces))
    out_neigh = jax.block_until_ready(
        full_attention(queries, keys, values, 'neighbour', attn_pieces))

    assert out_full.shape == (B, V, L, H, E)
    assert out_local.shape == (B, V, L, H, E)
    assert out_neigh.shape == (B, V, L, H, E)

    ref_f = _ref_full(queries, keys, values)
    ref_l = _ref_local(queries, keys, values, attn_pieces)
    ref_n = _ref_neighbour(queries, keys, values, attn_pieces)

    # Tolerances account for bf16 input transfer (f32 accumulation/softmax in
    # the kernel) and the approximate EUP reciprocal vs. the HIGHEST-precision
    # f32 reference.
    assert jnp.allclose(out_full, ref_f, atol=2e-2, rtol=2e-2), \
        float(jnp.max(jnp.abs(out_full - ref_f)))
    assert jnp.allclose(out_local, ref_l, atol=2e-2, rtol=2e-2), \
        float(jnp.max(jnp.abs(out_local - ref_l)))
    assert jnp.allclose(out_neigh, ref_n, atol=2e-2, rtol=2e-2), \
        float(jnp.max(jnp.abs(out_neigh - ref_n)))

    print("KERNEL_OK")
</pallas_src>

<mosaic_0001>
module attributes {stable_mosaic.version = 11 : i64} {
  func.func @_attn_kernel(%arg0: i32, %arg1: memref<12x32x8xbf16, #tpu.memory_space<vmem>>, %arg2: memref<12x32x8xbf16, #tpu.memory_space<vmem>>, %arg3: memref<12x32x8xbf16, #tpu.memory_space<vmem>>, %arg4: memref<12x32x8xf32, #tpu.memory_space<vmem>>) attributes {dimension_semantics = [#tpu.dimension_semantics<parallel>], iteration_bounds = array<i64: 1>, scalar_prefetch = 0 : i64, scratch_operands = 0 : i64, tpu.core_type = #tpu.core_type<tc>, window_params = [{transform_indices = @transform_0, window_bounds = array<i64: 12, 32, 8>}, {transform_indices = @transform_1, window_bounds = array<i64: 12, 32, 8>}, {transform_indices = @transform_2, window_bounds = array<i64: 12, 32, 8>}, {transform_indices = @transform_3, window_bounds = array<i64: 12, 32, 8>}]} {
    %c0 = arith.constant 0 : index
    %c0_0 = arith.constant 0 : index
    %c0_1 = arith.constant 0 : index
    %0 = vector.load %arg1[%c0, %c0_0, %c0_1] : memref<12x32x8xbf16, #tpu.memory_space<vmem>>, vector<12x32x8xbf16>
    %1 = arith.extf %0 : vector<12x32x8xbf16> to vector<12x32x8xf32>
    %c0_2 = arith.constant 0 : index
    %c0_3 = arith.constant 0 : index
    %c0_4 = arith.constant 0 : index
    %2 = vector.load %arg2[%c0_2, %c0_3, %c0_4] : memref<12x32x8xbf16, #tpu.memory_space<vmem>>, vector<12x32x8xbf16>
    %3 = arith.extf %2 : vector<12x32x8xbf16> to vector<12x32x8xf32>
    %c0_5 = arith.constant 0 : index
    %c0_6 = arith.constant 0 : index
    %c0_7 = arith.constant 0 : index
    %4 = vector.load %arg3[%c0_5, %c0_6, %c0_7] : memref<12x32x8xbf16, #tpu.memory_space<vmem>>, vector<12x32x8xbf16>
    %5 = arith.extf %4 : vector<12x32x8xbf16> to vector<12x32x8xf32>
    %6 = vector.shape_cast %1 : vector<12x32x8xf32> to vector<12x1x32x8xf32>
    %7 = vector.shape_cast %3 : vector<12x32x8xf32> to vector<1x12x32x8xf32>
    %8 = vector.broadcast %6 : vector<12x1x32x8xf32> to vector<12x12x32x8xf32>
    %9 = vector.broadcast %7 : vector<1x12x32x8xf32> to vector<12x12x32x8xf32>
    %10 = arith.mulf %8, %9 : vector<12x12x32x8xf32>
    %cst = arith.constant dense<0.000000e+00> : vector<12x12x8xf32>
    %11 = vector.multi_reduction <add>, %10, %cst [2] : vector<12x12x32x8xf32> to vector<12x12x8xf32>
    %cst_8 = arith.constant 0.176776692 : f32
    %12 = vector.broadcast %cst_8 : f32 to vector<12x12x8xf32>
    %13 = arith.mulf %11, %12 : vector<12x12x8xf32>
    %cst_9 = arith.constant dense<0xFF800000> : vector<12x8xf32>
    %14 = vector.multi_reduction <maximumf>, %13, %cst_9 [1] : vector<12x12x8xf32> to vector<12x8xf32>
    %15 = vector.shape_cast %14 : vector<12x8xf32> to vector<12x1x8xf32>
    %16 = vector.broadcast %15 : vector<12x1x8xf32> to vector<12x12x8xf32>
    %17 = arith.subf %13, %16 : vector<12x12x8xf32>
    %18 = math.exp %17 : vector<12x12x8xf32>
    %cst_10 = arith.constant dense<0.000000e+00> : vector<12x8xf32>
    %19 = vector.multi_reduction <add>, %18, %cst_10 [1] : vector<12x12x8xf32> to vector<12x8xf32>
    %20 = vector.shape_cast %19 : vector<12x8xf32> to vector<12x1x8xf32>
    %21 = vector.shape_cast %18 : vector<12x12x8xf32> to vector<12x12x1x8xf32>
    %22 = vector.shape_cast %5 : vector<12x32x8xf32> to vector<1x12x32x8xf32>
    %23 = vector.broadcast %21 : vector<12x12x1x8xf32> to vector<12x12x32x8xf32>
    %24 = vector.broadcast %22 : vector<1x12x32x8xf32> to vector<12x12x32x8xf32>
    %25 = arith.mulf %23, %24 : vector<12x12x32x8xf32>
    %cst_11 = arith.constant dense<0.000000e+00> : vector<12x32x8xf32>
    %26 = vector.multi_reduction <add>, %25, %cst_11 [1] : vector<12x12x32x8xf32> to vector<12x32x8xf32>
    %27 = tpu.reciprocal %20 {approx = true} : vector<12x1x8xf32> -> vector<12x1x8xf32>
    %28 = vector.broadcast %27 : vector<12x1x8xf32> to vector<12x32x8xf32>
    %29 = arith.mulf %26, %28 : vector<12x32x8xf32>
    %c0_12 = arith.constant 0 : index
    %c0_13 = arith.constant 0 : index
    %c0_14 = arith.constant 0 : index
    %30 = vector.load %arg4[%c0_12, %c0_13, %c0_14] : memref<12x32x8xf32, #tpu.memory_space<vmem>>, vector<12x32x8xf32>
    tpu.vector_store %arg4[%c0_12, %c0_13, %c0_14], %29 {strides = array<i32>} : memref<12x32x8xf32, #tpu.memory_space<vmem>>, vector<12x32x8xf32>,
    return
  }
  func.func @transform_0(%arg0: i32) -> (i32, i32, i32) {
    %c0_i32 = arith.constant 0 : i32
    %c0_i32_0 = arith.constant 0 : i32
    %c0_i32_1 = arith.constant 0 : i32
    return %c0_i32, %c0_i32_0, %arg0 : i32, i32, i32
  }
  func.func @transform_1(%arg0: i32) -> (i32, i32, i32) {
    %c0_i32 = arith.constant 0 : i32
    %c0_i32_0 = arith.constant 0 : i32
    %c0_i32_1 = arith.constant 0 : i32
    return %c0_i32, %c0_i32_0, %arg0 : i32, i32, i32
  }
  func.func @transform_2(%arg0: i32) -> (i32, i32, i32) {
    %c0_i32 = arith.constant 0 : i32
    %c0_i32_0 = arith.constant 0 : i32
    %c0_i32_1 = arith.constant 0 : i32
    return %c0_i32, %c0_i32_0, %arg0 : i32, i32, i32
  }
  func.func @transform_3(%arg0: i32) -> (i32, i32, i32) {
    %c0_i32 = arith.constant 0 : i32
    %c0_i32_0 = arith.constant 0 : i32
    %c0_i32_1 = arith.constant 0 : i32
    return %c0_i32, %c0_i32_0, %arg0 : i32, i32, i32
  }
}

</mosaic_0001>

<llo_original>
// kernel: tpu_custom_call.1
$region0: #{tpu_custom_call.1}
  #allocation0 [shape = 'u32[]', space=smem, size = 0x4, offset = 0x4, fixed_abs, tag = 'smem constant byte address 0x4 - core index']
  #allocation1 [shape = 'u32[144,128]{1,0:T(1,128)}', space=vmem, size = 0x12000, scoped, tag = 'internal scratch']
  %s0 = inlined_call_operand.vmem [shape: bf16[12,32,8], index: 0, kind: input, shape index: {}]
  %s1 = inlined_call_operand.vmem [shape: bf16[12,32,8], index: 1, kind: input, shape index: {}]
  %s2 = inlined_call_operand.vmem [shape: bf16[12,32,8], index: 2, kind: input, shape index: {}]
  %s3 = inlined_call_operand.vmem [shape: f32[12,32,8], index: 3, kind: output, shape index: {}]
  %s4 = sld [smem:[#allocation0]]
  $region22: #{tpu_custom_call.1} parent=0
    _
  %s6 = ssub.s32 1, %s4
  %s7 = scalar_select 0, %s6, %s4
  // Predicated region
  $region2: #{tpu_custom_call.1} parent=0 // pred_check
    _
  $region3: #{tpu_custom_call.1} parent=0 // pred_check_branch
    %9 = sbr.rel (0) target = $region5
  $region4: #{tpu_custom_call.1} parent=0 // pred_region
    _
  $region5: #{tpu_custom_call.1} parent=0 // pred_fallthru
    _
  // Predicated region
  $region6: #{tpu_custom_call.1} parent=0 // pred_check
    _
  $region7: #{tpu_custom_call.1} parent=0 // pred_check_branch
    %11 = sbr.rel (0) target = $region9
  $region8: #{tpu_custom_call.1} parent=0 // pred_region
    _
  $region9: #{tpu_custom_call.1} parent=0 // pred_fallthru
    _
  // Predicated region
  $region10: #{tpu_custom_call.1} parent=0 // pred_check
    _
  $region11: #{tpu_custom_call.1} parent=0 // pred_check_branch
    %13 = sbr.rel (0) target = $region13
  $region12: #{tpu_custom_call.1} parent=0 // pred_region
    _
  $region13: #{tpu_custom_call.1} parent=0 // pred_fallthru
    _
  %v14 = vld [vmem:[%s0] sm:$0xf]
  %v15 = vld [vmem:[%s0 + $0x4] sm:$0xf]
  %v16 = vld [vmem:[%s0 + $0x8] sm:$0xf]
  %v17 = vld [vmem:[%s0 + $0xc] sm:$0xf]
  %v18 = vld [vmem:[%s0 + $0x10] sm:$0xf]
  %v19 = vld [vmem:[%s0 + $0x14] sm:$0xf]
  %v20 = vld [vmem:[%s0 + $0x18] sm:$0xf]
  %v21 = vld [vmem:[%s0 + $0x1c] sm:$0xf]
  %v22 = vld [vmem:[%s0 + $0x20] sm:$0xf]
  %v23 = vld [vmem:[%s0 + $0x24] sm:$0xf]
  %v24 = vld [vmem:[%s0 + $0x28] sm:$0xf]
  %v25 = vld [vmem:[%s0 + $0x2c] sm:$0xf]
  %v26 = vld [vmem:[%s0 + $0x30] sm:$0xf]
  %v27 = vld [vmem:[%s0 + $0x34] sm:$0xf]
  %v28 = vld [vmem:[%s0 + $0x38] sm:$0xf]
  %v29 = vld [vmem:[%s0 + $0x3c] sm:$0xf]
  %v30 = vld [vmem:[%s0 + $0x40] sm:$0xf]
  %v31 = vld [vmem:[%s0 + $0x44] sm:$0xf]
  %v32 = vld [vmem:[%s0 + $0x48] sm:$0xf]
  %v33 = vld [vmem:[%s0 + $0x4c] sm:$0xf]
  %v34 = vld [vmem:[%s0 + $0x50] sm:$0xf]
  %v35 = vld [vmem:[%s0 + $0x54] sm:$0xf]
  %v36 = vld [vmem:[%s0 + $0x58] sm:$0xf]
  %v37 = vld [vmem:[%s0 + $0x5c] sm:$0xf]
  %v38 = vld [vmem:[%s0 + $0x60] sm:$0xf]
  %v39 = vld [vmem:[%s0 + $0x64] sm:$0xf]
  %v40 = vld [vmem:[%s0 + $0x68] sm:$0xf]
  %v41 = vld [vmem:[%s0 + $0x6c] sm:$0xf]
  %v42 = vld [vmem:[%s0 + $0x70] sm:$0xf]
  %v43 = vld [vmem:[%s0 + $0x74] sm:$0xf]
  %v44 = vld [vmem:[%s0 + $0x78] sm:$0xf]
  %v45 = vld [vmem:[%s0 + $0x7c] sm:$0xf]
  %v46 = vld [vmem:[%s0 + $0x80] sm:$0xf]
  %v47 = vld [vmem:[%s0 + $0x84] sm:$0xf]
  %v48 = vld [vmem:[%s0 + $0x88] sm:$0xf]
  %v49 = vld [vmem:[%s0 + $0x8c] sm:$0xf]
  %v50 = vld [vmem:[%s0 + $0x90] sm:$0xf]
  %v51 = vld [vmem:[%s0 + $0x94] sm:$0xf]
  %v52 = vld [vmem:[%s0 + $0x98] sm:$0xf]
  %v53 = vld [vmem:[%s0 + $0x9c] sm:$0xf]
  %v54 = vld [vmem:[%s0 + $0xa0] sm:$0xf]
  %v55 = vld [vmem:[%s0 + $0xa4] sm:$0xf]
  %v56 = vld [vmem:[%s0 + $0xa8] sm:$0xf]
  %v57 = vld [vmem:[%s0 + $0xac] sm:$0xf]
  %v58 = vld [vmem:[%s0 + $0xb0] sm:$0xf]
  %v59 = vld [vmem:[%s0 + $0xb4] sm:$0xf]
  %v60 = vld [vmem:[%s0 + $0xb8] sm:$0xf]
  %v61 = vld [vmem:[%s0 + $0xbc] sm:$0xf]
  %v62 = vunpack.c.l.bf16 %v14
  %v63 = vunpack.c.l.bf16 %v15
  %v64 = vunpack.c.l.bf16 %v16
  %v65 = vunpack.c.l.bf16 %v17
  %v66 = vunpack.c.l.bf16 %v18
  %v67 = vunpack.c.l.bf16 %v19
  %v68 = vunpack.c.l.bf16 %v20
  %v69 = vunpack.c.l.bf16 %v21
  %v70 = vunpack.c.l.bf16 %v22
  %v71 = vunpack.c.l.bf16 %v23
  %v72 = vunpack.c.l.bf16 %v24
  %v73 = vunpack.c.l.bf16 %v25
  %v74 = vunpack.c.l.bf16 %v26
  %v75 = vunpack.c.l.bf16 %v27
  %v76 = vunpack.c.l.bf16 %v28
  %v77 = vunpack.c.l.bf16 %v29
  %v78 = vunpack.c.l.bf16 %v30
  %v79 = vunpack.c.l.bf16 %v31
  %v80 = vunpack.c.l.bf16 %v32
  %v81 = vunpack.c.l.bf16 %v33
  %v82 = vunpack.c.l.bf16 %v34
  %v83 = vunpack.c.l.bf16 %v35
  %v84 = vunpack.c.l.bf16 %v36
  %v85 = vunpack.c.l.bf16 %v37
  %v86 = vunpack.c.l.bf16 %v38
  %v87 = vunpack.c.l.bf16 %v39
  %v88 = vunpack.c.l.bf16 %v40
  %v89 = vunpack.c.l.bf16 %v41
  %v90 = vunpack.c.l.bf16 %v42
  %v91 = vunpack.c.l.bf16 %v43
  %v92 = vunpack.c.l.bf16 %v44
  %v93 = vunpack.c.l.bf16 %v45
  %v94 = vunpack.c.l.bf16 %v46
  %v95 = vunpack.c.l.bf16 %v47
  %v96 = vunpack.c.l.bf16 %v48
  %v97 = vunpack.c.l.bf16 %v49
  %v98 = vunpack.c.l.bf16 %v50
  %v99 = vunpack.c.l.bf16 %v51
  %v100 = vunpack.c.l.bf16 %v52
  %v101 = vunpack.c.l.bf16 %v53
  %v102 = vunpack.c.l.bf16 %v54
  %v103 = vunpack.c.l.bf16 %v55
  %v104 = vunpack.c.l.bf16 %v56
  %v105 = vunpack.c.l.bf16 %v57
  %v106 = vunpack.c.l.bf16 %v58
  %v107 = vunpack.c.l.bf16 %v59
  %v108 = vunpack.c.l.bf16 %v60
  %v109 = vunpack.c.l.bf16 %v61
  %v110 = vld [vmem:[%s1] sm:$0xf]
  %v111 = vld [vmem:[%s1 + $0x4] sm:$0xf]
  %v112 = vld [vmem:[%s1 + $0x8] sm:$0xf]
  %v113 = vld [vmem:[%s1 + $0xc] sm:$0xf]
  %v114 = vld [vmem:[%s1 + $0x10] sm:$0xf]
  %v115 = vld [vmem:[%s1 + $0x14] sm:$0xf]
  %v116 = vld [vmem:[%s1 + $0x18] sm:$0xf]
  %v117 = vld [vmem:[%s1 + $0x1c] sm:$0xf]
  %v118 = vld [vmem:[%s1 + $0x20] sm:$0xf]
  %v119 = vld [vmem:[%s1 + $0x24] sm:$0xf]
  %v120 = vld [vmem:[%s1 + $0x28] sm:$0xf]
  %v121 = vld [vmem:[%s1 + $0x2c] sm:$0xf]
  %v122 = vld [vmem:[%s1 + $0x30] sm:$0xf]
  %v123 = vld [vmem:[%s1 + $0x34] sm:$0xf]
  %v124 = vld [vmem:[%s1 + $0x38] sm:$0xf]
  %v125 = vld [vmem:[%s1 + $0x3c] sm:$0xf]
  %v126 = vld [vmem:[%s1 + $0x40] sm:$0xf]
  %v127 = vld [vmem:[%s1 + $0x44] sm:$0xf]
  %v128 = vld [vmem:[%s1 + $0x48] sm:$0xf]
  %v129 = vld [vmem:[%s1 + $0x4c] sm:$0xf]
  %v130 = vld [vmem:[%s1 + $0x50] sm:$0xf]
  %v131 = vld [vmem:[%s1 + $0x54] sm:$0xf]
  %v132 = vld [vmem:[%s1 + $0x58] sm:$0xf]
  %v133 = vld [vmem:[%s1 + $0x5c] sm:$0xf]
  %v134 = vld [vmem:[%s1 + $0x60] sm:$0xf]
  %v135 = vld [vmem:[%s1 + $0x64] sm:$0xf]
  %v136 = vld [vmem:[%s1 + $0x68] sm:$0xf]
  %v137 = vld [vmem:[%s1 + $0x6c] sm:$0xf]
  %v138 = vld [vmem:[%s1 + $0x70] sm:$0xf]
  %v139 = vld [vmem:[%s1 + $0x74] sm:$0xf]
  %v140 = vld [vmem:[%s1 + $0x78] sm:$0xf]
  %v141 = vld [vmem:[%s1 + $0x7c] sm:$0xf]
  %v142 = vld [vmem:[%s1 + $0x80] sm:$0xf]
  %v143 = vld [vmem:[%s1 + $0x84] sm:$0xf]
  %v144 = vld [vmem:[%s1 + $0x88] sm:$0xf]
  %v145 = vld [vmem:[%s1 + $0x8c] sm:$0xf]
  %v146 = vld [vmem:[%s1 + $0x90] sm:$0xf]
  %v147 = vld [vmem:[%s1 + $0x94] sm:$0xf]
  %v148 = vld [vmem:[%s1 + $0x98] sm:$0xf]
  %v149 = vld [vmem:[%s1 + $0x9c] sm:$0xf]
  %v150 = vld [vmem:[%s1 + $0xa0] sm:$0xf]
  %v151 = vld [vmem:[%s1 + $0xa4] sm:$0xf]
  %v152 = vld [vmem:[%s1 + $0xa8] sm:$0xf]
  %v153 = vld [vmem:[%s1 + $0xac] sm:$0xf]
  %v154 = vld [vmem:[%s1 + $0xb0] sm:$0xf]
  %v155 = vld [vmem:[%s1 + $0xb4] sm:$0xf]
  %v156 = vld [vmem:[%s1 + $0xb8] sm:$0xf]
  %v157 = vld [vmem:[%s1 + $0xbc] sm:$0xf]
  %v158 = vunpack.c.l.bf16 %v110
  %v159 = vunpack.c.l.bf16 %v111
  %v160 = vunpack.c.l.bf16 %v112
  %v161 = vunpack.c.l.bf16 %v113
  %v162 = vunpack.c.l.bf16 %v114
  %v163 = vunpack.c.l.bf16 %v115
  %v164 = vunpack.c.l.bf16 %v116
  %v165 = vunpack.c.l.bf16 %v117
  %v166 = vunpack.c.l.bf16 %v118
  %v167 = vunpack.c.l.bf16 %v119
  %v168 = vunpack.c.l.bf16 %v120
  %v169 = vunpack.c.l.bf16 %v121
  %v170 = vunpack.c.l.bf16 %v122
  %v171 = vunpack.c.l.bf16 %v123
  %v172 = vunpack.c.l.bf16 %v124
  %v173 = vunpack.c.l.bf16 %v125
  %v174 = vunpack.c.l.bf16 %v126
  %v175 = vunpack.c.l.bf16 %v127
  %v176 = vunpack.c.l.bf16 %v128
  %v177 = vunpack.c.l.bf16 %v129
  %v178 = vunpack.c.l.bf16 %v130
  %v179 = vunpack.c.l.bf16 %v131
  %v180 = vunpack.c.l.bf16 %v132
  %v181 = vunpack.c.l.bf16 %v133
  %v182 = vunpack.c.l.bf16 %v134
  %v183 = vunpack.c.l.bf16 %v135
  %v184 = vunpack.c.l.bf16 %v136
  %v185 = vunpack.c.l.bf16 %v137
  %v186 = vunpack.c.l.bf16 %v138
  %v187 = vunpack.c.l.bf16 %v139
  %v188 = vunpack.c.l.bf16 %v140
  %v189 = vunpack.c.l.bf16 %v141
  %v190 = vunpack.c.l.bf16 %v142
  %v191 = vunpack.c.l.bf16 %v143
  %v192 = vunpack.c.l.bf16 %v144
  %v193 = vunpack.c.l.bf16 %v145
  %v194 = vunpack.c.l.bf16 %v146
  %v195 = vunpack.c.l.bf16 %v147
  %v196 = vunpack.c.l.bf16 %v148
  %v197 = vunpack.c.l.bf16 %v149
  %v198 = vunpack.c.l.bf16 %v150
  %v199 = vunpack.c.l.bf16 %v151
  %v200 = vunpack.c.l.bf16 %v152
  %v201 = vunpack.c.l.bf16 %v153
  %v202 = vunpack.c.l.bf16 %v154
  %v203 = vunpack.c.l.bf16 %v155
  %v204 = vunpack.c.l.bf16 %v156
  %v205 = vunpack.c.l.bf16 %v157
  %v206 = vld [vmem:[%s2] sm:$0xf]
  %v207 = vld [vmem:[%s2 + $0x4] sm:$0xf]
  %v208 = vld [vmem:[%s2 + $0x8] sm:$0xf]
  %v209 = vld [vmem:[%s2 + $0xc] sm:$0xf]
  %v210 = vld [vmem:[%s2 + $0x10] sm:$0xf]
  %v211 = vld [vmem:[%s2 + $0x14] sm:$0xf]
  %v212 = vld [vmem:[%s2 + $0x18] sm:$0xf]
  %v213 = vld [vmem:[%s2 + $0x1c] sm:$0xf]
  %v214 = vld [vmem:[%s2 + $0x20] sm:$0xf]
  %v215 = vld [vmem:[%s2 + $0x24] sm:$0xf]
  %v216 = vld [vmem:[%s2 + $0x28] sm:$0xf]
  %v217 = vld [vmem:[%s2 + $0x2c] sm:$0xf]
  %v218 = vld [vmem:[%s2 + $0x30] sm:$0xf]
  %v219 = vld [vmem:[%s2 + $0x34] sm:$0xf]
  %v220 = vld [vmem:[%s2 + $0x38] sm:$0xf]
  %v221 = vld [vmem:[%s2 + $0x3c] sm:$0xf]
  %v222 = vld [vmem:[%s2 + $0x40] sm:$0xf]
  %v223 = vld [vmem:[%s2 + $0x44] sm:$0xf]
  %v224 = vld [vmem:[%s2 + $0x48] sm:$0xf]
  %v225 = vld [vmem:[%s2 + $0x4c] sm:$0xf]
  %v226 = vld [vmem:[%s2 + $0x50] sm:$0xf]
  %v227 = vld [vmem:[%s2 + $0x54] sm:$0xf]
  %v228 = vld [vmem:[%s2 + $0x58] sm:$0xf]
  %v229 = vld [vmem:[%s2 + $0x5c] sm:$0xf]
  %v230 = vld [vmem:[%s2 + $0x60] sm:$0xf]
  %v231 = vld [vmem:[%s2 + $0x64] sm:$0xf]
  %v232 = vld [vmem:[%s2 + $0x68] sm:$0xf]
  %v233 = vld [vmem:[%s2 + $0x6c] sm:$0xf]
  %v234 = vld [vmem:[%s2 + $0x70] sm:$0xf]
  %v235 = vld [vmem:[%s2 + $0x74] sm:$0xf]
  %v236 = vld [vmem:[%s2 + $0x78] sm:$0xf]
  %v237 = vld [vmem:[%s2 + $0x7c] sm:$0xf]
  %v238 = vld [vmem:[%s2 + $0x80] sm:$0xf]
  %v239 = vld [vmem:[%s2 + $0x84] sm:$0xf]
  %v240 = vld [vmem:[%s2 + $0x88] sm:$0xf]
  %v241 = vld [vmem:[%s2 + $0x8c] sm:$0xf]
  %v242 = vld [vmem:[%s2 + $0x90] sm:$0xf]
  %v243 = vld [vmem:[%s2 + $0x94] sm:$0xf]
  %v244 = vld [vmem:[%s2 + $0x98] sm:$0xf]
  %v245 = vld [vmem:[%s2 + $0x9c] sm:$0xf]
  %v246 = vld [vmem:[%s2 + $0xa0] sm:$0xf]
  %v247 = vld [vmem:[%s2 + $0xa4] sm:$0xf]
  %v248 = vld [vmem:[%s2 + $0xa8] sm:$0xf]
  %v249 = vld [vmem:[%s2 + $0xac] sm:$0xf]
  %v250 = vld [vmem:[%s2 + $0xb0] sm:$0xf]
  %v251 = vld [vmem:[%s2 + $0xb4] sm:$0xf]
  %v252 = vld [vmem:[%s2 + $0xb8] sm:$0xf]
  %v253 = vld [vmem:[%s2 + $0xbc] sm:$0xf]
  %v254 = vunpack.c.l.bf16 %v206
  %v255 = vunpack.c.l.bf16 %v207
  %v256 = vunpack.c.l.bf16 %v208
  %v257 = vunpack.c.l.bf16 %v209
  %v258 = vunpack.c.l.bf16 %v210
  %v259 = vunpack.c.l.bf16 %v211
  %v260 = vunpack.c.l.bf16 %v212
  %v261 = vunpack.c.l.bf16 %v213
  %v262 = vunpack.c.l.bf16 %v214
  %v263 = vunpack.c.l.bf16 %v215
  %v264 = vunpack.c.l.bf16 %v216
  %v265 = vunpack.c.l.bf16 %v217
  %v266 = vunpack.c.l.bf16 %v218
  %v267 = vunpack.c.l.bf16 %v219
  %v268 = vunpack.c.l.bf16 %v220
  %v269 = vunpack.c.l.bf16 %v221
  %v270 = vunpack.c.l.bf16 %v222
  %v271 = vunpack.c.l.bf16 %v223
  %v272 = vunpack.c.l.bf16 %v224
  %v273 = vunpack.c.l.bf16 %v225
  %v274 = vunpack.c.l.bf16 %v226
  %v275 = vunpack.c.l.bf16 %v227
  %v276 = vunpack.c.l.bf16 %v228
  %v277 = vunpack.c.l.bf16 %v229
  %v278 = vunpack.c.l.bf16 %v230
  %v279 = vunpack.c.l.bf16 %v231
  %v280 = vunpack.c.l.bf16 %v232
  %v281 = vunpack.c.l.bf16 %v233
  %v282 = vunpack.c.l.bf16 %v234
  %v283 = vunpack.c.l.bf16 %v235
  %v284 = vunpack.c.l.bf16 %v236
  %v285 = vunpack.c.l.bf16 %v237
  %v286 = vunpack.c.l.bf16 %v238
  %v287 = vunpack.c.l.bf16 %v239
  %v288 = vunpack.c.l.bf16 %v240
  %v289 = vunpack.c.l.bf16 %v241
  %v290 = vunpack.c.l.bf16 %v242
  %v291 = vunpack.c.l.bf16 %v243
  %v292 = vunpack.c.l.bf16 %v244
  %v293 = vunpack.c.l.bf16 %v245
  %v294 = vunpack.c.l.bf16 %v246
  %v295 = vunpack.c.l.bf16 %v247
  %v296 = vunpack.c.l.bf16 %v248
  %v297 = vunpack.c.l.bf16 %v249
  %v298 = vunpack.c.l.bf16 %v250
  %v299 = vunpack.c.l.bf16 %v251
  %v300 = vunpack.c.l.bf16 %v252
  %v301 = vunpack.c.l.bf16 %v253
  %v302 = vmul.f32 %v62, %v158
  %v303 = vmul.f32 %v63, %v159
  %v304 = vmul.f32 %v64, %v160
  %v305 = vmul.f32 %v65, %v161
  %v306 = vmul.f32 %v62, %v162
  %v307 = vmul.f32 %v63, %v163
  %v308 = vmul.f32 %v64, %v164
  %v309 = vmul.f32 %v65, %v165
  %v310 = vmul.f32 %v62, %v166
  %v311 = vmul.f32 %v63, %v167
  %v312 = vmul.f32 %v64, %v168
  %v313 = vmul.f32 %v65, %v169
  %v314 = vmul.f32 %v62, %v170
  %v315 = vmul.f32 %v63, %v171
  %v316 = vmul.f32 %v64, %v172
  %v317 = vmul.f32 %v65, %v173
  %v318 = vmul.f32 %v62, %v174
  %v319 = vmul.f32 %v63, %v175
  %v320 = vmul.f32 %v64, %v176
  %v321 = vmul.f32 %v65, %v177
  %v322 = vmul.f32 %v62, %v178
  %v323 = vmul.f32 %v63, %v179
  %v324 = vmul.f32 %v64, %v180
  %v325 = vmul.f32 %v65, %v181
  %v326 = vmul.f32 %v62, %v182
  %v327 = vmul.f32 %v63, %v183
  %v328 = vmul.f32 %v64, %v184
  %v329 = vmul.f32 %v65, %v185
  %v330 = vmul.f32 %v62, %v186
  %v331 = vmul.f32 %v63, %v187
  %v332 = vmul.f32 %v64, %v188
  %v333 = vmul.f32 %v65, %v189
  %v334 = vmul.f32 %v62, %v190
  %v335 = vmul.f32 %v63, %v191
  %v336 = vmul.f32 %v64, %v192
  %v337 = vmul.f32 %v65, %v193
  %v338 = vmul.f32 %v62, %v194
  %v339 = vmul.f32 %v63, %v195
  %v340 = vmul.f32 %v64, %v196
  %v341 = vmul.f32 %v65, %v197
  %v342 = vmul.f32 %v62, %v198
  %v343 = vmul.f32 %v63, %v199
  %v344 = vmul.f32 %v64, %v200
  %v345 = vmul.f32 %v65, %v201
  %v346 = vmul.f32 %v62, %v202
  %v347 = vmul.f32 %v63, %v203
  %v348 = vmul.f32 %v64, %v204
  %v349 = vmul.f32 %v65, %v205
  %v350 = vmul.f32 %v66, %v158
  %v351 = vmul.f32 %v67, %v159
  %v352 = vmul.f32 %v68, %v160
  %v353 = vmul.f32 %v69, %v161
  %v354 = vmul.f32 %v66, %v162
  %v355 = vmul.f32 %v67, %v163
  %v356 = vmul.f32 %v68, %v164
  %v357 = vmul.f32 %v69, %v165
  %v358 = vmul.f32 %v66, %v166
  %v359 = vmul.f32 %v67, %v167
  %v360 = vmul.f32 %v68, %v168
  %v361 = vmul.f32 %v69, %v169
  %v362 = vmul.f32 %v66, %v170
  %v363 = vmul.f32 %v67, %v171
  %v364 = vmul.f32 %v68, %v172
  %v365 = vmul.f32 %v69, %v173
  %v366 = vmul.f32 %v66, %v174
  %v367 = vmul.f32 %v67, %v175
  %v368 = vmul.f32 %v68, %v176
  %v369 = vmul.f32 %v69, %v177
  %v370 = vmul.f32 %v66, %v178
  %v371 = vmul.f32 %v67, %v179
  %v372 = vmul.f32 %v68, %v180
  %v373 = vmul.f32 %v69, %v181
  %v374 = vmul.f32 %v66, %v182
  %v375 = vmul.f32 %v67, %v183
  %v376 = vmul.f32 %v68, %v184
  %v377 = vmul.f32 %v69, %v185
  %v378 = vmul.f32 %v66, %v186
  %v379 = vmul.f32 %v67, %v187
  %v380 = vmul.f32 %v68, %v188
  %v381 = vmul.f32 %v69, %v189
  %v382 = vmul.f32 %v66, %v190
  %v383 = vmul.f32 %v67, %v191
  %v384 = vmul.f32 %v68, %v192
  %v385 = vmul.f32 %v69, %v193
  %v386 = vmul.f32 %v66, %v194
  %v387 = vmul.f32 %v67, %v195
  %v388 = vmul.f32 %v68, %v196
  %v389 = vmul.f32 %v69, %v197
  %v390 = vmul.f32 %v66, %v198
  %v391 = vmul.f32 %v67, %v199
  %v392 = vmul.f32 %v68, %v200
  %v393 = vmul.f32 %v69, %v201
  %v394 = vmul.f32 %v66, %v202
  %v395 = vmul.f32 %v67, %v203
  %v396 = vmul.f32 %v68, %v204
  %v397 = vmul.f32 %v69, %v205
  %v398 = vmul.f32 %v70, %v158
  %v399 = vmul.f32 %v71, %v159
  %v400 = vmul.f32 %v72, %v160
  %v401 = vmul.f32 %v73, %v161
  %v402 = vmul.f32 %v70, %v162
  %v403 = vmul.f32 %v71, %v163
  %v404 = vmul.f32 %v72, %v164
  %v405 = vmul.f32 %v73, %v165
  %v406 = vmul.f32 %v70, %v166
  %v407 = vmul.f32 %v71, %v167
  %v408 = vmul.f32 %v72, %v168
  %v409 = vmul.f32 %v73, %v169
  %v410 = vmul.f32 %v70, %v170
  %v411 = vmul.f32 %v71, %v171
  %v412 = vmul.f32 %v72, %v172
  %v413 = vmul.f32 %v73, %v173
  %v414 = vmul.f32 %v70, %v174
  %v415 = vmul.f32 %v71, %v175
  %v416 = vmul.f32 %v72, %v176
  %v417 = vmul.f32 %v73, %v177
  %v418 = vmul.f32 %v70, %v178
  %v419 = vmul.f32 %v71, %v179
  %v420 = vmul.f32 %v72, %v180
  %v421 = vmul.f32 %v73, %v181
  %v422 = vmul.f32 %v70, %v182
  %v423 = vmul.f32 %v71, %v183
  %v424 = vmul.f32 %v72, %v184
  %v425 = vmul.f32 %v73, %v185
  %v426 = vmul.f32 %v70, %v186
  %v427 = vmul.f32 %v71, %v187
  %v428 = vmul.f32 %v72, %v188
  %v429 = vmul.f32 %v73, %v189
  %v430 = vmul.f32 %v70, %v190
  %v431 = vmul.f32 %v71, %v191
  %v432 = vmul.f32 %v72, %v192
  %v433 = vmul.f32 %v73, %v193
  %v434 = vmul.f32 %v70, %v194
  %v435 = vmul.f32 %v71, %v195
  %v436 = vmul.f32 %v72, %v196
  %v437 = vmul.f32 %v73, %v197
  %v438 = vmul.f32 %v70, %v198
  %v439 = vmul.f32 %v71, %v199
  %v440 = vmul.f32 %v72, %v200
  %v441 = vmul.f32 %v73, %v201
  %v442 = vmul.f32 %v70, %v202
  %v443 = vmul.f32 %v71, %v203
  %v444 = vmul.f32 %v72, %v204
  %v445 = vmul.f32 %v73, %v205
  %v446 = vmul.f32 %v74, %v158
  %v447 = vmul.f32 %v75, %v159
  %v448 = vmul.f32 %v76, %v160
  %v449 = vmul.f32 %v77, %v161
  %v450 = vmul.f32 %v74, %v162
  %v451 = vmul.f32 %v75, %v163
  %v452 = vmul.f32 %v76, %v164
  %v453 = vmul.f32 %v77, %v165
  %v454 = vmul.f32 %v74, %v166
  %v455 = vmul.f32 %v75, %v167
  %v456 = vmul.f32 %v76, %v168
  %v457 = vmul.f32 %v77, %v169
  %v458 = vmul.f32 %v74, %v170
  %v459 = vmul.f32 %v75, %v171
  %v460 = vmul.f32 %v76, %v172
  %v461 = vmul.f32 %v77, %v173
  %v462 = vmul.f32 %v74, %v174
  %v463 = vmul.f32 %v75, %v175
  %v464 = vmul.f32 %v76, %v176
  %v465 = vmul.f32 %v77, %v177
  %v466 = vmul.f32 %v74, %v178
  %v467 = vmul.f32 %v75, %v179
  %v468 = vmul.f32 %v76, %v180
  %v469 = vmul.f32 %v77, %v181
  %v470 = vmul.f32 %v74, %v182
  %v471 = vmul.f32 %v75, %v183
  %v472 = vmul.f32 %v76, %v184
  %v473 = vmul.f32 %v77, %v185
  %v474 = vmul.f32 %v74, %v186
  %v475 = vmul.f32 %v75, %v187
  %v476 = vmul.f32 %v76, %v188
  %v477 = vmul.f32 %v77, %v189
  %v478 = vmul.f32 %v74, %v190
  %v479 = vmul.f32 %v75, %v191
  %v480 = vmul.f32 %v76, %v192
  %v481 = vmul.f32 %v77, %v193
  %v482 = vmul.f32 %v74, %v194
  %v483 = vmul.f32 %v75, %v195
  %v484 = vmul.f32 %v76, %v196
  %v485 = vmul.f32 %v77, %v197
  %v486 = vmul.f32 %v74, %v198
  %v487 = vmul.f32 %v75, %v199
  %v488 = vmul.f32 %v76, %v200
  %v489 = vmul.f32 %v77, %v201
  %v490 = vmul.f32 %v74, %v202
  %v491 = vmul.f32 %v75, %v203
  %v492 = vmul.f32 %v76, %v204
  %v493 = vmul.f32 %v77, %v205
  %v494 = vmul.f32 %v78, %v158
  %v495 = vmul.f32 %v79, %v159
  %v496 = vmul.f32 %v80, %v160
  %v497 = vmul.f32 %v81, %v161
  %v498 = vmul.f32 %v78, %v162
  %v499 = vmul.f32 %v79, %v163
  %v500 = vmul.f32 %v80, %v164
  %v501 = vmul.f32 %v81, %v165
  %v502 = vmul.f32 %v78, %v166
  %v503 = vmul.f32 %v79, %v167
  %v504 = vmul.f32 %v80, %v168
  %v505 = vmul.f32 %v81, %v169
  %v506 = vmul.f32 %v78, %v170
  %v507 = vmul.f32 %v79, %v171
  %v508 = vmul.f32 %v80, %v172
  %v509 = vmul.f32 %v81, %v173
  %v510 = vmul.f32 %v78, %v174
  %v511 = vmul.f32 %v79, %v175
  %v512 = vmul.f32 %v80, %v176
  %v513 = vmul.f32 %v81, %v177
  %v514 = vmul.f32 %v78, %v178
  %v515 = vmul.f32 %v79, %v179
  %v516 = vmul.f32 %v80, %v180
  %v517 = vmul.f32 %v81, %v181
  %v518 = vmul.f32 %v78, %v182
  %v519 = vmul.f32 %v79, %v183
  %v520 = vmul.f32 %v80, %v184
  %v521 = vmul.f32 %v81, %v185
  %v522 = vmul.f32 %v78, %v186
  %v523 = vmul.f32 %v79, %v187
  %v524 = vmul.f32 %v80, %v188
  %v525 = vmul.f32 %v81, %v189
  %v526 = vmul.f32 %v78, %v190
  %v527 = vmul.f32 %v79, %v191
  %v528 = vmul.f32 %v80, %v192
  %v529 = vmul.f32 %v81, %v193
  %v530 = vmul.f32 %v78, %v194
  %v531 = vmul.f32 %v79, %v195
  %v532 = vmul.f32 %v80, %v196
  %v533 = vmul.f32 %v81, %v197
  %v534 = vmul.f32 %v78, %v198
  %v535 = vmul.f32 %v79, %v199
  %v536 = vmul.f32 %v80, %v200
  %v537 = vmul.f32 %v81, %v201
  %v538 = vmul.f32 %v78, %v202
  %v539 = vmul.f32 %v79, %v203
  %v540 = vmul.f32 %v80, %v204
  %v541 = vmul.f32 %v81, %v205
  %v542 = vmul.f32 %v82, %v158
  %v543 = vmul.f32 %v83, %v159
  %v544 = vmul.f32 %v84, %v160
  %v545 = vmul.f32 %v85, %v161
  %v546 = vmul.f32 %v82, %v162
  %v547 = vmul.f32 %v83, %v163
  %v548 = vmul.f32 %v84, %v164
  %v549 = vmul.f32 %v85, %v165
  %v550 = vmul.f32 %v82, %v166
  %v551 = vmul.f32 %v83, %v167
  %v552 = vmul.f32 %v84, %v168
  %v553 = vmul.f32 %v85, %v169
  %v554 = vmul.f32 %v82, %v170
  %v555 = vmul.f32 %v83, %v171
  %v556 = vmul.f32 %v84, %v172
  %v557 = vmul.f32 %v85, %v173
  %v558 = vmul.f32 %v82, %v174
  %v559 = vmul.f32 %v83, %v175
  %v560 = vmul.f32 %v84, %v176
  %v561 = vmul.f32 %v85, %v177
  %v562 = vmul.f32 %v82, %v178
  %v563 = vmul.f32 %v83, %v179
  %v564 = vmul.f32 %v84, %v180
  %v565 = vmul.f32 %v85, %v181
  %v566 = vmul.f32 %v82, %v182
  %v567 = vmul.f32 %v83, %v183
  %v568 = vmul.f32 %v84, %v184
  %v569 = vmul.f32 %v85, %v185
  %v570 = vmul.f32 %v82, %v186
  %v571 = vmul.f32 %v83, %v187
  %v572 = vmul.f32 %v84, %v188
  %v573 = vmul.f32 %v85, %v189
  %v574 = vmul.f32 %v82, %v190
  %v575 = vmul.f32 %v83, %v191
  %v576 = vmul.f32 %v84, %v192
  %v577 = vmul.f32 %v85, %v193
  %v578 = vmul.f32 %v82, %v194
  %v579 = vmul.f32 %v83, %v195
  %v580 = vmul.f32 %v84, %v196
  %v581 = vmul.f32 %v85, %v197
  %v582 = vmul.f32 %v82, %v198
  %v583 = vmul.f32 %v83, %v199
  %v584 = vmul.f32 %v84, %v200
  %v585 = vmul.f32 %v85, %v201
  %v586 = vmul.f32 %v82, %v202
  %v587 = vmul.f32 %v83, %v203
  %v588 = vmul.f32 %v84, %v204
  %v589 = vmul.f32 %v85, %v205
  %v590 = vmul.f32 %v86, %v158
  %v591 = vmul.f32 %v87, %v159
  %v592 = vmul.f32 %v88, %v160
  %v593 = vmul.f32 %v89, %v161
  %v594 = vmul.f32 %v86, %v162
  %v595 = vmul.f32 %v87, %v163
  %v596 = vmul.f32 %v88, %v164
  %v597 = vmul.f32 %v89, %v165
  %v598 = vmul.f32 %v86, %v166
  %v599 = vmul.f32 %v87, %v167
  %v600 = vmul.f32 %v88, %v168
  %v601 = vmul.f32 %v89, %v169
  %v602 = vmul.f32 %v86, %v170
  %v603 = vmul.f32 %v87, %v171
  %v604 = vmul.f32 %v88, %v172
  %v605 = vmul.f32 %v89, %v173
  %v606 = vmul.f32 %v86, %v174
  %v607 = vmul.f32 %v87, %v175
  %v608 = vmul.f32 %v88, %v176
  %v609 = vmul.f32 %v89, %v177
  %v610 = vmul.f32 %v86, %v178
  %v611 = vmul.f32 %v87, %v179
  %v612 = vmul.f32 %v88, %v180
  %v613 = vmul.f32 %v89, %v181
  %v614 = vmul.f32 %v86, %v182
  %v615 = vmul.f32 %v87, %v183
  %v616 = vmul.f32 %v88, %v184
  %v617 = vmul.f32 %v89, %v185
  %v618 = vmul.f32 %v86, %v186
  %v619 = vmul.f32 %v87, %v187
  %v620 = vmul.f32 %v88, %v188
  %v621 = vmul.f32 %v89, %v189
  %v622 = vmul.f32 %v86, %v190
  %v623 = vmul.f32 %v87, %v191
  %v624 = vmul.f32 %v88, %v192
  %v625 = vmul.f32 %v89, %v193
  %v626 = vmul.f32 %v86, %v194
  %v627 = vmul.f32 %v87, %v195
  %v628 = vmul.f32 %v88, %v196
  %v629 = vmul.f32 %v89, %v197
  %v630 = vmul.f32 %v86, %v198
  %v631 = vmul.f32 %v87, %v199
  %v632 = vmul.f32 %v88, %v200
  %v633 = vmul.f32 %v89, %v201
  %v634 = vmul.f32 %v86, %v202
  %v635 = vmul.f32 %v87, %v203
  %v636 = vmul.f32 %v88, %v204
  %v637 = vmul.f32 %v89, %v205
  %v638 = vmul.f32 %v90, %v158
  %v639 = vmul.f32 %v91, %v159
  %v640 = vmul.f32 %v92, %v160
  %v641 = vmul.f32 %v93, %v161
  %v642 = vmul.f32 %v90, %v162
  %v643 = vmul.f32 %v91, %v163
  %v644 = vmul.f32 %v92, %v164
  %v645 = vmul.f32 %v93, %v165
  %v646 = vmul.f32 %v90, %v166
  %v647 = vmul.f32 %v91, %v167
  %v648 = vmul.f32 %v92, %v168
  %v649 = vmul.f32 %v93, %v169
  %v650 = vmul.f32 %v90, %v170
  %v651 = vmul.f32 %v91, %v171
  %v652 = vmul.f32 %v92, %v172
  %v653 = vmul.f32 %v93, %v173
  %v654 = vmul.f32 %v90, %v174
  %v655 = vmul.f32 %v91, %v175
  %v656 = vmul.f32 %v92, %v176
  %v657 = vmul.f32 %v93, %v177
  %v658 = vmul.f32 %v90, %v178
  %v659 = vmul.f32 %v91, %v179
  %v660 = vmul.f32 %v92, %v180
  %v661 = vmul.f32 %v93, %v181
  %v662 = vmul.f32 %v90, %v182
  %v663 = vmul.f32 %v91, %v183
  %v664 = vmul.f32 %v92, %v184
  %v665 = vmul.f32 %v93, %v185
  %v666 = vmul.f32 %v90, %v186
  %v667 = vmul.f32 %v91, %v187
  %v668 = vmul.f32 %v92, %v188
  %v669 = vmul.f32 %v93, %v189
  %v670 = vmul.f32 %v90, %v190
  %v671 = vmul.f32 %v91, %v191
  %v672 = vmul.f32 %v92, %v192
  %v673 = vmul.f32 %v93, %v193
  %v674 = vmul.f32 %v90, %v194
  %v675 = vmul.f32 %v91, %v195
  %v676 = vmul.f32 %v92, %v196
  %v677 = vmul.f32 %v93, %v197
  %v678 = vmul.f32 %v90, %v198
  %v679 = vmul.f32 %v91, %v199
  %v680 = vmul.f32 %v92, %v200
  %v681 = vmul.f32 %v93, %v201
  %v682 = vmul.f32 %v90, %v202
  %v683 = vmul.f32 %v91, %v203
  %v684 = vmul.f32 %v92, %v204
  %v685 = vmul.f32 %v93, %v205
  %v686 = vmul.f32 %v94, %v158
  %v687 = vmul.f32 %v95, %v159
  %v688 = vmul.f32 %v96, %v160
  %v689 = vmul.f32 %v97, %v161
  %v690 = vmul.f32 %v94, %v162
  %v691 = vmul.f32 %v95, %v163
  %v692 = vmul.f32 %v96, %v164
  %v693 = vmul.f32 %v97, %v165
  %v694 = vmul.f32 %v94, %v166
  %v695 = vmul.f32 %v95, %v167
  %v696 = vmul.f32 %v96, %v168
  %v697 = vmul.f32 %v97, %v169
  %v698 = vmul.f32 %v94, %v170
  %v699 = vmul.f32 %v95, %v171
  %v700 = vmul.f32 %v96, %v172
  %v701 = vmul.f32 %v97, %v173
  %v702 = vmul.f32 %v94, %v174
  %v703 = vmul.f32 %v95, %v175
  %v704 = vmul.f32 %v96, %v176
  %v705 = vmul.f32 %v97, %v177
  %v706 = vmul.f32 %v94, %v178
  %v707 = vmul.f32 %v95, %v179
  %v708 = vmul.f32 %v96, %v180
  %v709 = vmul.f32 %v97, %v181
  %v710 = vmul.f32 %v94, %v182
  %v711 = vmul.f32 %v95, %v183
  %v712 = vmul.f32 %v96, %v184
  %v713 = vmul.f32 %v97, %v185
  %v714 = vmul.f32 %v94, %v186
  %v715 = vmul.f32 %v95, %v187
  %v716 = vmul.f32 %v96, %v188
  %v717 = vmul.f32 %v97, %v189
  %v718 = vmul.f32 %v94, %v190
  %v719 = vmul.f32 %v95, %v191
  %v720 = vmul.f32 %v96, %v192
  %v721 = vmul.f32 %v97, %v193
  %v722 = vmul.f32 %v94, %v194
  %v723 = vmul.f32 %v95, %v195
  %v724 = vmul.f32 %v96, %v196
  %v725 = vmul.f32 %v97, %v197
  %v726 = vmul.f32 %v94, %v198
  %v727 = vmul.f32 %v95, %v199
  %v728 = vmul.f32 %v96, %v200
  %v729 = vmul.f32 %v97, %v201
  %v730 = vmul.f32 %v94, %v202
  %v731 = vmul.f32 %v95, %v203
  %v732 = vmul.f32 %v96, %v204
  %v733 = vmul.f32 %v97, %v205
  %v734 = vmul.f32 %v98, %v158
  %v735 = vmul.f32 %v99, %v159
  %v736 = vmul.f32 %v100, %v160
  %v737 = vmul.f32 %v101, %v161
  %v738 = vmul.f32 %v98, %v162
  %v739 = vmul.f32 %v99, %v163
  %v740 = vmul.f32 %v100, %v164
  %v741 = vmul.f32 %v101, %v165
  %v742 = vmul.f32 %v98, %v166
  %v743 = vmul.f32 %v99, %v167
  %v744 = vmul.f32 %v100, %v168
  %v745 = vmul.f32 %v101, %v169
  %v746 = vmul.f32 %v98, %v170
  %v747 = vmul.f32 %v99, %v171
  %v748 = vmul.f32 %v100, %v172
  %v749 = vmul.f32 %v101, %v173
  %v750 = vmul.f32 %v98, %v174
  %v751 = vmul.f32 %v99, %v175
  %v752 = vmul.f32 %v100, %v176
  %v753 = vmul.f32 %v101, %v177
  %v754 = vmul.f32 %v98, %v178
  %v755 = vmul.f32 %v99, %v179
  %v756 = vmul.f32 %v100, %v180
  %v757 = vmul.f32 %v101, %v181
  %v758 = vmul.f32 %v98, %v182
  %v759 = vmul.f32 %v99, %v183
  %v760 = vmul.f32 %v100, %v184
  %v761 = vmul.f32 %v101, %v185
  %v762 = vmul.f32 %v98, %v186
  %v763 = vmul.f32 %v99, %v187
  %v764 = vmul.f32 %v100, %v188
  %v765 = vmul.f32 %v101, %v189
  %v766 = vmul.f32 %v98, %v190
  %v767 = vmul.f32 %v99, %v191
  %v768 = vmul.f32 %v100, %v192
  %v769 = vmul.f32 %v101, %v193
  %v770 = vmul.f32 %v98, %v194
  %v771 = vmul.f32 %v99, %v195
  %v772 = vmul.f32 %v100, %v196
  %v773 = vmul.f32 %v101, %v197
  %v774 = vmul.f32 %v98, %v198
  %v775 = vmul.f32 %v99, %v199
  %v776 = vmul.f32 %v100, %v200
  %v777 = vmul.f32 %v101, %v201
  %v778 = vmul.f32 %v98, %v202
  %v779 = vmul.f32 %v99, %v203
  %v780 = vmul.f32 %v100, %v204
  %v781 = vmul.f32 %v101, %v205
  %v782 = vmul.f32 %v102, %v158
  %v783 = vmul.f32 %v103, %v159
  %v784 = vmul.f32 %v104, %v160
  %v785 = vmul.f32 %v105, %v161
  %v786 = vmul.f32 %v102, %v162
  %v787 = vmul.f32 %v103, %v163
  %v788 = vmul.f32 %v104, %v164
  %v789 = vmul.f32 %v105, %v165
  %v790 = vmul.f32 %v102, %v166
  %v791 = vmul.f32 %v103, %v167
  %v792 = vmul.f32 %v104, %v168
  %v793 = vmul.f32 %v105, %v169
  %v794 = vmul.f32 %v102, %v170
  %v795 = vmul.f32 %v103, %v171
  %v796 = vmul.f32 %v104, %v172
  %v797 = vmul.f32 %v105, %v173
  %v798 = vmul.f32 %v102, %v174
  %v799 = vmul.f32 %v103, %v175
  %v800 = vmul.f32 %v104, %v176
  %v801 = vmul.f32 %v105, %v177
  %v802 = vmul.f32 %v102, %v178
  %v803 = vmul.f32 %v103, %v179
  %v804 = vmul.f32 %v104, %v180
  %v805 = vmul.f32 %v105, %v181
  %v806 = vmul.f32 %v102, %v182
  %v807 = vmul.f32 %v103, %v183
  %v808 = vmul.f32 %v104, %v184
  %v809 = vmul.f32 %v105, %v185
  %v810 = vmul.f32 %v102, %v186
  %v811 = vmul.f32 %v103, %v187
  %v812 = vmul.f32 %v104, %v188
  %v813 = vmul.f32 %v105, %v189
  %v814 = vmul.f32 %v102, %v190
  %v815 = vmul.f32 %v103, %v191
  %v816 = vmul.f32 %v104, %v192
  %v817 = vmul.f32 %v105, %v193
  %v818 = vmul.f32 %v102, %v194
  %v819 = vmul.f32 %v103, %v195
  %v820 = vmul.f32 %v104, %v196
  %v821 = vmul.f32 %v105, %v197
  %v822 = vmul.f32 %v102, %v198
  %v823 = vmul.f32 %v103, %v199
  %v824 = vmul.f32 %v104, %v200
  %v825 = vmul.f32 %v105, %v201
  %v826 = vmul.f32 %v102, %v202
  %v827 = vmul.f32 %v103, %v203
  %v828 = vmul.f32 %v104, %v204
  %v829 = vmul.f32 %v105, %v205
  %v830 = vmul.f32 %v106, %v158
  %v831 = vmul.f32 %v107, %v159
  %v832 = vmul.f32 %v108, %v160
  %v833 = vmul.f32 %v109, %v161
  %v834 = vmul.f32 %v106, %v162
  %v835 = vmul.f32 %v107, %v163
  %v836 = vmul.f32 %v108, %v164
  %v837 = vmul.f32 %v109, %v165
  %v838 = vmul.f32 %v106, %v166
  %v839 = vmul.f32 %v107, %v167
  %v840 = vmul.f32 %v108, %v168
  %v841 = vmul.f32 %v109, %v169
  %v842 = vmul.f32 %v106, %v170
  %v843 = vmul.f32 %v107, %v171
  %v844 = vmul.f32 %v108, %v172
  %v845 = vmul.f32 %v109, %v173
  %v846 = vmul.f32 %v106, %v174
  %v847 = vmul.f32 %v107, %v175
  %v848 = vmul.f32 %v108, %v176
  %v849 = vmul.f32 %v109, %v177
  %v850 = vmul.f32 %v106, %v178
  %v851 = vmul.f32 %v107, %v179
  %v852 = vmul.f32 %v108, %v180
  %v853 = vmul.f32 %v109, %v181
  %v854 = vmul.f32 %v106, %v182
  %v855 = vmul.f32 %v107, %v183
  %v856 = vmul.f32 %v108, %v184
  %v857 = vmul.f32 %v109, %v185
  %v858 = vmul.f32 %v106, %v186
  %v859 = vmul.f32 %v107, %v187
  %v860 = vmul.f32 %v108, %v188
  %v861 = vmul.f32 %v109, %v189
  %v862 = vmul.f32 %v106, %v190
  %v863 = vmul.f32 %v107, %v191
  %v864 = vmul.f32 %v108, %v192
  %v865 = vmul.f32 %v109, %v193
  %v866 = vmul.f32 %v106, %v194
  %v867 = vmul.f32 %v107, %v195
  %v868 = vmul.f32 %v108, %v196
  %v869 = vmul.f32 %v109, %v197
  %v870 = vmul.f32 %v106, %v198
  %v871 = vmul.f32 %v107, %v199
  %v872 = vmul.f32 %v108, %v200
  %v873 = vmul.f32 %v109, %v201
  %v874 = vmul.f32 %v106, %v202
  %v875 = vmul.f32 %v107, %v203
  %v876 = vmul.f32 %v108, %v204
  %v877 = vmul.f32 %v109, %v205
  %vm878 = vcmask 64512
  %v879 = vsel %vm878, %v302, 0.0
  %v880 = vsel %vm878, %v303, 0.0
  %v881 = vadd.f32 %v879, %v880
  %v882 = vsel %vm878, %v304, 0.0
  %v883 = vadd.f32 %v881, %v882
  %v884 = vsel %vm878, %v305, 0.0
  %v885 = vadd.f32 %v883, %v884
  %v886 = vrot.slane %v885, 4
  %v887 = vadd.f32 %v885, %v886
  %v888 = vrot.slane %v887, 2
  %v889 = vadd.f32 %v887, %v888
  %v890 = vrot.slane %v889, 1
  %v891 = vadd.f32 %v889, %v890
  %v892 = vsel %vm878, %v306, 0.0
  %v893 = vsel %vm878, %v307, 0.0
  %v894 = vadd.f32 %v892, %v893
  %v895 = vsel %vm878, %v308, 0.0
  %v896 = vadd.f32 %v894, %v895
  %v897 = vsel %vm878, %v309, 0.0
  %v898 = vadd.f32 %v896, %v897
  %v899 = vrot.slane %v898, 4
  %v900 = vadd.f32 %v898, %v899
  %v901 = vrot.slane %v900, 2
  %v902 = vadd.f32 %v900, %v901
  %v903 = vrot.slane %v902, 1
  %v904 = vadd.f32 %v902, %v903
  %v905 = vsel %vm878, %v310, 0.0
  %v906 = vsel %vm878, %v311, 0.0
  %v907 = vadd.f32 %v905, %v906
  %v908 = vsel %vm878, %v312, 0.0
  %v909 = vadd.f32 %v907, %v908
  %v910 = vsel %vm878, %v313, 0.0
  %v911 = vadd.f32 %v909, %v910
  %v912 = vrot.slane %v911, 4
  %v913 = vadd.f32 %v911, %v912
  %v914 = vrot.slane %v913, 2
  %v915 = vadd.f32 %v913, %v914
  %v916 = vrot.slane %v915, 1
  %v917 = vadd.f32 %v915, %v916
  %v918 = vsel %vm878, %v314, 0.0
  %v919 = vsel %vm878, %v315, 0.0
  %v920 = vadd.f32 %v918, %v919
  %v921 = vsel %vm878, %v316, 0.0
  %v922 = vadd.f32 %v920, %v921
  %v923 = vsel %vm878, %v317, 0.0
  %v924 = vadd.f32 %v922, %v923
  %v925 = vrot.slane %v924, 4
  %v926 = vadd.f32 %v924, %v925
  %v927 = vrot.slane %v926, 2
  %v928 = vadd.f32 %v926, %v927
  %v929 = vrot.slane %v928, 1
  %v930 = vadd.f32 %v928, %v929
  %v931 = vsel %vm878, %v318, 0.0
  %v932 = vsel %vm878, %v319, 0.0
  %v933 = vadd.f32 %v931, %v932
  %v934 = vsel %vm878, %v320, 0.0
  %v935 = vadd.f32 %v933, %v934
  %v936 = vsel %vm878, %v321, 0.0
  %v937 = vadd.f32 %v935, %v936
  %v938 = vrot.slane %v937, 4
  %v939 = vadd.f32 %v937, %v938
  %v940 = vrot.slane %v939, 2
  %v941 = vadd.f32 %v939, %v940
  %v942 = vrot.slane %v941, 1
  %v943 = vadd.f32 %v941, %v942
  %v944 = vsel %vm878, %v322, 0.0
  %v945 = vsel %vm878, %v323, 0.0
  %v946 = vadd.f32 %v944, %v945
  %v947 = vsel %vm878, %v324, 0.0
  %v948 = vadd.f32 %v946, %v947
  %v949 = vsel %vm878, %v325, 0.0
  %v950 = vadd.f32 %v948, %v949
  %v951 = vrot.slane %v950, 4
  %v952 = vadd.f32 %v950, %v951
  %v953 = vrot.slane %v952, 2
  %v954 = vadd.f32 %v952, %v953
  %v955 = vrot.slane %v954, 1
  %v956 = vadd.f32 %v954, %v955
  %v957 = vsel %vm878, %v326, 0.0
  %v958 = vsel %vm878, %v327, 0.0
  %v959 = vadd.f32 %v957, %v958
  %v960 = vsel %vm878, %v328, 0.0
  %v961 = vadd.f32 %v959, %v960
  %v962 = vsel %vm878, %v329, 0.0
  %v963 = vadd.f32 %v961, %v962
  %v964 = vrot.slane %v963, 4
  %v965 = vadd.f32 %v963, %v964
  %v966 = vrot.slane %v965, 2
  %v967 = vadd.f32 %v965, %v966
  %v968 = vrot.slane %v967, 1
  %v969 = vadd.f32 %v967, %v968
  %v970 = vsel %vm878, %v330, 0.0
  %v971 = vsel %vm878, %v331, 0.0
  %v972 = vadd.f32 %v970, %v971
  %v973 = vsel %vm878, %v332, 0.0
  %v974 = vadd.f32 %v972, %v973
  %v975 = vsel %vm878, %v333, 0.0
  %v976 = vadd.f32 %v974, %v975
  %v977 = vrot.slane %v976, 4
  %v978 = vadd.f32 %v976, %v977
  %v979 = vrot.slane %v978, 2
  %v980 = vadd.f32 %v978, %v979
  %v981 = vrot.slane %v980, 1
  %v982 = vadd.f32 %v980, %v981
  %v983 = vsel %vm878, %v334, 0.0
  %v984 = vsel %vm878, %v335, 0.0
  %v985 = vadd.f32 %v983, %v984
  %v986 = vsel %vm878, %v336, 0.0
  %v987 = vadd.f32 %v985, %v986
  %v988 = vsel %vm878, %v337, 0.0
  %v989 = vadd.f32 %v987, %v988
  %v990 = vrot.slane %v989, 4
  %v991 = vadd.f32 %v989, %v990
  %v992 = vrot.slane %v991, 2
  %v993 = vadd.f32 %v991, %v992
  %v994 = vrot.slane %v993, 1
  %v995 = vadd.f32 %v993, %v994
  %v996 = vsel %vm878, %v338, 0.0
  %v997 = vsel %vm878, %v339, 0.0
  %v998 = vadd.f32 %v996, %v997
  %v999 = vsel %vm878, %v340, 0.0
  %v1000 = vadd.f32 %v998, %v999
  %v1001 = vsel %vm878, %v341, 0.0
  %v1002 = vadd.f32 %v1000, %v1001
  %v1003 = vrot.slane %v1002, 4
  %v1004 = vadd.f32 %v1002, %v1003
  %v1005 = vrot.slane %v1004, 2
  %v1006 = vadd.f32 %v1004, %v1005
  %v1007 = vrot.slane %v1006, 1
  %v1008 = vadd.f32 %v1006, %v1007
  %v1009 = vsel %vm878, %v342, 0.0
  %v1010 = vsel %vm878, %v343, 0.0
  %v1011 = vadd.f32 %v1009, %v1010
  %v1012 = vsel %vm878, %v344, 0.0
  %v1013 = vadd.f32 %v1011, %v1012
  %v1014 = vsel %vm878, %v345, 0.0
  %v1015 = vadd.f32 %v1013, %v1014
  %v1016 = vrot.slane %v1015, 4
  %v1017 = vadd.f32 %v1015, %v1016
  %v1018 = vrot.slane %v1017, 2
  %v1019 = vadd.f32 %v1017, %v1018
  %v1020 = vrot.slane %v1019, 1
  %v1021 = vadd.f32 %v1019, %v1020
  %v1022 = vsel %vm878, %v346, 0.0
  %v1023 = vsel %vm878, %v347, 0.0
  %v1024 = vadd.f32 %v1022, %v1023
  %v1025 = vsel %vm878, %v348, 0.0
  %v1026 = vadd.f32 %v1024, %v1025
  %v1027 = vsel %vm878, %v349, 0.0
  %v1028 = vadd.f32 %v1026, %v1027
  %v1029 = vrot.slane %v1028, 4
  %v1030 = vadd.f32 %v1028, %v1029
  %v1031 = vrot.slane %v1030, 2
  %v1032 = vadd.f32 %v1030, %v1031
  %v1033 = vrot.slane %v1032, 1
  %v1034 = vadd.f32 %v1032, %v1033
  %v1035 = vsel %vm878, %v350, 0.0
  %v1036 = vsel %vm878, %v351, 0.0
  %v1037 = vadd.f32 %v1035, %v1036
  %v1038 = vsel %vm878, %v352, 0.0
  %v1039 = vadd.f32 %v1037, %v1038
  %v1040 = vsel %vm878, %v353, 0.0
  %v1041 = vadd.f32 %v1039, %v1040
  %v1042 = vrot.slane %v1041, 4
  %v1043 = vadd.f32 %v1041, %v1042
  %v1044 = vrot.slane %v1043, 2
  %v1045 = vadd.f32 %v1043, %v1044
  %v1046 = vrot.slane %v1045, 1
  %v1047 = vadd.f32 %v1045, %v1046
  %v1048 = vsel %vm878, %v354, 0.0
  %v1049 = vsel %vm878, %v355, 0.0
  %v1050 = vadd.f32 %v1048, %v1049
  %v1051 = vsel %vm878, %v356, 0.0
  %v1052 = vadd.f32 %v1050, %v1051
  %v1053 = vsel %vm878, %v357, 0.0
  %v1054 = vadd.f32 %v1052, %v1053
  %v1055 = vrot.slane %v1054, 4
  %v1056 = vadd.f32 %v1054, %v1055
  %v1057 = vrot.slane %v1056, 2
  %v1058 = vadd.f32 %v1056, %v1057
  %v1059 = vrot.slane %v1058, 1
  %v1060 = vadd.f32 %v1058, %v1059
  %v1061 = vsel %vm878, %v358, 0.0
  %v1062 = vsel %vm878, %v359, 0.0
  %v1063 = vadd.f32 %v1061, %v1062
  %v1064 = vsel %vm878, %v360, 0.0
  %v1065 = vadd.f32 %v1063, %v1064
  %v1066 = vsel %vm878, %v361, 0.0
  %v1067 = vadd.f32 %v1065, %v1066
  %v1068 = vrot.slane %v1067, 4
  %v1069 = vadd.f32 %v1067, %v1068
  %v1070 = vrot.slane %v1069, 2
  %v1071 = vadd.f32 %v1069, %v1070
  %v1072 = vrot.slane %v1071, 1
  %v1073 = vadd.f32 %v1071, %v1072
  %v1074 = vsel %vm878, %v362, 0.0
  %v1075 = vsel %vm878, %v363, 0.0
  %v1076 = vadd.f32 %v1074, %v1075
  %v1077 = vsel %vm878, %v364, 0.0
  %v1078 = vadd.f32 %v1076, %v1077
  %v1079 = vsel %vm878, %v365, 0.0
  %v1080 = vadd.f32 %v1078, %v1079
  %v1081 = vrot.slane %v1080, 4
  %v1082 = vadd.f32 %v1080, %v1081
  %v1083 = vrot.slane %v1082, 2
  %v1084 = vadd.f32 %v1082, %v1083
  %v1085 = vrot.slane %v1084, 1
  %v1086 = vadd.f32 %v1084, %v1085
  %v1087 = vsel %vm878, %v366, 0.0
  %v1088 = vsel %vm878, %v367, 0.0
  %v1089 = vadd.f32 %v1087, %v1088
  %v1090 = vsel %vm878, %v368, 0.0
  %v1091 = vadd.f32 %v1089, %v1090
  %v1092 = vsel %vm878, %v369, 0.0
  %v1093 = vadd.f32 %v1091, %v1092
  %v1094 = vrot.slane %v1093, 4
  %v1095 = vadd.f32 %v1093, %v1094
  %v1096 = vrot.slane %v1095, 2
  %v1097 = vadd.f32 %v1095, %v1096
  %v1098 = vrot.slane %v1097, 1
  %v1099 = vadd.f32 %v1097, %v1098
  %v1100 = vsel %vm878, %v370, 0.0
  %v1101 = vsel %vm878, %v371, 0.0
  %v1102 = vadd.f32 %v1100, %v1101
  %v1103 = vsel %vm878, %v372, 0.0
  %v1104 = vadd.f32 %v1102, %v1103
  %v1105 = vsel %vm878, %v373, 0.0
  %v1106 = vadd.f32 %v1104, %v1105
  %v1107 = vrot.slane %v1106, 4
  %v1108 = vadd.f32 %v1106, %v1107
  %v1109 = vrot.slane %v1108, 2
  %v1110 = vadd.f32 %v1108, %v1109
  %v1111 = vrot.slane %v1110, 1
  %v1112 = vadd.f32 %v1110, %v1111
  %v1113 = vsel %vm878, %v374, 0.0
  %v1114 = vsel %vm878, %v375, 0.0
  %v1115 = vadd.f32 %v1113, %v1114
  %v1116 = vsel %vm878, %v376, 0.0
  %v1117 = vadd.f32 %v1115, %v1116
  %v1118 = vsel %vm878, %v377, 0.0
  %v1119 = vadd.f32 %v1117, %v1118
  %v1120 = vrot.slane %v1119, 4
  %v1121 = vadd.f32 %v1119, %v1120
  %v1122 = vrot.slane %v1121, 2
  %v1123 = vadd.f32 %v1121, %v1122
  %v1124 = vrot.slane %v1123, 1
  %v1125 = vadd.f32 %v1123, %v1124
  %v1126 = vsel %vm878, %v378, 0.0
  %v1127 = vsel %vm878, %v379, 0.0
  %v1128 = vadd.f32 %v1126, %v1127
  %v1129 = vsel %vm878, %v380, 0.0
  %v1130 = vadd.f32 %v1128, %v1129
  %v1131 = vsel %vm878, %v381, 0.0
  %v1132 = vadd.f32 %v1130, %v1131
  %v1133 = vrot.slane %v1132, 4
  %v1134 = vadd.f32 %v1132, %v1133
  %v1135 = vrot.slane %v1134, 2
  %v1136 = vadd.f32 %v1134, %v1135
  %v1137 = vrot.slane %v1136, 1
  %v1138 = vadd.f32 %v1136, %v1137
  %v1139 = vsel %vm878, %v382, 0.0
  %v1140 = vsel %vm878, %v383, 0.0
  %v1141 = vadd.f32 %v1139, %v1140
  %v1142 = vsel %vm878, %v384, 0.0
  %v1143 = vadd.f32 %v1141, %v1142
  %v1144 = vsel %vm878, %v385, 0.0
  %v1145 = vadd.f32 %v1143, %v1144
  %v1146 = vrot.slane %v1145, 4
  %v1147 = vadd.f32 %v1145, %v1146
  %v1148 = vrot.slane %v1147, 2
  %v1149 = vadd.f32 %v1147, %v1148
  %v1150 = vrot.slane %v1149, 1
  %v1151 = vadd.f32 %v1149, %v1150
  %v1152 = vsel %vm878, %v386, 0.0
  %v1153 = vsel %vm878, %v387, 0.0
  %v1154 = vadd.f32 %v1152, %v1153
  %v1155 = vsel %vm878, %v388, 0.0
  %v1156 = vadd.f32 %v1154, %v1155
  %v1157 = vsel %vm878, %v389, 0.0
  %v1158 = vadd.f32 %v1156, %v1157
  %v1159 = vrot.slane %v1158, 4
  %v1160 = vadd.f32 %v1158, %v1159
  %v1161 = vrot.slane %v1160, 2
  %v1162 = vadd.f32 %v1160, %v1161
  %v1163 = vrot.slane %v1162, 1
  %v1164 = vadd.f32 %v1162, %v1163
  %v1165 = vsel %vm878, %v390, 0.0
  %v1166 = vsel %vm878, %v391, 0.0
  %v1167 = vadd.f32 %v1165, %v1166
  %v1168 = vsel %vm878, %v392, 0.0
  %v1169 = vadd.f32 %v1167, %v1168
  %v1170 = vsel %vm878, %v393, 0.0
  %v1171 = vadd.f32 %v1169, %v1170
  %v1172 = vrot.slane %v1171, 4
  %v1173 = vadd.f32 %v1171, %v1172
  %v1174 = vrot.slane %v1173, 2
  %v1175 = vadd.f32 %v1173, %v1174
  %v1176 = vrot.slane %v1175, 1
  %v1177 = vadd.f32 %v1175, %v1176
  %v1178 = vsel %vm878, %v394, 0.0
  %v1179 = vsel %vm878, %v395, 0.0
  %v1180 = vadd.f32 %v1178, %v1179
  %v1181 = vsel %vm878, %v396, 0.0
  %v1182 = vadd.f32 %v1180, %v1181
  %v1183 = vsel %vm878, %v397, 0.0
  %v1184 = vadd.f32 %v1182, %v1183
  %v1185 = vrot.slane %v1184, 4
  %v1186 = vadd.f32 %v1184, %v1185
  %v1187 = vrot.slane %v1186, 2
  %v1188 = vadd.f32 %v1186, %v1187
  %v1189 = vrot.slane %v1188, 1
  %v1190 = vadd.f32 %v1188, %v1189
  %v1191 = vsel %vm878, %v398, 0.0
  %v1192 = vsel %vm878, %v399, 0.0
  %v1193 = vadd.f32 %v1191, %v1192
  %v1194 = vsel %vm878, %v400, 0.0
  %v1195 = vadd.f32 %v1193, %v1194
  %v1196 = vsel %vm878, %v401, 0.0
  %v1197 = vadd.f32 %v1195, %v1196
  %v1198 = vrot.slane %v1197, 4
  %v1199 = vadd.f32 %v1197, %v1198
  %v1200 = vrot.slane %v1199, 2
  %v1201 = vadd.f32 %v1199, %v1200
  %v1202 = vrot.slane %v1201, 1
  %v1203 = vadd.f32 %v1201, %v1202
  %v1204 = vsel %vm878, %v402, 0.0
  %v1205 = vsel %vm878, %v403, 0.0
  %v1206 = vadd.f32 %v1204, %v1205
  %v1207 = vsel %vm878, %v404, 0.0
  %v1208 = vadd.f32 %v1206, %v1207
  %v1209 = vsel %vm878, %v405, 0.0
  %v1210 = vadd.f32 %v1208, %v1209
  %v1211 = vrot.slane %v1210, 4
  %v1212 = vadd.f32 %v1210, %v1211
  %v1213 = vrot.slane %v1212, 2
  %v1214 = vadd.f32 %v1212, %v1213
  %v1215 = vrot.slane %v1214, 1
  %v1216 = vadd.f32 %v1214, %v1215
  %v1217 = vsel %vm878, %v406, 0.0
  %v1218 = vsel %vm878, %v407, 0.0
  %v1219 = vadd.f32 %v1217, %v1218
  %v1220 = vsel %vm878, %v408, 0.0
  %v1221 = vadd.f32 %v1219, %v1220
  %v1222 = vsel %vm878, %v409, 0.0
  %v1223 = vadd.f32 %v1221, %v1222
  %v1224 = vrot.slane %v1223, 4
  %v1225 = vadd.f32 %v1223, %v1224
  %v1226 = vrot.slane %v1225, 2
  %v1227 = vadd.f32 %v1225, %v1226
  %v1228 = vrot.slane %v1227, 1
  %v1229 = vadd.f32 %v1227, %v1228
  %v1230 = vsel %vm878, %v410, 0.0
  %v1231 = vsel %vm878, %v411, 0.0
  %v1232 = vadd.f32 %v1230, %v1231
  %v1233 = vsel %vm878, %v412, 0.0
  %v1234 = vadd.f32 %v1232, %v1233
  %v1235 = vsel %vm878, %v413, 0.0
  %v1236 = vadd.f32 %v1234, %v1235
  %v1237 = vrot.slane %v1236, 4
  %v1238 = vadd.f32 %v1236, %v1237
  %v1239 = vrot.slane %v1238, 2
  %v1240 = vadd.f32 %v1238, %v1239
  %v1241 = vrot.slane %v1240, 1
  %v1242 = vadd.f32 %v1240, %v1241
  %v1243 = vsel %vm878, %v414, 0.0
  %v1244 = vsel %vm878, %v415, 0.0
  %v1245 = vadd.f32 %v1243, %v1244
  %v1246 = vsel %vm878, %v416, 0.0
  %v1247 = vadd.f32 %v1245, %v1246
  %v1248 = vsel %vm878, %v417, 0.0
  %v1249 = vadd.f32 %v1247, %v1248
  %v1250 = vrot.slane %v1249, 4
  %v1251 = vadd.f32 %v1249, %v1250
  %v1252 = vrot.slane %v1251, 2
  %v1253 = vadd.f32 %v1251, %v1252
  %v1254 = vrot.slane %v1253, 1
  %v1255 = vadd.f32 %v1253, %v1254
  %v1256 = vsel %vm878, %v418, 0.0
  %v1257 = vsel %vm878, %v419, 0.0
  %v1258 = vadd.f32 %v1256, %v1257
  %v1259 = vsel %vm878, %v420, 0.0
  %v1260 = vadd.f32 %v1258, %v1259
  %v1261 = vsel %vm878, %v421, 0.0
  %v1262 = vadd.f32 %v1260, %v1261
  %v1263 = vrot.slane %v1262, 4
  %v1264 = vadd.f32 %v1262, %v1263
  %v1265 = vrot.slane %v1264, 2
  %v1266 = vadd.f32 %v1264, %v1265
  %v1267 = vrot.slane %v1266, 1
  %v1268 = vadd.f32 %v1266, %v1267
  %v1269 = vsel %vm878, %v422, 0.0
  %v1270 = vsel %vm878, %v423, 0.0
  %v1271 = vadd.f32 %v1269, %v1270
  %v1272 = vsel %vm878, %v424, 0.0
  %v1273 = vadd.f32 %v1271, %v1272
  %v1274 = vsel %vm878, %v425, 0.0
  %v1275 = vadd.f32 %v1273, %v1274
  %v1276 = vrot.slane %v1275, 4
  %v1277 = vadd.f32 %v1275, %v1276
  %v1278 = vrot.slane %v1277, 2
  %v1279 = vadd.f32 %v1277, %v1278
  %v1280 = vrot.slane %v1279, 1
  %v1281 = vadd.f32 %v1279, %v1280
  %v1282 = vsel %vm878, %v426, 0.0
  %v1283 = vsel %vm878, %v427, 0.0
  %v1284 = vadd.f32 %v1282, %v1283
  %v1285 = vsel %vm878, %v428, 0.0
  %v1286 = vadd.f32 %v1284, %v1285
  %v1287 = vsel %vm878, %v429, 0.0
  %v1288 = vadd.f32 %v1286, %v1287
  %v1289 = vrot.slane %v1288, 4
  %v1290 = vadd.f32 %v1288, %v1289
  %v1291 = vrot.slane %v1290, 2
  %v1292 = vadd.f32 %v1290, %v1291
  %v1293 = vrot.slane %v1292, 1
  %v1294 = vadd.f32 %v1292, %v1293
  %v1295 = vsel %vm878, %v430, 0.0
  %v1296 = vsel %vm878, %v431, 0.0
  %v1297 = vadd.f32 %v1295, %v1296
  %v1298 = vsel %vm878, %v432, 0.0
  %v1299 = vadd.f32 %v1297, %v1298
  %v1300 = vsel %vm878, %v433, 0.0
  %v1301 = vadd.f32 %v1299, %v1300
  %v1302 = vrot.slane %v1301, 4
  %v1303 = vadd.f32 %v1301, %v1302
  %v1304 = vrot.slane %v1303, 2
  %v1305 = vadd.f32 %v1303, %v1304
  %v1306 = vrot.slane %v1305, 1
  %v1307 = vadd.f32 %v1305, %v1306
  %v1308 = vsel %vm878, %v434, 0.0
  %v1309 = vsel %vm878, %v435, 0.0
  %v1310 = vadd.f32 %v1308, %v1309
  %v1311 = vsel %vm878, %v436, 0.0
  %v1312 = vadd.f32 %v1310, %v1311
  %v1313 = vsel %vm878, %v437, 0.0
  %v1314 = vadd.f32 %v1312, %v1313
  %v1315 = vrot.slane %v1314, 4
  %v1316 = vadd.f32 %v1314, %v1315
  %v1317 = vrot.slane %v1316, 2
  %v1318 = vadd.f32 %v1316, %v1317
  %v1319 = vrot.slane %v1318, 1
  %v1320 = vadd.f32 %v1318, %v1319
  %v1321 = vsel %vm878, %v438, 0.0
  %v1322 = vsel %vm878, %v439, 0.0
  %v1323 = vadd.f32 %v1321, %v1322
  %v1324 = vsel %vm878, %v440, 0.0
  %v1325 = vadd.f32 %v1323, %v1324
  %v1326 = vsel %vm878, %v441, 0.0
  %v1327 = vadd.f32 %v1325, %v1326
  %v1328 = vrot.slane %v1327, 4
  %v1329 = vadd.f32 %v1327, %v1328
  %v1330 = vrot.slane %v1329, 2
  %v1331 = vadd.f32 %v1329, %v1330
  %v1332 = vrot.slane %v1331, 1
  %v1333 = vadd.f32 %v1331, %v1332
  %v1334 = vsel %vm878, %v442, 0.0
  %v1335 = vsel %vm878, %v443, 0.0
  %v1336 = vadd.f32 %v1334, %v1335
  %v1337 = vsel %vm878, %v444, 0.0
  %v1338 = vadd.f32 %v1336, %v1337
  %v1339 = vsel %vm878, %v445, 0.0
  %v1340 = vadd.f32 %v1338, %v1339
  %v1341 = vrot.slane %v1340, 4
  %v1342 = vadd.f32 %v1340, %v1341
  %v1343 = vrot.slane %v1342, 2
  %v1344 = vadd.f32 %v1342, %v1343
  %v1345 = vrot.slane %v1344, 1
  %v1346 = vadd.f32 %v1344, %v1345
  %v1347 = vsel %vm878, %v446, 0.0
  %v1348 = vsel %vm878, %v447, 0.0
  %v1349 = vadd.f32 %v1347, %v1348
  %v1350 = vsel %vm878, %v448, 0.0
  %v1351 = vadd.f32 %v1349, %v1350
  %v1352 = vsel %vm878, %v449, 0.0
  %v1353 = vadd.f32 %v1351, %v1352
  %v1354 = vrot.slane %v1353, 4
  %v1355 = vadd.f32 %v1353, %v1354
  %v1356 = vrot.slane %v1355, 2
  %v1357 = vadd.f32 %v1355, %v1356
  %v1358 = vrot.slane %v1357, 1
  %v1359 = vadd.f32 %v1357, %v1358
  %v1360 = vsel %vm878, %v450, 0.0
  %v1361 = vsel %vm878, %v451, 0.0
  %v1362 = vadd.f32 %v1360, %v1361
  %v1363 = vsel %vm878, %v452, 0.0
  %v1364 = vadd.f32 %v1362, %v1363
  %v1365 = vsel %vm878, %v453, 0.0
  %v1366 = vadd.f32 %v1364, %v1365
  %v1367 = vrot.slane %v1366, 4
  %v1368 = vadd.f32 %v1366, %v1367
  %v1369 = vrot.slane %v1368, 2
  %v1370 = vadd.f32 %v1368, %v1369
  %v1371 = vrot.slane %v1370, 1
  %v1372 = vadd.f32 %v1370, %v1371
  %v1373 = vsel %vm878, %v454, 0.0
  %v1374 = vsel %vm878, %v455, 0.0
  %v1375 = vadd.f32 %v1373, %v1374
  %v1376 = vsel %vm878, %v456, 0.0
  %v1377 = vadd.f32 %v1375, %v1376
  %v1378 = vsel %vm878, %v457, 0.0
  %v1379 = vadd.f32 %v1377, %v1378
  %v1380 = vrot.slane %v1379, 4
  %v1381 = vadd.f32 %v1379, %v1380
  %v1382 = vrot.slane %v1381, 2
  %v1383 = vadd.f32 %v1381, %v1382
  %v1384 = vrot.slane %v1383, 1
  %v1385 = vadd.f32 %v1383, %v1384
  %v1386 = vsel %vm878, %v458, 0.0
  %v1387 = vsel %vm878, %v459, 0.0
  %v1388 = vadd.f32 %v1386, %v1387
  %v1389 = vsel %vm878, %v460, 0.0
  %v1390 = vadd.f32 %v1388, %v1389
  %v1391 = vsel %vm878, %v461, 0.0
  %v1392 = vadd.f32 %v1390, %v1391
  %v1393 = vrot.slane %v1392, 4
  %v1394 = vadd.f32 %v1392, %v1393
  %v1395 = vrot.slane %v1394, 2
  %v1396 = vadd.f32 %v1394, %v1395
  %v1397 = vrot.slane %v1396, 1
  %v1398 = vadd.f32 %v1396, %v1397
  %v1399 = vsel %vm878, %v462, 0.0
  %v1400 = vsel %vm878, %v463, 0.0
  %v1401 = vadd.f32 %v1399, %v1400
  %v1402 = vsel %vm878, %v464, 0.0
  %v1403 = vadd.f32 %v1401, %v1402
  %v1404 = vsel %vm878, %v465, 0.0
  %v1405 = vadd.f32 %v1403, %v1404
  %v1406 = vrot.slane %v1405, 4
  %v1407 = vadd.f32 %v1405, %v1406
  %v1408 = vrot.slane %v1407, 2
  %v1409 = vadd.f32 %v1407, %v1408
  %v1410 = vrot.slane %v1409, 1
  %v1411 = vadd.f32 %v1409, %v1410
  %v1412 = vsel %vm878, %v466, 0.0
  %v1413 = vsel %vm878, %v467, 0.0
  %v1414 = vadd.f32 %v1412, %v1413
  %v1415 = vsel %vm878, %v468, 0.0
  %v1416 = vadd.f32 %v1414, %v1415
  %v1417 = vsel %vm878, %v469, 0.0
  %v1418 = vadd.f32 %v1416, %v1417
  %v1419 = vrot.slane %v1418, 4
  %v1420 = vadd.f32 %v1418, %v1419
  %v1421 = vrot.slane %v1420, 2
  %v1422 = vadd.f32 %v1420, %v1421
  %v1423 = vrot.slane %v1422, 1
  %v1424 = vadd.f32 %v1422, %v1423
  %v1425 = vsel %vm878, %v470, 0.0
  %v1426 = vsel %vm878, %v471, 0.0
  %v1427 = vadd.f32 %v1425, %v1426
  %v1428 = vsel %vm878, %v472, 0.0
  %v1429 = vadd.f32 %v1427, %v1428
  %v1430 = vsel %vm878, %v473, 0.0
  %v1431 = vadd.f32 %v1429, %v1430
  %v1432 = vrot.slane %v1431, 4
  %v1433 = vadd.f32 %v1431, %v1432
  %v1434 = vrot.slane %v1433, 2
  %v1435 = vadd.f32 %v1433, %v1434
  %v1436 = vrot.slane %v1435, 1
  %v1437 = vadd.f32 %v1435, %v1436
  %v1438 = vsel %vm878, %v474, 0.0
  %v1439 = vsel %vm878, %v475, 0.0
  %v1440 = vadd.f32 %v1438, %v1439
  %v1441 = vsel %vm878, %v476, 0.0
  %v1442 = vadd.f32 %v1440, %v1441
  %v1443 = vsel %vm878, %v477, 0.0
  %v1444 = vadd.f32 %v1442, %v1443
  %v1445 = vrot.slane %v1444, 4
  %v1446 = vadd.f32 %v1444, %v1445
  %v1447 = vrot.slane %v1446, 2
  %v1448 = vadd.f32 %v1446, %v1447
  %v1449 = vrot.slane %v1448, 1
  %v1450 = vadd.f32 %v1448, %v1449
  %v1451 = vsel %vm878, %v478, 0.0
  %v1452 = vsel %vm878, %v479, 0.0
  %v1453 = vadd.f32 %v1451, %v1452
  %v1454 = vsel %vm878, %v480, 0.0
  %v1455 = vadd.f32 %v1453, %v1454
  %v1456 = vsel %vm878, %v481, 0.0
  %v1457 = vadd.f32 %v1455, %v1456
  %v1458 = vrot.slane %v1457, 4
  %v1459 = vadd.f32 %v1457, %v1458
  %v1460 = vrot.slane %v1459, 2
  %v1461 = vadd.f32 %v1459, %v1460
  %v1462 = vrot.slane %v1461, 1
  %v1463 = vadd.f32 %v1461, %v1462
  %v1464 = vsel %vm878, %v482, 0.0
  %v1465 = vsel %vm878, %v483, 0.0
  %v1466 = vadd.f32 %v1464, %v1465
  %v1467 = vsel %vm878, %v484, 0.0
  %v1468 = vadd.f32 %v1466, %v1467
  %v1469 = vsel %vm878, %v485, 0.0
  %v1470 = vadd.f32 %v1468, %v1469
  %v1471 = vrot.slane %v1470, 4
  %v1472 = vadd.f32 %v1470, %v1471
  %v1473 = vrot.slane %v1472, 2
  %v1474 = vadd.f32 %v1472, %v1473
  %v1475 = vrot.slane %v1474, 1
  %v1476 = vadd.f32 %v1474, %v1475
  %v1477 = vsel %vm878, %v486, 0.0
  %v1478 = vsel %vm878, %v487, 0.0
  %v1479 = vadd.f32 %v1477, %v1478
  %v1480 = vsel %vm878, %v488, 0.0
  %v1481 = vadd.f32 %v1479, %v1480
  %v1482 = vsel %vm878, %v489, 0.0
  %v1483 = vadd.f32 %v1481, %v1482
  %v1484 = vrot.slane %v1483, 4
  %v1485 = vadd.f32 %v1483, %v1484
  %v1486 = vrot.slane %v1485, 2
  %v1487 = vadd.f32 %v1485, %v1486
  %v1488 = vrot.slane %v1487, 1
  %v1489 = vadd.f32 %v1487, %v1488
  %v1490 = vsel %vm878, %v490, 0.0
  %v1491 = vsel %vm878, %v491, 0.0
  %v1492 = vadd.f32 %v1490, %v1491
  %v1493 = vsel %vm878, %v492, 0.0
  %v1494 = vadd.f32 %v1492, %v1493
  %v1495 = vsel %vm878, %v493, 0.0
  %v1496 = vadd.f32 %v1494, %v1495
  %v1497 = vrot.slane %v1496, 4
  %v1498 = vadd.f32 %v1496, %v1497
  %v1499 = vrot.slane %v1498, 2
  %v1500 = vadd.f32 %v1498, %v1499
  %v1501 = vrot.slane %v1500, 1
  %v1502 = vadd.f32 %v1500, %v1501
  %v1503 = vsel %vm878, %v494, 0.0
  %v1504 = vsel %vm878, %v495, 0.0
  %v1505 = vadd.f32 %v1503, %v1504
  %v1506 = vsel %vm878, %v496, 0.0
  %v1507 = vadd.f32 %v1505, %v1506
  %v1508 = vsel %vm878, %v497, 0.0
  %v1509 = vadd.f32 %v1507, %v1508
  %v1510 = vrot.slane %v1509, 4
  %v1511 = vadd.f32 %v1509, %v1510
  %v1512 = vrot.slane %v1511, 2
  %v1513 = vadd.f32 %v1511, %v1512
  %v1514 = vrot.slane %v1513, 1
  %v1515 = vadd.f32 %v1513, %v1514
  %v1516 = vsel %vm878, %v498, 0.0
  %v1517 = vsel %vm878, %v499, 0.0
  %v1518 = vadd.f32 %v1516, %v1517
  %v1519 = vsel %vm878, %v500, 0.0
  %v1520 = vadd.f32 %v1518, %v1519
  %v1521 = vsel %vm878, %v501, 0.0
  %v1522 = vadd.f32 %v1520, %v1521
  %v1523 = vrot.slane %v1522, 4
  %v1524 = vadd.f32 %v1522, %v1523
  %v1525 = vrot.slane %v1524, 2
  %v1526 = vadd.f32 %v1524, %v1525
  %v1527 = vrot.slane %v1526, 1
  %v1528 = vadd.f32 %v1526, %v1527
  %v1529 = vsel %vm878, %v502, 0.0
  %v1530 = vsel %vm878, %v503, 0.0
  %v1531 = vadd.f32 %v1529, %v1530
  %v1532 = vsel %vm878, %v504, 0.0
  %v1533 = vadd.f32 %v1531, %v1532
  %v1534 = vsel %vm878, %v505, 0.0
  %v1535 = vadd.f32 %v1533, %v1534
  %v1536 = vrot.slane %v1535, 4
  %v1537 = vadd.f32 %v1535, %v1536
  %v1538 = vrot.slane %v1537, 2
  %v1539 = vadd.f32 %v1537, %v1538
  %v1540 = vrot.slane %v1539, 1
  %v1541 = vadd.f32 %v1539, %v1540
  %v1542 = vsel %vm878, %v506, 0.0
  %v1543 = vsel %vm878, %v507, 0.0
  %v1544 = vadd.f32 %v1542, %v1543
  %v1545 = vsel %vm878, %v508, 0.0
  %v1546 = vadd.f32 %v1544, %v1545
  %v1547 = vsel %vm878, %v509, 0.0
  %v1548 = vadd.f32 %v1546, %v1547
  %v1549 = vrot.slane %v1548, 4
  %v1550 = vadd.f32 %v1548, %v1549
  %v1551 = vrot.slane %v1550, 2
  %v1552 = vadd.f32 %v1550, %v1551
  %v1553 = vrot.slane %v1552, 1
  %v1554 = vadd.f32 %v1552, %v1553
  %v1555 = vsel %vm878, %v510, 0.0
  %v1556 = vsel %vm878, %v511, 0.0
  %v1557 = vadd.f32 %v1555, %v1556
  %v1558 = vsel %vm878, %v512, 0.0
  %v1559 = vadd.f32 %v1557, %v1558
  %v1560 = vsel %vm878, %v513, 0.0
  %v1561 = vadd.f32 %v1559, %v1560
  %v1562 = vrot.slane %v1561, 4
  %v1563 = vadd.f32 %v1561, %v1562
  %v1564 = vrot.slane %v1563, 2
  %v1565 = vadd.f32 %v1563, %v1564
  %v1566 = vrot.slane %v1565, 1
  %v1567 = vadd.f32 %v1565, %v1566
  %v1568 = vsel %vm878, %v514, 0.0
  %v1569 = vsel %vm878, %v515, 0.0
  %v1570 = vadd.f32 %v1568, %v1569
  %v1571 = vsel %vm878, %v516, 0.0
  %v1572 = vadd.f32 %v1570, %v1571
  %v1573 = vsel %vm878, %v517, 0.0
  %v1574 = vadd.f32 %v1572, %v1573
  %v1575 = vrot.slane %v1574, 4
  %v1576 = vadd.f32 %v1574, %v1575
  %v1577 = vrot.slane %v1576, 2
  %v1578 = vadd.f32 %v1576, %v1577
  %v1579 = vrot.slane %v1578, 1
  %v1580 = vadd.f32 %v1578, %v1579
  %v1581 = vsel %vm878, %v518, 0.0
  %v1582 = vsel %vm878, %v519, 0.0
  %v1583 = vadd.f32 %v1581, %v1582
  %v1584 = vsel %vm878, %v520, 0.0
  %v1585 = vadd.f32 %v1583, %v1584
  %v1586 = vsel %vm878, %v521, 0.0
  %v1587 = vadd.f32 %v1585, %v1586
  %v1588 = vrot.slane %v1587, 4
  %v1589 = vadd.f32 %v1587, %v1588
  %v1590 = vrot.slane %v1589, 2
  %v1591 = vadd.f32 %v1589, %v1590
  %v1592 = vrot.slane %v1591, 1
  %v1593 = vadd.f32 %v1591, %v1592
  %v1594 = vsel %vm878, %v522, 0.0
  %v1595 = vsel %vm878, %v523, 0.0
  %v1596 = vadd.f32 %v1594, %v1595
  %v1597 = vsel %vm878, %v524, 0.0
  %v1598 = vadd.f32 %v1596, %v1597
  %v1599 = vsel %vm878, %v525, 0.0
  %v1600 = vadd.f32 %v1598, %v1599
  %v1601 = vrot.slane %v1600, 4
  %v1602 = vadd.f32 %v1600, %v1601
  %v1603 = vrot.slane %v1602, 2
  %v1604 = vadd.f32 %v1602, %v1603
  %v1605 = vrot.slane %v1604, 1
  %v1606 = vadd.f32 %v1604, %v1605
  %v1607 = vsel %vm878, %v526, 0.0
  %v1608 = vsel %vm878, %v527, 0.0
  %v1609 = vadd.f32 %v1607, %v1608
  %v1610 = vsel %vm878, %v528, 0.0
  %v1611 = vadd.f32 %v1609, %v1610
  %v1612 = vsel %vm878, %v529, 0.0
  %v1613 = vadd.f32 %v1611, %v1612
  %v1614 = vrot.slane %v1613, 4
  %v1615 = vadd.f32 %v1613, %v1614
  %v1616 = vrot.slane %v1615, 2
  %v1617 = vadd.f32 %v1615, %v1616
  %v1618 = vrot.slane %v1617, 1
  %v1619 = vadd.f32 %v1617, %v1618
  %v1620 = vsel %vm878, %v530, 0.0
  %v1621 = vsel %vm878, %v531, 0.0
  %v1622 = vadd.f32 %v1620, %v1621
  %v1623 = vsel %vm878, %v532, 0.0
  %v1624 = vadd.f32 %v1622, %v1623
  %v1625 = vsel %vm878, %v533, 0.0
  %v1626 = vadd.f32 %v1624, %v1625
  %v1627 = vrot.slane %v1626, 4
  %v1628 = vadd.f32 %v1626, %v1627
  %v1629 = vrot.slane %v1628, 2
  %v1630 = vadd.f32 %v1628, %v1629
  %v1631 = vrot.slane %v1630, 1
  %v1632 = vadd.f32 %v1630, %v1631
  %v1633 = vsel %vm878, %v534, 0.0
  %v1634 = vsel %vm878, %v535, 0.0
  %v1635 = vadd.f32 %v1633, %v1634
  %v1636 = vsel %vm878, %v536, 0.0
  %v1637 = vadd.f32 %v1635, %v1636
  %v1638 = vsel %vm878, %v537, 0.0
  %v1639 = vadd.f32 %v1637, %v1638
  %v1640 = vrot.slane %v1639, 4
  %v1641 = vadd.f32 %v1639, %v1640
  %v1642 = vrot.slane %v1641, 2
  %v1643 = vadd.f32 %v1641, %v1642
  %v1644 = vrot.slane %v1643, 1
  %v1645 = vadd.f32 %v1643, %v1644
  %v1646 = vsel %vm878, %v538, 0.0
  %v1647 = vsel %vm878, %v539, 0.0
  %v1648 = vadd.f32 %v1646, %v1647
  %v1649 = vsel %vm878, %v540, 0.0
  %v1650 = vadd.f32 %v1648, %v1649
  %v1651 = vsel %vm878, %v541, 0.0
  %v1652 = vadd.f32 %v1650, %v1651
  %v1653 = vrot.slane %v1652, 4
  %v1654 = vadd.f32 %v1652, %v1653
  %v1655 = vrot.slane %v1654, 2
  %v1656 = vadd.f32 %v1654, %v1655
  %v1657 = vrot.slane %v1656, 1
  %v1658 = vadd.f32 %v1656, %v1657
  %v1659 = vsel %vm878, %v542, 0.0
  %v1660 = vsel %vm878, %v543, 0.0
  %v1661 = vadd.f32 %v1659, %v1660
  %v1662 = vsel %vm878, %v544, 0.0
  %v1663 = vadd.f32 %v1661, %v1662
  %v1664 = vsel %vm878, %v545, 0.0
  %v1665 = vadd.f32 %v1663, %v1664
  %v1666 = vrot.slane %v1665, 4
  %v1667 = vadd.f32 %v1665, %v1666
  %v1668 = vrot.slane %v1667, 2
  %v1669 = vadd.f32 %v1667, %v1668
  %v1670 = vrot.slane %v1669, 1
  %v1671 = vadd.f32 %v1669, %v1670
  %v1672 = vsel %vm878, %v546, 0.0
  %v1673 = vsel %vm878, %v547, 0.0
  %v1674 = vadd.f32 %v1672, %v1673
  %v1675 = vsel %vm878, %v548, 0.0
  %v1676 = vadd.f32 %v1674, %v1675
  %v1677 = vsel %vm878, %v549, 0.0
  %v1678 = vadd.f32 %v1676, %v1677
  %v1679 = vrot.slane %v1678, 4
  %v1680 = vadd.f32 %v1678, %v1679
  %v1681 = vrot.slane %v1680, 2
  %v1682 = vadd.f32 %v1680, %v1681
  %v1683 = vrot.slane %v1682, 1
  %v1684 = vadd.f32 %v1682, %v1683
  %v1685 = vsel %vm878, %v550, 0.0
  %v1686 = vsel %vm878, %v551, 0.0
  %v1687 = vadd.f32 %v1685, %v1686
  %v1688 = vsel %vm878, %v552, 0.0
  %v1689 = vadd.f32 %v1687, %v1688
  %v1690 = vsel %vm878, %v553, 0.0
  %v1691 = vadd.f32 %v1689, %v1690
  %v1692 = vrot.slane %v1691, 4
  %v1693 = vadd.f32 %v1691, %v1692
  %v1694 = vrot.slane %v1693, 2
  %v1695 = vadd.f32 %v1693, %v1694
  %v1696 = vrot.slane %v1695, 1
  %v1697 = vadd.f32 %v1695, %v1696
  %v1698 = vsel %vm878, %v554, 0.0
  %v1699 = vsel %vm878, %v555, 0.0
  %v1700 = vadd.f32 %v1698, %v1699
  %v1701 = vsel %vm878, %v556, 0.0
  %v1702 = vadd.f32 %v1700, %v1701
  %v1703 = vsel %vm878, %v557, 0.0
  %v1704 = vadd.f32 %v1702, %v1703
  %v1705 = vrot.slane %v1704, 4
  %v1706 = vadd.f32 %v1704, %v1705
  %v1707 = vrot.slane %v1706, 2
  %v1708 = vadd.f32 %v1706, %v1707
  %v1709 = vrot.slane %v1708, 1
  %v1710 = vadd.f32 %v1708, %v1709
  %v1711 = vsel %vm878, %v558, 0.0
  %v1712 = vsel %vm878, %v559, 0.0
  %v1713 = vadd.f32 %v1711, %v1712
  %v1714 = vsel %vm878, %v560, 0.0
  %v1715 = vadd.f32 %v1713, %v1714
  %v1716 = vsel %vm878, %v561, 0.0
  %v1717 = vadd.f32 %v1715, %v1716
  %v1718 = vrot.slane %v1717, 4
  %v1719 = vadd.f32 %v1717, %v1718
  %v1720 = vrot.slane %v1719, 2
  %v1721 = vadd.f32 %v1719, %v1720
  %v1722 = vrot.slane %v1721, 1
  %v1723 = vadd.f32 %v1721, %v1722
  %v1724 = vsel %vm878, %v562, 0.0
  %v1725 = vsel %vm878, %v563, 0.0
  %v1726 = vadd.f32 %v1724, %v1725
  %v1727 = vsel %vm878, %v564, 0.0
  %v1728 = vadd.f32 %v1726, %v1727
  %v1729 = vsel %vm878, %v565, 0.0
  %v1730 = vadd.f32 %v1728, %v1729
  %v1731 = vrot.slane %v1730, 4
  %v1732 = vadd.f32 %v1730, %v1731
  %v1733 = vrot.slane %v1732, 2
  %v1734 = vadd.f32 %v1732, %v1733
  %v1735 = vrot.slane %v1734, 1
  %v1736 = vadd.f32 %v1734, %v1735
  %v1737 = vsel %vm878, %v566, 0.0
  %v1738 = vsel %vm878, %v567, 0.0
  %v1739 = vadd.f32 %v1737, %v1738
  %v1740 = vsel %vm878, %v568, 0.0
  %v1741 = vadd.f32 %v1739, %v1740
  %v1742 = vsel %vm878, %v569, 0.0
  %v1743 = vadd.f32 %v1741, %v1742
  %v1744 = vrot.slane %v1743, 4
  %v1745 = vadd.f32 %v1743, %v1744
  %v1746 = vrot.slane %v1745, 2
  %v1747 = vadd.f32 %v1745, %v1746
  %v1748 = vrot.slane %v1747, 1
  %v1749 = vadd.f32 %v1747, %v1748
  %v1750 = vsel %vm878, %v570, 0.0
  %v1751 = vsel %vm878, %v571, 0.0
  %v1752 = vadd.f32 %v1750, %v1751
  %v1753 = vsel %vm878, %v572, 0.0
  %v1754 = vadd.f32 %v1752, %v1753
  %v1755 = vsel %vm878, %v573, 0.0
  %v1756 = vadd.f32 %v1754, %v1755
  %v1757 = vrot.slane %v1756, 4
  %v1758 = vadd.f32 %v1756, %v1757
  %v1759 = vrot.slane %v1758, 2
  %v1760 = vadd.f32 %v1758, %v1759
  %v1761 = vrot.slane %v1760, 1
  %v1762 = vadd.f32 %v1760, %v1761
  %v1763 = vsel %vm878, %v574, 0.0
  %v1764 = vsel %vm878, %v575, 0.0
  %v1765 = vadd.f32 %v1763, %v1764
  %v1766 = vsel %vm878, %v576, 0.0
  %v1767 = vadd.f32 %v1765, %v1766
  %v1768 = vsel %vm878, %v577, 0.0
  %v1769 = vadd.f32 %v1767, %v1768
  %v1770 = vrot.slane %v1769, 4
  %v1771 = vadd.f32 %v1769, %v1770
  %v1772 = vrot.slane %v1771, 2
  %v1773 = vadd.f32 %v1771, %v1772
  %v1774 = vrot.slane %v1773, 1
  %v1775 = vadd.f32 %v1773, %v1774
  %v1776 = vsel %vm878, %v578, 0.0
  %v1777 = vsel %vm878, %v579, 0.0
  %v1778 = vadd.f32 %v1776, %v1777
  %v1779 = vsel %vm878, %v580, 0.0
  %v1780 = vadd.f32 %v1778, %v1779
  %v1781 = vsel %vm878, %v581, 0.0
  %v1782 = vadd.f32 %v1780, %v1781
  %v1783 = vrot.slane %v1782, 4
  %v1784 = vadd.f32 %v1782, %v1783
  %v1785 = vrot.slane %v1784, 2
  %v1786 = vadd.f32 %v1784, %v1785
  %v1787 = vrot.slane %v1786, 1
  %v1788 = vadd.f32 %v1786, %v1787
  %v1789 = vsel %vm878, %v582, 0.0
  %v1790 = vsel %vm878, %v583, 0.0
  %v1791 = vadd.f32 %v1789, %v1790
  %v1792 = vsel %vm878, %v584, 0.0
  %v1793 = vadd.f32 %v1791, %v1792
  %v1794 = vsel %vm878, %v585, 0.0
  %v1795 = vadd.f32 %v1793, %v1794
  %v1796 = vrot.slane %v1795, 4
  %v1797 = vadd.f32 %v1795, %v1796
  %v1798 = vrot.slane %v1797, 2
  %v1799 = vadd.f32 %v1797, %v1798
  %v1800 = vrot.slane %v1799, 1
  %v1801 = vadd.f32 %v1799, %v1800
  %v1802 = vsel %vm878, %v586, 0.0
  %v1803 = vsel %vm878, %v587, 0.0
  %v1804 = vadd.f32 %v1802, %v1803
  %v1805 = vsel %vm878, %v588, 0.0
  %v1806 = vadd.f32 %v1804, %v1805
  %v1807 = vsel %vm878, %v589, 0.0
  %v1808 = vadd.f32 %v1806, %v1807
  %v1809 = vrot.slane %v1808, 4
  %v1810 = vadd.f32 %v1808, %v1809
  %v1811 = vrot.slane %v1810, 2
  %v1812 = vadd.f32 %v1810, %v1811
  %v1813 = vrot.slane %v1812, 1
  %v1814 = vadd.f32 %v1812, %v1813
  %v1815 = vsel %vm878, %v590, 0.0
  %v1816 = vsel %vm878, %v591, 0.0
  %v1817 = vadd.f32 %v1815, %v1816
  %v1818 = vsel %vm878, %v592, 0.0
  %v1819 = vadd.f32 %v1817, %v1818
  %v1820 = vsel %vm878, %v593, 0.0
  %v1821 = vadd.f32 %v1819, %v1820
  %v1822 = vrot.slane %v1821, 4
  %v1823 = vadd.f32 %v1821, %v1822
  %v1824 = vrot.slane %v1823, 2
  %v1825 = vadd.f32 %v1823, %v1824
  %v1826 = vrot.slane %v1825, 1
  %v1827 = vadd.f32 %v1825, %v1826
  %v1828 = vsel %vm878, %v594, 0.0
  %v1829 = vsel %vm878, %v595, 0.0
  %v1830 = vadd.f32 %v1828, %v1829
  %v1831 = vsel %vm878, %v596, 0.0
  %v1832 = vadd.f32 %v1830, %v1831
  %v1833 = vsel %vm878, %v597, 0.0
  %v1834 = vadd.f32 %v1832, %v1833
  %v1835 = vrot.slane %v1834, 4
  %v1836 = vadd.f32 %v1834, %v1835
  %v1837 = vrot.slane %v1836, 2
  %v1838 = vadd.f32 %v1836, %v1837
  %v1839 = vrot.slane %v1838, 1
  %v1840 = vadd.f32 %v1838, %v1839
  %v1841 = vsel %vm878, %v598, 0.0
  %v1842 = vsel %vm878, %v599, 0.0
  %v1843 = vadd.f32 %v1841, %v1842
  %v1844 = vsel %vm878, %v600, 0.0
  %v1845 = vadd.f32 %v1843, %v1844
  %v1846 = vsel %vm878, %v601, 0.0
  %v1847 = vadd.f32 %v1845, %v1846
  %v1848 = vrot.slane %v1847, 4
  %v1849 = vadd.f32 %v1847, %v1848
  %v1850 = vrot.slane %v1849, 2
  %v1851 = vadd.f32 %v1849, %v1850
  %v1852 = vrot.slane %v1851, 1
  %v1853 = vadd.f32 %v1851, %v1852
  %v1854 = vsel %vm878, %v602, 0.0
  %v1855 = vsel %vm878, %v603, 0.0
  %v1856 = vadd.f32 %v1854, %v1855
  %v1857 = vsel %vm878, %v604, 0.0
  %v1858 = vadd.f32 %v1856, %v1857
  %v1859 = vsel %vm878, %v605, 0.0
  %v1860 = vadd.f32 %v1858, %v1859
  %v1861 = vrot.slane %v1860, 4
  %v1862 = vadd.f32 %v1860, %v1861
  %v1863 = vrot.slane %v1862, 2
  %v1864 = vadd.f32 %v1862, %v1863
  %v1865 = vrot.slane %v1864, 1
  %v1866 = vadd.f32 %v1864, %v1865
  %v1867 = vsel %vm878, %v606, 0.0
  %v1868 = vsel %vm878, %v607, 0.0
  %v1869 = vadd.f32 %v1867, %v1868
  %v1870 = vsel %vm878, %v608, 0.0
  %v1871 = vadd.f32 %v1869, %v1870
  %v1872 = vsel %vm878, %v609, 0.0
  %v1873 = vadd.f32 %v1871, %v1872
  %v1874 = vrot.slane %v1873, 4
  %v1875 = vadd.f32 %v1873, %v1874
  %v1876 = vrot.slane %v1875, 2
  %v1877 = vadd.f32 %v1875, %v1876
  %v1878 = vrot.slane %v1877, 1
  %v1879 = vadd.f32 %v1877, %v1878
  %v1880 = vsel %vm878, %v610, 0.0
  %v1881 = vsel %vm878, %v611, 0.0
  %v1882 = vadd.f32 %v1880, %v1881
  %v1883 = vsel %vm878, %v612, 0.0
  %v1884 = vadd.f32 %v1882, %v1883
  %v1885 = vsel %vm878, %v613, 0.0
  %v1886 = vadd.f32 %v1884, %v1885
  %v1887 = vrot.slane %v1886, 4
  %v1888 = vadd.f32 %v1886, %v1887
  %v1889 = vrot.slane %v1888, 2
  %v1890 = vadd.f32 %v1888, %v1889
  %v1891 = vrot.slane %v1890, 1
  %v1892 = vadd.f32 %v1890, %v1891
  %v1893 = vsel %vm878, %v614, 0.0
  %v1894 = vsel %vm878, %v615, 0.0
  %v1895 = vadd.f32 %v1893, %v1894
  %v1896 = vsel %vm878, %v616, 0.0
  %v1897 = vadd.f32 %v1895, %v1896
  %v1898 = vsel %vm878, %v617, 0.0
  %v1899 = vadd.f32 %v1897, %v1898
  %v1900 = vrot.slane %v1899, 4
  %v1901 = vadd.f32 %v1899, %v1900
  %v1902 = vrot.slane %v1901, 2
  %v1903 = vadd.f32 %v1901, %v1902
  %v1904 = vrot.slane %v1903, 1
  %v1905 = vadd.f32 %v1903, %v1904
  %v1906 = vsel %vm878, %v618, 0.0
  %v1907 = vsel %vm878, %v619, 0.0
  %v1908 = vadd.f32 %v1906, %v1907
  %v1909 = vsel %vm878, %v620, 0.0
  %v1910 = vadd.f32 %v1908, %v1909
  %v1911 = vsel %vm878, %v621, 0.0
  %v1912 = vadd.f32 %v1910, %v1911
  %v1913 = vrot.slane %v1912, 4
  %v1914 = vadd.f32 %v1912, %v1913
  %v1915 = vrot.slane %v1914, 2
  %v1916 = vadd.f32 %v1914, %v1915
  %v1917 = vrot.slane %v1916, 1
  %v1918 = vadd.f32 %v1916, %v1917
  %v1919 = vsel %vm878, %v622, 0.0
  %v1920 = vsel %vm878, %v623, 0.0
  %v1921 = vadd.f32 %v1919, %v1920
  %v1922 = vsel %vm878, %v624, 0.0
  %v1923 = vadd.f32 %v1921, %v1922
  %v1924 = vsel %vm878, %v625, 0.0
  %v1925 = vadd.f32 %v1923, %v1924
  %v1926 = vrot.slane %v1925, 4
  %v1927 = vadd.f32 %v1925, %v1926
  %v1928 = vrot.slane %v1927, 2
  %v1929 = vadd.f32 %v1927, %v1928
  %v1930 = vrot.slane %v1929, 1
  %v1931 = vadd.f32 %v1929, %v1930
  %v1932 = vsel %vm878, %v626, 0.0
  %v1933 = vsel %vm878, %v627, 0.0
  %v1934 = vadd.f32 %v1932, %v1933
  %v1935 = vsel %vm878, %v628, 0.0
  %v1936 = vadd.f32 %v1934, %v1935
  %v1937 = vsel %vm878, %v629, 0.0
  %v1938 = vadd.f32 %v1936, %v1937
  %v1939 = vrot.slane %v1938, 4
  %v1940 = vadd.f32 %v1938, %v1939
  %v1941 = vrot.slane %v1940, 2
  %v1942 = vadd.f32 %v1940, %v1941
  %v1943 = vrot.slane %v1942, 1
  %v1944 = vadd.f32 %v1942, %v1943
  %v1945 = vsel %vm878, %v630, 0.0
  %v1946 = vsel %vm878, %v631, 0.0
  %v1947 = vadd.f32 %v1945, %v1946
  %v1948 = vsel %vm878, %v632, 0.0
  %v1949 = vadd.f32 %v1947, %v1948
  %v1950 = vsel %vm878, %v633, 0.0
  %v1951 = vadd.f32 %v1949, %v1950
  %v1952 = vrot.slane %v1951, 4
  %v1953 = vadd.f32 %v1951, %v1952
  %v1954 = vrot.slane %v1953, 2
  %v1955 = vadd.f32 %v1953, %v1954
  %v1956 = vrot.slane %v1955, 1
  %v1957 = vadd.f32 %v1955, %v1956
  %v1958 = vsel %vm878, %v634, 0.0
  %v1959 = vsel %vm878, %v635, 0.0
  %v1960 = vadd.f32 %v1958, %v1959
  %v1961 = vsel %vm878, %v636, 0.0
  %v1962 = vadd.f32 %v1960, %v1961
  %v1963 = vsel %vm878, %v637, 0.0
  %v1964 = vadd.f32 %v1962, %v1963
  %v1965 = vrot.slane %v1964, 4
  %v1966 = vadd.f32 %v1964, %v1965
  %v1967 = vrot.slane %v1966, 2
  %v1968 = vadd.f32 %v1966, %v1967
  %v1969 = vrot.slane %v1968, 1
  %v1970 = vadd.f32 %v1968, %v1969
  %v1971 = vsel %vm878, %v638, 0.0
  %v1972 = vsel %vm878, %v639, 0.0
  %v1973 = vadd.f32 %v1971, %v1972
  %v1974 = vsel %vm878, %v640, 0.0
  %v1975 = vadd.f32 %v1973, %v1974
  %v1976 = vsel %vm878, %v641, 0.0
  %v1977 = vadd.f32 %v1975, %v1976
  %v1978 = vrot.slane %v1977, 4
  %v1979 = vadd.f32 %v1977, %v1978
  %v1980 = vrot.slane %v1979, 2
  %v1981 = vadd.f32 %v1979, %v1980
  %v1982 = vrot.slane %v1981, 1
  %v1983 = vadd.f32 %v1981, %v1982
  %v1984 = vsel %vm878, %v642, 0.0
  %v1985 = vsel %vm878, %v643, 0.0
  %v1986 = vadd.f32 %v1984, %v1985
  %v1987 = vsel %vm878, %v644, 0.0
  %v1988 = vadd.f32 %v1986, %v1987
  %v1989 = vsel %vm878, %v645, 0.0
  %v1990 = vadd.f32 %v1988, %v1989
  %v1991 = vrot.slane %v1990, 4
  %v1992 = vadd.f32 %v1990, %v1991
  %v1993 = vrot.slane %v1992, 2
  %v1994 = vadd.f32 %v1992, %v1993
  %v1995 = vrot.slane %v1994, 1
  %v1996 = vadd.f32 %v1994, %v1995
  %v1997 = vsel %vm878, %v646, 0.0
  %v1998 = vsel %vm878, %v647, 0.0
  %v1999 = vadd.f32 %v1997, %v1998
  %v2000 = vsel %vm878, %v648, 0.0
  %v2001 = vadd.f32 %v1999, %v2000
  %v2002 = vsel %vm878, %v649, 0.0
  %v2003 = vadd.f32 %v2001, %v2002
  %v2004 = vrot.slane %v2003, 4
  %v2005 = vadd.f32 %v2003, %v2004
  %v2006 = vrot.slane %v2005, 2
  %v2007 = vadd.f32 %v2005, %v2006
  %v2008 = vrot.slane %v2007, 1
  %v2009 = vadd.f32 %v2007, %v2008
  %v2010 = vsel %vm878, %v650, 0.0
  %v2011 = vsel %vm878, %v651, 0.0
  %v2012 = vadd.f32 %v2010, %v2011
  %v2013 = vsel %vm878, %v652, 0.0
  %v2014 = vadd.f32 %v2012, %v2013
  %v2015 = vsel %vm878, %v653, 0.0
  %v2016 = vadd.f32 %v2014, %v2015
  %v2017 = vrot.slane %v2016, 4
  %v2018 = vadd.f32 %v2016, %v2017
  %v2019 = vrot.slane %v2018, 2
  %v2020 = vadd.f32 %v2018, %v2019
  %v2021 = vrot.slane %v2020, 1
  %v2022 = vadd.f32 %v2020, %v2021
  %v2023 = vsel %vm878, %v654, 0.0
  %v2024 = vsel %vm878, %v655, 0.0
  %v2025 = vadd.f32 %v2023, %v2024
  %v2026 = vsel %vm878, %v656, 0.0
  %v2027 = vadd.f32 %v2025, %v2026
  %v2028 = vsel %vm878, %v657, 0.0
  %v2029 = vadd.f32 %v2027, %v2028
  %v2030 = vrot.slane %v2029, 4
  %v2031 = vadd.f32 %v2029, %v2030
  %v2032 = vrot.slane %v2031, 2
  %v2033 = vadd.f32 %v2031, %v2032
  %v2034 = vrot.slane %v2033, 1
  %v2035 = vadd.f32 %v2033, %v2034
  %v2036 = vsel %vm878, %v658, 0.0
  %v2037 = vsel %vm878, %v659, 0.0
  %v2038 = vadd.f32 %v2036, %v2037
  %v2039 = vsel %vm878, %v660, 0.0
  %v2040 = vadd.f32 %v2038, %v2039
  %v2041 = vsel %vm878, %v661, 0.0
  %v2042 = vadd.f32 %v2040, %v2041
  %v2043 = vrot.slane %v2042, 4
  %v2044 = vadd.f32 %v2042, %v2043
  %v2045 = vrot.slane %v2044, 2
  %v2046 = vadd.f32 %v2044, %v2045
  %v2047 = vrot.slane %v2046, 1
  %v2048 = vadd.f32 %v2046, %v2047
  %v2049 = vsel %vm878, %v662, 0.0
  %v2050 = vsel %vm878, %v663, 0.0
  %v2051 = vadd.f32 %v2049, %v2050
  %v2052 = vsel %vm878, %v664, 0.0
  %v2053 = vadd.f32 %v2051, %v2052
  %v2054 = vsel %vm878, %v665, 0.0
  %v2055 = vadd.f32 %v2053, %v2054
  %v2056 = vrot.slane %v2055, 4
  %v2057 = vadd.f32 %v2055, %v2056
  %v2058 = vrot.slane %v2057, 2
  %v2059 = vadd.f32 %v2057, %v2058
  %v2060 = vrot.slane %v2059, 1
  %v2061 = vadd.f32 %v2059, %v2060
  %v2062 = vsel %vm878, %v666, 0.0
  %v2063 = vsel %vm878, %v667, 0.0
  %v2064 = vadd.f32 %v2062, %v2063
  %v2065 = vsel %vm878, %v668, 0.0
  %v2066 = vadd.f32 %v2064, %v2065
  %v2067 = vsel %vm878, %v669, 0.0
  %v2068 = vadd.f32 %v2066, %v2067
  %v2069 = vrot.slane %v2068, 4
  %v2070 = vadd.f32 %v2068, %v2069
  %v2071 = vrot.slane %v2070, 2
  %v2072 = vadd.f32 %v2070, %v2071
  %v2073 = vrot.slane %v2072, 1
  %v2074 = vadd.f32 %v2072, %v2073
  %v2075 = vsel %vm878, %v670, 0.0
  %v2076 = vsel %vm878, %v671, 0.0
  %v2077 = vadd.f32 %v2075, %v2076
  %v2078 = vsel %vm878, %v672, 0.0
  %v2079 = vadd.f32 %v2077, %v2078
  %v2080 = vsel %vm878, %v673, 0.0
  %v2081 = vadd.f32 %v2079, %v2080
  %v2082 = vrot.slane %v2081, 4
  %v2083 = vadd.f32 %v2081, %v2082
  %v2084 = vrot.slane %v2083, 2
  %v2085 = vadd.f32 %v2083, %v2084
  %v2086 = vrot.slane %v2085, 1
  %v2087 = vadd.f32 %v2085, %v2086
  %v2088 = vsel %vm878, %v674, 0.0
  %v2089 = vsel %vm878, %v675, 0.0
  %v2090 = vadd.f32 %v2088, %v2089
  %v2091 = vsel %vm878, %v676, 0.0
  %v2092 = vadd.f32 %v2090, %v2091
  %v2093 = vsel %vm878, %v677, 0.0
  %v2094 = vadd.f32 %v2092, %v2093
  %v2095 = vrot.slane %v2094, 4
  %v2096 = vadd.f32 %v2094, %v2095
  %v2097 = vrot.slane %v2096, 2
  %v2098 = vadd.f32 %v2096, %v2097
  %v2099 = vrot.slane %v2098, 1
  %v2100 = vadd.f32 %v2098, %v2099
  %v2101 = vsel %vm878, %v678, 0.0
  %v2102 = vsel %vm878, %v679, 0.0
  %v2103 = vadd.f32 %v2101, %v2102
  %v2104 = vsel %vm878, %v680, 0.0
  %v2105 = vadd.f32 %v2103, %v2104
  %v2106 = vsel %vm878, %v681, 0.0
  %v2107 = vadd.f32 %v2105, %v2106
  %v2108 = vrot.slane %v2107, 4
  %v2109 = vadd.f32 %v2107, %v2108
  %v2110 = vrot.slane %v2109, 2
  %v2111 = vadd.f32 %v2109, %v2110
  %v2112 = vrot.slane %v2111, 1
  %v2113 = vadd.f32 %v2111, %v2112
  %v2114 = vsel %vm878, %v682, 0.0
  %v2115 = vsel %vm878, %v683, 0.0
  %v2116 = vadd.f32 %v2114, %v2115
  %v2117 = vsel %vm878, %v684, 0.0
  %v2118 = vadd.f32 %v2116, %v2117
  %v2119 = vsel %vm878, %v685, 0.0
  %v2120 = vadd.f32 %v2118, %v2119
  %v2121 = vrot.slane %v2120, 4
  %v2122 = vadd.f32 %v2120, %v2121
  %v2123 = vrot.slane %v2122, 2
  %v2124 = vadd.f32 %v2122, %v2123
  %v2125 = vrot.slane %v2124, 1
  %v2126 = vadd.f32 %v2124, %v2125
  %v2127 = vsel %vm878, %v686, 0.0
  %v2128 = vsel %vm878, %v687, 0.0
  %v2129 = vadd.f32 %v2127, %v2128
  %v2130 = vsel %vm878, %v688, 0.0
  %v2131 = vadd.f32 %v2129, %v2130
  %v2132 = vsel %vm878, %v689, 0.0
  %v2133 = vadd.f32 %v2131, %v2132
  %v2134 = vrot.slane %v2133, 4
  %v2135 = vadd.f32 %v2133, %v2134
  %v2136 = vrot.slane %v2135, 2
  %v2137 = vadd.f32 %v2135, %v2136
  %v2138 = vrot.slane %v2137, 1
  %v2139 = vadd.f32 %v2137, %v2138
  %v2140 = vsel %vm878, %v690, 0.0
  %v2141 = vsel %vm878, %v691, 0.0
  %v2142 = vadd.f32 %v2140, %v2141
  %v2143 = vsel %vm878, %v692, 0.0
  %v2144 = vadd.f32 %v2142, %v2143
  %v2145 = vsel %vm878, %v693, 0.0
  %v2146 = vadd.f32 %v2144, %v2145
  %v2147 = vrot.slane %v2146, 4
  %v2148 = vadd.f32 %v2146, %v2147
  %v2149 = vrot.slane %v2148, 2
  %v2150 = vadd.f32 %v2148, %v2149
  %v2151 = vrot.slane %v2150, 1
  %v2152 = vadd.f32 %v2150, %v2151
  %v2153 = vsel %vm878, %v694, 0.0
  %v2154 = vsel %vm878, %v695, 0.0
  %v2155 = vadd.f32 %v2153, %v2154
  %v2156 = vsel %vm878, %v696, 0.0
  %v2157 = vadd.f32 %v2155, %v2156
  %v2158 = vsel %vm878, %v697, 0.0
  %v2159 = vadd.f32 %v2157, %v2158
  %v2160 = vrot.slane %v2159, 4
  %v2161 = vadd.f32 %v2159, %v2160
  %v2162 = vrot.slane %v2161, 2
  %v2163 = vadd.f32 %v2161, %v2162
  %v2164 = vrot.slane %v2163, 1
  %v2165 = vadd.f32 %v2163, %v2164
  %v2166 = vsel %vm878, %v698, 0.0
  %v2167 = vsel %vm878, %v699, 0.0
  %v2168 = vadd.f32 %v2166, %v2167
  %v2169 = vsel %vm878, %v700, 0.0
  %v2170 = vadd.f32 %v2168, %v2169
  %v2171 = vsel %vm878, %v701, 0.0
  %v2172 = vadd.f32 %v2170, %v2171
  %v2173 = vrot.slane %v2172, 4
  %v2174 = vadd.f32 %v2172, %v2173
  %v2175 = vrot.slane %v2174, 2
  %v2176 = vadd.f32 %v2174, %v2175
  %v2177 = vrot.slane %v2176, 1
  %v2178 = vadd.f32 %v2176, %v2177
  %v2179 = vsel %vm878, %v702, 0.0
  %v2180 = vsel %vm878, %v703, 0.0
  %v2181 = vadd.f32 %v2179, %v2180
  %v2182 = vsel %vm878, %v704, 0.0
  %v2183 = vadd.f32 %v2181, %v2182
  %v2184 = vsel %vm878, %v705, 0.0
  %v2185 = vadd.f32 %v2183, %v2184
  %v2186 = vrot.slane %v2185, 4
  %v2187 = vadd.f32 %v2185, %v2186
  %v2188 = vrot.slane %v2187, 2
  %v2189 = vadd.f32 %v2187, %v2188
  %v2190 = vrot.slane %v2189, 1
  %v2191 = vadd.f32 %v2189, %v2190
  %v2192 = vsel %vm878, %v706, 0.0
  %v2193 = vsel %vm878, %v707, 0.0
  %v2194 = vadd.f32 %v2192, %v2193
  %v2195 = vsel %vm878, %v708, 0.0
  %v2196 = vadd.f32 %v2194, %v2195
  %v2197 = vsel %vm878, %v709, 0.0
  %v2198 = vadd.f32 %v2196, %v2197
  %v2199 = vrot.slane %v2198, 4
  %v2200 = vadd.f32 %v2198, %v2199
  %v2201 = vrot.slane %v2200, 2
  %v2202 = vadd.f32 %v2200, %v2201
  %v2203 = vrot.slane %v2202, 1
  %v2204 = vadd.f32 %v2202, %v2203
  %v2205 = vsel %vm878, %v710, 0.0
  %v2206 = vsel %vm878, %v711, 0.0
  %v2207 = vadd.f32 %v2205, %v2206
  %v2208 = vsel %vm878, %v712, 0.0
  %v2209 = vadd.f32 %v2207, %v2208
  %v2210 = vsel %vm878, %v713, 0.0
  %v2211 = vadd.f32 %v2209, %v2210
  %v2212 = vrot.slane %v2211, 4
  %v2213 = vadd.f32 %v2211, %v2212
  %v2214 = vrot.slane %v2213, 2
  %v2215 = vadd.f32 %v2213, %v2214
  %v2216 = vrot.slane %v2215, 1
  %v2217 = vadd.f32 %v2215, %v2216
  %v2218 = vsel %vm878, %v714, 0.0
  %v2219 = vsel %vm878, %v715, 0.0
  %v2220 = vadd.f32 %v2218, %v2219
  %v2221 = vsel %vm878, %v716, 0.0
  %v2222 = vadd.f32 %v2220, %v2221
  %v2223 = vsel %vm878, %v717, 0.0
  %v2224 = vadd.f32 %v2222, %v2223
  %v2225 = vrot.slane %v2224, 4
  %v2226 = vadd.f32 %v2224, %v2225
  %v2227 = vrot.slane %v2226, 2
  %v2228 = vadd.f32 %v2226, %v2227
  %v2229 = vrot.slane %v2228, 1
  %v2230 = vadd.f32 %v2228, %v2229
  %v2231 = vsel %vm878, %v718, 0.0
  %v2232 = vsel %vm878, %v719, 0.0
  %v2233 = vadd.f32 %v2231, %v2232
  %v2234 = vsel %vm878, %v720, 0.0
  %v2235 = vadd.f32 %v2233, %v2234
  %v2236 = vsel %vm878, %v721, 0.0
  %v2237 = vadd.f32 %v2235, %v2236
  %v2238 = vrot.slane %v2237, 4
  %v2239 = vadd.f32 %v2237, %v2238
  %v2240 = vrot.slane %v2239, 2
  %v2241 = vadd.f32 %v2239, %v2240
  %v2242 = vrot.slane %v2241, 1
  %v2243 = vadd.f32 %v2241, %v2242
  %v2244 = vsel %vm878, %v722, 0.0
  %v2245 = vsel %vm878, %v723, 0.0
  %v2246 = vadd.f32 %v2244, %v2245
  %v2247 = vsel %vm878, %v724, 0.0
  %v2248 = vadd.f32 %v2246, %v2247
  %v2249 = vsel %vm878, %v725, 0.0
  %v2250 = vadd.f32 %v2248, %v2249
  %v2251 = vrot.slane %v2250, 4
  %v2252 = vadd.f32 %v2250, %v2251
  %v2253 = vrot.slane %v2252, 2
  %v2254 = vadd.f32 %v2252, %v2253
  %v2255 = vrot.slane %v2254, 1
  %v2256 = vadd.f32 %v2254, %v2255
  %v2257 = vsel %vm878, %v726, 0.0
  %v2258 = vsel %vm878, %v727, 0.0
  %v2259 = vadd.f32 %v2257, %v2258
  %v2260 = vsel %vm878, %v728, 0.0
  %v2261 = vadd.f32 %v2259, %v2260
  %v2262 = vsel %vm878, %v729, 0.0
  %v2263 = vadd.f32 %v2261, %v2262
  %v2264 = vrot.slane %v2263, 4
  %v2265 = vadd.f32 %v2263, %v2264
  %v2266 = vrot.slane %v2265, 2
  %v2267 = vadd.f32 %v2265, %v2266
  %v2268 = vrot.slane %v2267, 1
  %v2269 = vadd.f32 %v2267, %v2268
  %v2270 = vsel %vm878, %v730, 0.0
  %v2271 = vsel %vm878, %v731, 0.0
  %v2272 = vadd.f32 %v2270, %v2271
  %v2273 = vsel %vm878, %v732, 0.0
  %v2274 = vadd.f32 %v2272, %v2273
  %v2275 = vsel %vm878, %v733, 0.0
  %v2276 = vadd.f32 %v2274, %v2275
  %v2277 = vrot.slane %v2276, 4
  %v2278 = vadd.f32 %v2276, %v2277
  %v2279 = vrot.slane %v2278, 2
  %v2280 = vadd.f32 %v2278, %v2279
  %v2281 = vrot.slane %v2280, 1
  %v2282 = vadd.f32 %v2280, %v2281
  %v2283 = vsel %vm878, %v734, 0.0
  %v2284 = vsel %vm878, %v735, 0.0
  %v2285 = vadd.f32 %v2283, %v2284
  %v2286 = vsel %vm878, %v736, 0.0
  %v2287 = vadd.f32 %v2285, %v2286
  %v2288 = vsel %vm878, %v737, 0.0
  %v2289 = vadd.f32 %v2287, %v2288
  %v2290 = vrot.slane %v2289, 4
  %v2291 = vadd.f32 %v2289, %v2290
  %v2292 = vrot.slane %v2291, 2
  %v2293 = vadd.f32 %v2291, %v2292
  %v2294 = vrot.slane %v2293, 1
  %v2295 = vadd.f32 %v2293, %v2294
  %v2296 = vsel %vm878, %v738, 0.0
  %v2297 = vsel %vm878, %v739, 0.0
  %v2298 = vadd.f32 %v2296, %v2297
  %v2299 = vsel %vm878, %v740, 0.0
  %v2300 = vadd.f32 %v2298, %v2299
  %v2301 = vsel %vm878, %v741, 0.0
  %v2302 = vadd.f32 %v2300, %v2301
  %v2303 = vrot.slane %v2302, 4
  %v2304 = vadd.f32 %v2302, %v2303
  %v2305 = vrot.slane %v2304, 2
  %v2306 = vadd.f32 %v2304, %v2305
  %v2307 = vrot.slane %v2306, 1
  %v2308 = vadd.f32 %v2306, %v2307
  %v2309 = vsel %vm878, %v742, 0.0
  %v2310 = vsel %vm878, %v743, 0.0
  %v2311 = vadd.f32 %v2309, %v2310
  %v2312 = vsel %vm878, %v744, 0.0
  %v2313 = vadd.f32 %v2311, %v2312
  %v2314 = vsel %vm878, %v745, 0.0
  %v2315 = vadd.f32 %v2313, %v2314
  %v2316 = vrot.slane %v2315, 4
  %v2317 = vadd.f32 %v2315, %v2316
  %v2318 = vrot.slane %v2317, 2
  %v2319 = vadd.f32 %v2317, %v2318
  %v2320 = vrot.slane %v2319, 1
  %v2321 = vadd.f32 %v2319, %v2320
  %v2322 = vsel %vm878, %v746, 0.0
  %v2323 = vsel %vm878, %v747, 0.0
  %v2324 = vadd.f32 %v2322, %v2323
  %v2325 = vsel %vm878, %v748, 0.0
  %v2326 = vadd.f32 %v2324, %v2325
  %v2327 = vsel %vm878, %v749, 0.0
  %v2328 = vadd.f32 %v2326, %v2327
  %v2329 = vrot.slane %v2328, 4
  %v2330 = vadd.f32 %v2328, %v2329
  %v2331 = vrot.slane %v2330, 2
  %v2332 = vadd.f32 %v2330, %v2331
  %v2333 = vrot.slane %v2332, 1
  %v2334 = vadd.f32 %v2332, %v2333
  %v2335 = vsel %vm878, %v750, 0.0
  %v2336 = vsel %vm878, %v751, 0.0
  %v2337 = vadd.f32 %v2335, %v2336
  %v2338 = vsel %vm878, %v752, 0.0
  %v2339 = vadd.f32 %v2337, %v2338
  %v2340 = vsel %vm878, %v753, 0.0
  %v2341 = vadd.f32 %v2339, %v2340
  %v2342 = vrot.slane %v2341, 4
  %v2343 = vadd.f32 %v2341, %v2342
  %v2344 = vrot.slane %v2343, 2
  %v2345 = vadd.f32 %v2343, %v2344
  %v2346 = vrot.slane %v2345, 1
  %v2347 = vadd.f32 %v2345, %v2346
  %v2348 = vsel %vm878, %v754, 0.0
  %v2349 = vsel %vm878, %v755, 0.0
  %v2350 = vadd.f32 %v2348, %v2349
  %v2351 = vsel %vm878, %v756, 0.0
  %v2352 = vadd.f32 %v2350, %v2351
  %v2353 = vsel %vm878, %v757, 0.0
  %v2354 = vadd.f32 %v2352, %v2353
  %v2355 = vrot.slane %v2354, 4
  %v2356 = vadd.f32 %v2354, %v2355
  %v2357 = vrot.slane %v2356, 2
  %v2358 = vadd.f32 %v2356, %v2357
  %v2359 = vrot.slane %v2358, 1
  %v2360 = vadd.f32 %v2358, %v2359
  %v2361 = vsel %vm878, %v758, 0.0
  %v2362 = vsel %vm878, %v759, 0.0
  %v2363 = vadd.f32 %v2361, %v2362
  %v2364 = vsel %vm878, %v760, 0.0
  %v2365 = vadd.f32 %v2363, %v2364
  %v2366 = vsel %vm878, %v761, 0.0
  %v2367 = vadd.f32 %v2365, %v2366
  %v2368 = vrot.slane %v2367, 4
  %v2369 = vadd.f32 %v2367, %v2368
  %v2370 = vrot.slane %v2369, 2
  %v2371 = vadd.f32 %v2369, %v2370
  %v2372 = vrot.slane %v2371, 1
  %v2373 = vadd.f32 %v2371, %v2372
  %v2374 = vsel %vm878, %v762, 0.0
  %v2375 = vsel %vm878, %v763, 0.0
  %v2376 = vadd.f32 %v2374, %v2375
  %v2377 = vsel %vm878, %v764, 0.0
  %v2378 = vadd.f32 %v2376, %v2377
  %v2379 = vsel %vm878, %v765, 0.0
  %v2380 = vadd.f32 %v2378, %v2379
  %v2381 = vrot.slane %v2380, 4
  %v2382 = vadd.f32 %v2380, %v2381
  %v2383 = vrot.slane %v2382, 2
  %v2384 = vadd.f32 %v2382, %v2383
  %v2385 = vrot.slane %v2384, 1
  %v2386 = vadd.f32 %v2384, %v2385
  %v2387 = vsel %vm878, %v766, 0.0
  %v2388 = vsel %vm878, %v767, 0.0
  %v2389 = vadd.f32 %v2387, %v2388
  %v2390 = vsel %vm878, %v768, 0.0
  %v2391 = vadd.f32 %v2389, %v2390
  %v2392 = vsel %vm878, %v769, 0.0
  %v2393 = vadd.f32 %v2391, %v2392
  %v2394 = vrot.slane %v2393, 4
  %v2395 = vadd.f32 %v2393, %v2394
  %v2396 = vrot.slane %v2395, 2
  %v2397 = vadd.f32 %v2395, %v2396
  %v2398 = vrot.slane %v2397, 1
  %v2399 = vadd.f32 %v2397, %v2398
  %v2400 = vsel %vm878, %v770, 0.0
  %v2401 = vsel %vm878, %v771, 0.0
  %v2402 = vadd.f32 %v2400, %v2401
  %v2403 = vsel %vm878, %v772, 0.0
  %v2404 = vadd.f32 %v2402, %v2403
  %v2405 = vsel %vm878, %v773, 0.0
  %v2406 = vadd.f32 %v2404, %v2405
  %v2407 = vrot.slane %v2406, 4
  %v2408 = vadd.f32 %v2406, %v2407
  %v2409 = vrot.slane %v2408, 2
  %v2410 = vadd.f32 %v2408, %v2409
  %v2411 = vrot.slane %v2410, 1
  %v2412 = vadd.f32 %v2410, %v2411
  %v2413 = vsel %vm878, %v774, 0.0
  %v2414 = vsel %vm878, %v775, 0.0
  %v2415 = vadd.f32 %v2413, %v2414
  %v2416 = vsel %vm878, %v776, 0.0
  %v2417 = vadd.f32 %v2415, %v2416
  %v2418 = vsel %vm878, %v777, 0.0
  %v2419 = vadd.f32 %v2417, %v2418
  %v2420 = vrot.slane %v2419, 4
  %v2421 = vadd.f32 %v2419, %v2420
  %v2422 = vrot.slane %v2421, 2
  %v2423 = vadd.f32 %v2421, %v2422
  %v2424 = vrot.slane %v2423, 1
  %v2425 = vadd.f32 %v2423, %v2424
  %v2426 = vsel %vm878, %v778, 0.0
  %v2427 = vsel %vm878, %v779, 0.0
  %v2428 = vadd.f32 %v2426, %v2427
  %v2429 = vsel %vm878, %v780, 0.0
  %v2430 = vadd.f32 %v2428, %v2429
  %v2431 = vsel %vm878, %v781, 0.0
  %v2432 = vadd.f32 %v2430, %v2431
  %v2433 = vrot.slane %v2432, 4
  %v2434 = vadd.f32 %v2432, %v2433
  %v2435 = vrot.slane %v2434, 2
  %v2436 = vadd.f32 %v2434, %v2435
  %v2437 = vrot.slane %v2436, 1
  %v2438 = vadd.f32 %v2436, %v2437
  %v2439 = vsel %vm878, %v782, 0.0
  %v2440 = vsel %vm878, %v783, 0.0
  %v2441 = vadd.f32 %v2439, %v2440
  %v2442 = vsel %vm878, %v784, 0.0
  %v2443 = vadd.f32 %v2441, %v2442
  %v2444 = vsel %vm878, %v785, 0.0
  %v2445 = vadd.f32 %v2443, %v2444
  %v2446 = vrot.slane %v2445, 4
  %v2447 = vadd.f32 %v2445, %v2446
  %v2448 = vrot.slane %v2447, 2
  %v2449 = vadd.f32 %v2447, %v2448
  %v2450 = vrot.slane %v2449, 1
  %v2451 = vadd.f32 %v2449, %v2450
  %v2452 = vsel %vm878, %v786, 0.0
  %v2453 = vsel %vm878, %v787, 0.0
  %v2454 = vadd.f32 %v2452, %v2453
  %v2455 = vsel %vm878, %v788, 0.0
  %v2456 = vadd.f32 %v2454, %v2455
  %v2457 = vsel %vm878, %v789, 0.0
  %v2458 = vadd.f32 %v2456, %v2457
  %v2459 = vrot.slane %v2458, 4
  %v2460 = vadd.f32 %v2458, %v2459
  %v2461 = vrot.slane %v2460, 2
  %v2462 = vadd.f32 %v2460, %v2461
  %v2463 = vrot.slane %v2462, 1
  %v2464 = vadd.f32 %v2462, %v2463
  %v2465 = vsel %vm878, %v790, 0.0
  %v2466 = vsel %vm878, %v791, 0.0
  %v2467 = vadd.f32 %v2465, %v2466
  %v2468 = vsel %vm878, %v792, 0.0
  %v2469 = vadd.f32 %v2467, %v2468
  %v2470 = vsel %vm878, %v793, 0.0
  %v2471 = vadd.f32 %v2469, %v2470
  %v2472 = vrot.slane %v2471, 4
  %v2473 = vadd.f32 %v2471, %v2472
  %v2474 = vrot.slane %v2473, 2
  %v2475 = vadd.f32 %v2473, %v2474
  %v2476 = vrot.slane %v2475, 1
  %v2477 = vadd.f32 %v2475, %v2476
  %v2478 = vsel %vm878, %v794, 0.0
  %v2479 = vsel %vm878, %v795, 0.0
  %v2480 = vadd.f32 %v2478, %v2479
  %v2481 = vsel %vm878, %v796, 0.0
  %v2482 = vadd.f32 %v2480, %v2481
  %v2483 = vsel %vm878, %v797, 0.0
  %v2484 = vadd.f32 %v2482, %v2483
  %v2485 = vrot.slane %v2484, 4
  %v2486 = vadd.f32 %v2484, %v2485
  %v2487 = vrot.slane %v2486, 2
  %v2488 = vadd.f32 %v2486, %v2487
  %v2489 = vrot.slane %v2488, 1
  %v2490 = vadd.f32 %v2488, %v2489
  %v2491 = vsel %vm878, %v798, 0.0
  %v2492 = vsel %vm878, %v799, 0.0
  %v2493 = vadd.f32 %v2491, %v2492
  %v2494 = vsel %vm878, %v800, 0.0
  %v2495 = vadd.f32 %v2493, %v2494
  %v2496 = vsel %vm878, %v801, 0.0
  %v2497 = vadd.f32 %v2495, %v2496
  %v2498 = vrot.slane %v2497, 4
  %v2499 = vadd.f32 %v2497, %v2498
  %v2500 = vrot.slane %v2499, 2
  %v2501 = vadd.f32 %v2499, %v2500
  %v2502 = vrot.slane %v2501, 1
  %v2503 = vadd.f32 %v2501, %v2502
  %v2504 = vsel %vm878, %v802, 0.0
  %v2505 = vsel %vm878, %v803, 0.0
  %v2506 = vadd.f32 %v2504, %v2505
  %v2507 = vsel %vm878, %v804, 0.0
  %v2508 = vadd.f32 %v2506, %v2507
  %v2509 = vsel %vm878, %v805, 0.0
  %v2510 = vadd.f32 %v2508, %v2509
  %v2511 = vrot.slane %v2510, 4
  %v2512 = vadd.f32 %v2510, %v2511
  %v2513 = vrot.slane %v2512, 2
  %v2514 = vadd.f32 %v2512, %v2513
  %v2515 = vrot.slane %v2514, 1
  %v2516 = vadd.f32 %v2514, %v2515
  %v2517 = vsel %vm878, %v806, 0.0
  %v2518 = vsel %vm878, %v807, 0.0
  %v2519 = vadd.f32 %v2517, %v2518
  %v2520 = vsel %vm878, %v808, 0.0
  %v2521 = vadd.f32 %v2519, %v2520
  %v2522 = vsel %vm878, %v809, 0.0
  %v2523 = vadd.f32 %v2521, %v2522
  %v2524 = vrot.slane %v2523, 4
  %v2525 = vadd.f32 %v2523, %v2524
  %v2526 = vrot.slane %v2525, 2
  %v2527 = vadd.f32 %v2525, %v2526
  %v2528 = vrot.slane %v2527, 1
  %v2529 = vadd.f32 %v2527, %v2528
  %v2530 = vsel %vm878, %v810, 0.0
  %v2531 = vsel %vm878, %v811, 0.0
  %v2532 = vadd.f32 %v2530, %v2531
  %v2533 = vsel %vm878, %v812, 0.0
  %v2534 = vadd.f32 %v2532, %v2533
  %v2535 = vsel %vm878, %v813, 0.0
  %v2536 = vadd.f32 %v2534, %v2535
  %v2537 = vrot.slane %v2536, 4
  %v2538 = vadd.f32 %v2536, %v2537
  %v2539 = vrot.slane %v2538, 2
  %v2540 = vadd.f32 %v2538, %v2539
  %v2541 = vrot.slane %v2540, 1
  %v2542 = vadd.f32 %v2540, %v2541
  %v2543 = vsel %vm878, %v814, 0.0
  %v2544 = vsel %vm878, %v815, 0.0
  %v2545 = vadd.f32 %v2543, %v2544
  %v2546 = vsel %vm878, %v816, 0.0
  %v2547 = vadd.f32 %v2545, %v2546
  %v2548 = vsel %vm878, %v817, 0.0
  %v2549 = vadd.f32 %v2547, %v2548
  %v2550 = vrot.slane %v2549, 4
  %v2551 = vadd.f32 %v2549, %v2550
  %v2552 = vrot.slane %v2551, 2
  %v2553 = vadd.f32 %v2551, %v2552
  %v2554 = vrot.slane %v2553, 1
  %v2555 = vadd.f32 %v2553, %v2554
  %v2556 = vsel %vm878, %v818, 0.0
  %v2557 = vsel %vm878, %v819, 0.0
  %v2558 = vadd.f32 %v2556, %v2557
  %v2559 = vsel %vm878, %v820, 0.0
  %v2560 = vadd.f32 %v2558, %v2559
  %v2561 = vsel %vm878, %v821, 0.0
  %v2562 = vadd.f32 %v2560, %v2561
  %v2563 = vrot.slane %v2562, 4
  %v2564 = vadd.f32 %v2562, %v2563
  %v2565 = vrot.slane %v2564, 2
  %v2566 = vadd.f32 %v2564, %v2565
  %v2567 = vrot.slane %v2566, 1
  %v2568 = vadd.f32 %v2566, %v2567
  %v2569 = vsel %vm878, %v822, 0.0
  %v2570 = vsel %vm878, %v823, 0.0
  %v2571 = vadd.f32 %v2569, %v2570
  %v2572 = vsel %vm878, %v824, 0.0
  %v2573 = vadd.f32 %v2571, %v2572
  %v2574 = vsel %vm878, %v825, 0.0
  %v2575 = vadd.f32 %v2573, %v2574
  %v2576 = vrot.slane %v2575, 4
  %v2577 = vadd.f32 %v2575, %v2576
  %v2578 = vrot.slane %v2577, 2
  %v2579 = vadd.f32 %v2577, %v2578
  %v2580 = vrot.slane %v2579, 1
  %v2581 = vadd.f32 %v2579, %v2580
  %v2582 = vsel %vm878, %v826, 0.0
  %v2583 = vsel %vm878, %v827, 0.0
  %v2584 = vadd.f32 %v2582, %v2583
  %v2585 = vsel %vm878, %v828, 0.0
  %v2586 = vadd.f32 %v2584, %v2585
  %v2587 = vsel %vm878, %v829, 0.0
  %v2588 = vadd.f32 %v2586, %v2587
  %v2589 = vrot.slane %v2588, 4
  %v2590 = vadd.f32 %v2588, %v2589
  %v2591 = vrot.slane %v2590, 2
  %v2592 = vadd.f32 %v2590, %v2591
  %v2593 = vrot.slane %v2592, 1
  %v2594 = vadd.f32 %v2592, %v2593
  %v2595 = vsel %vm878, %v830, 0.0
  %v2596 = vsel %vm878, %v831, 0.0
  %v2597 = vadd.f32 %v2595, %v2596
  %v2598 = vsel %vm878, %v832, 0.0
  %v2599 = vadd.f32 %v2597, %v2598
  %v2600 = vsel %vm878, %v833, 0.0
  %v2601 = vadd.f32 %v2599, %v2600
  %v2602 = vrot.slane %v2601, 4
  %v2603 = vadd.f32 %v2601, %v2602
  %v2604 = vrot.slane %v2603, 2
  %v2605 = vadd.f32 %v2603, %v2604
  %v2606 = vrot.slane %v2605, 1
  %v2607 = vadd.f32 %v2605, %v2606
  %v2608 = vsel %vm878, %v834, 0.0
  %v2609 = vsel %vm878, %v835, 0.0
  %v2610 = vadd.f32 %v2608, %v2609
  %v2611 = vsel %vm878, %v836, 0.0
  %v2612 = vadd.f32 %v2610, %v2611
  %v2613 = vsel %vm878, %v837, 0.0
  %v2614 = vadd.f32 %v2612, %v2613
  %v2615 = vrot.slane %v2614, 4
  %v2616 = vadd.f32 %v2614, %v2615
  %v2617 = vrot.slane %v2616, 2
  %v2618 = vadd.f32 %v2616, %v2617
  %v2619 = vrot.slane %v2618, 1
  %v2620 = vadd.f32 %v2618, %v2619
  %v2621 = vsel %vm878, %v838, 0.0
  %v2622 = vsel %vm878, %v839, 0.0
  %v2623 = vadd.f32 %v2621, %v2622
  %v2624 = vsel %vm878, %v840, 0.0
  %v2625 = vadd.f32 %v2623, %v2624
  %v2626 = vsel %vm878, %v841, 0.0
  %v2627 = vadd.f32 %v2625, %v2626
  %v2628 = vrot.slane %v2627, 4
  %v2629 = vadd.f32 %v2627, %v2628
  %v2630 = vrot.slane %v2629, 2
  %v2631 = vadd.f32 %v2629, %v2630
  %v2632 = vrot.slane %v2631, 1
  %v2633 = vadd.f32 %v2631, %v2632
  %v2634 = vsel %vm878, %v842, 0.0
  %v2635 = vsel %vm878, %v843, 0.0
  %v2636 = vadd.f32 %v2634, %v2635
  %v2637 = vsel %vm878, %v844, 0.0
  %v2638 = vadd.f32 %v2636, %v2637
  %v2639 = vsel %vm878, %v845, 0.0
  %v2640 = vadd.f32 %v2638, %v2639
  %v2641 = vrot.slane %v2640, 4
  %v2642 = vadd.f32 %v2640, %v2641
  %v2643 = vrot.slane %v2642, 2
  %v2644 = vadd.f32 %v2642, %v2643
  %v2645 = vrot.slane %v2644, 1
  %v2646 = vadd.f32 %v2644, %v2645
  %v2647 = vsel %vm878, %v846, 0.0
  %v2648 = vsel %vm878, %v847, 0.0
  %v2649 = vadd.f32 %v2647, %v2648
  %v2650 = vsel %vm878, %v848, 0.0
  %v2651 = vadd.f32 %v2649, %v2650
  %v2652 = vsel %vm878, %v849, 0.0
  %v2653 = vadd.f32 %v2651, %v2652
  %v2654 = vrot.slane %v2653, 4
  %v2655 = vadd.f32 %v2653, %v2654
  %v2656 = vrot.slane %v2655, 2
  %v2657 = vadd.f32 %v2655, %v2656
  %v2658 = vrot.slane %v2657, 1
  %v2659 = vadd.f32 %v2657, %v2658
  %v2660 = vsel %vm878, %v850, 0.0
  %v2661 = vsel %vm878, %v851, 0.0
  %v2662 = vadd.f32 %v2660, %v2661
  %v2663 = vsel %vm878, %v852, 0.0
  %v2664 = vadd.f32 %v2662, %v2663
  %v2665 = vsel %vm878, %v853, 0.0
  %v2666 = vadd.f32 %v2664, %v2665
  %v2667 = vrot.slane %v2666, 4
  %v2668 = vadd.f32 %v2666, %v2667
  %v2669 = vrot.slane %v2668, 2
  %v2670 = vadd.f32 %v2668, %v2669
  %v2671 = vrot.slane %v2670, 1
  %v2672 = vadd.f32 %v2670, %v2671
  %v2673 = vsel %vm878, %v854, 0.0
  %v2674 = vsel %vm878, %v855, 0.0
  %v2675 = vadd.f32 %v2673, %v2674
  %v2676 = vsel %vm878, %v856, 0.0
  %v2677 = vadd.f32 %v2675, %v2676
  %v2678 = vsel %vm878, %v857, 0.0
  %v2679 = vadd.f32 %v2677, %v2678
  %v2680 = vrot.slane %v2679, 4
  %v2681 = vadd.f32 %v2679, %v2680
  %v2682 = vrot.slane %v2681, 2
  %v2683 = vadd.f32 %v2681, %v2682
  %v2684 = vrot.slane %v2683, 1
  %v2685 = vadd.f32 %v2683, %v2684
  %v2686 = vsel %vm878, %v858, 0.0
  %v2687 = vsel %vm878, %v859, 0.0
  %v2688 = vadd.f32 %v2686, %v2687
  %v2689 = vsel %vm878, %v860, 0.0
  %v2690 = vadd.f32 %v2688, %v2689
  %v2691 = vsel %vm878, %v861, 0.0
  %v2692 = vadd.f32 %v2690, %v2691
  %v2693 = vrot.slane %v2692, 4
  %v2694 = vadd.f32 %v2692, %v2693
  %v2695 = vrot.slane %v2694, 2
  %v2696 = vadd.f32 %v2694, %v2695
  %v2697 = vrot.slane %v2696, 1
  %v2698 = vadd.f32 %v2696, %v2697
  %v2699 = vsel %vm878, %v862, 0.0
  %v2700 = vsel %vm878, %v863, 0.0
  %v2701 = vadd.f32 %v2699, %v2700
  %v2702 = vsel %vm878, %v864, 0.0
  %v2703 = vadd.f32 %v2701, %v2702
  %v2704 = vsel %vm878, %v865, 0.0
  %v2705 = vadd.f32 %v2703, %v2704
  %v2706 = vrot.slane %v2705, 4
  %v2707 = vadd.f32 %v2705, %v2706
  %v2708 = vrot.slane %v2707, 2
  %v2709 = vadd.f32 %v2707, %v2708
  %v2710 = vrot.slane %v2709, 1
  %v2711 = vadd.f32 %v2709, %v2710
  %v2712 = vsel %vm878, %v866, 0.0
  %v2713 = vsel %vm878, %v867, 0.0
  %v2714 = vadd.f32 %v2712, %v2713
  %v2715 = vsel %vm878, %v868, 0.0
  %v2716 = vadd.f32 %v2714, %v2715
  %v2717 = vsel %vm878, %v869, 0.0
  %v2718 = vadd.f32 %v2716, %v2717
  %v2719 = vrot.slane %v2718, 4
  %v2720 = vadd.f32 %v2718, %v2719
  %v2721 = vrot.slane %v2720, 2
  %v2722 = vadd.f32 %v2720, %v2721
  %v2723 = vrot.slane %v2722, 1
  %v2724 = vadd.f32 %v2722, %v2723
  %v2725 = vsel %vm878, %v870, 0.0
  %v2726 = vsel %vm878, %v871, 0.0
  %v2727 = vadd.f32 %v2725, %v2726
  %v2728 = vsel %vm878, %v872, 0.0
  %v2729 = vadd.f32 %v2727, %v2728
  %v2730 = vsel %vm878, %v873, 0.0
  %v2731 = vadd.f32 %v2729, %v2730
  %v2732 = vrot.slane %v2731, 4
  %v2733 = vadd.f32 %v2731, %v2732
  %v2734 = vrot.slane %v2733, 2
  %v2735 = vadd.f32 %v2733, %v2734
  %v2736 = vrot.slane %v2735, 1
  %v2737 = vadd.f32 %v2735, %v2736
  %v2738 = vsel %vm878, %v874, 0.0
  %v2739 = vsel %vm878, %v875, 0.0
  %v2740 = vadd.f32 %v2738, %v2739
  %v2741 = vsel %vm878, %v876, 0.0
  %v2742 = vadd.f32 %v2740, %v2741
  %v2743 = vsel %vm878, %v877, 0.0
  %v2744 = vadd.f32 %v2742, %v2743
  %v2745 = vrot.slane %v2744, 4
  %v2746 = vadd.f32 %v2744, %v2745
  %v2747 = vrot.slane %v2746, 2
  %v2748 = vadd.f32 %v2746, %v2747
  %v2749 = vrot.slane %v2748, 1
  %v2750 = vadd.f32 %v2748, %v2749
  %v2751 = vmul.f32 %v891, 0.17677669
  %v2752 = vmul.f32 %v904, 0.17677669
  %v2753 = vmul.f32 %v917, 0.17677669
  %v2754 = vmul.f32 %v930, 0.17677669
  %v2755 = vmul.f32 %v943, 0.17677669
  %v2756 = vmul.f32 %v956, 0.17677669
  %v2757 = vmul.f32 %v969, 0.17677669
  %v2758 = vmul.f32 %v982, 0.17677669
  %v2759 = vmul.f32 %v995, 0.17677669
  %v2760 = vmul.f32 %v1008, 0.17677669
  %v2761 = vmul.f32 %v1021, 0.17677669
  %v2762 = vmul.f32 %v1034, 0.17677669
  %v2763 = vmul.f32 %v1047, 0.17677669
  %v2764 = vmul.f32 %v1060, 0.17677669
  %v2765 = vmul.f32 %v1073, 0.17677669
  %v2766 = vmul.f32 %v1086, 0.17677669
  %v2767 = vmul.f32 %v1099, 0.17677669
  %v2768 = vmul.f32 %v1112, 0.17677669
  %v2769 = vmul.f32 %v1125, 0.17677669
  %v2770 = vmul.f32 %v1138, 0.17677669
  %v2771 = vmul.f32 %v1151, 0.17677669
  %v2772 = vmul.f32 %v1164, 0.17677669
  %v2773 = vmul.f32 %v1177, 0.17677669
  %v2774 = vmul.f32 %v1190, 0.17677669
  %v2775 = vmul.f32 %v1203, 0.17677669
  %v2776 = vmul.f32 %v1216, 0.17677669
  %v2777 = vmul.f32 %v1229, 0.17677669
  %v2778 = vmul.f32 %v1242, 0.17677669
  %v2779 = vmul.f32 %v1255, 0.17677669
  %v2780 = vmul.f32 %v1268, 0.17677669
  %v2781 = vmul.f32 %v1281, 0.17677669
  %v2782 = vmul.f32 %v1294, 0.17677669
  %v2783 = vmul.f32 %v1307, 0.17677669
  %v2784 = vmul.f32 %v1320, 0.17677669
  %v2785 = vmul.f32 %v1333, 0.17677669
  %v2786 = vmul.f32 %v1346, 0.17677669
  %v2787 = vmul.f32 %v1359, 0.17677669
  %v2788 = vmul.f32 %v1372, 0.17677669
  %v2789 = vmul.f32 %v1385, 0.17677669
  %v2790 = vmul.f32 %v1398, 0.17677669
  %v2791 = vmul.f32 %v1411, 0.17677669
  %v2792 = vmul.f32 %v1424, 0.17677669
  %v2793 = vmul.f32 %v1437, 0.17677669
  %v2794 = vmul.f32 %v1450, 0.17677669
  %v2795 = vmul.f32 %v1463, 0.17677669
  %v2796 = vmul.f32 %v1476, 0.17677669
  %v2797 = vmul.f32 %v1489, 0.17677669
  %v2798 = vmul.f32 %v1502, 0.17677669
  %v2799 = vmul.f32 %v1515, 0.17677669
  %v2800 = vmul.f32 %v1528, 0.17677669
  %v2801 = vmul.f32 %v1541, 0.17677669
  %v2802 = vmul.f32 %v1554, 0.17677669
  %v2803 = vmul.f32 %v1567, 0.17677669
  %v2804 = vmul.f32 %v1580, 0.17677669
  %v2805 = vmul.f32 %v1593, 0.17677669
  %v2806 = vmul.f32 %v1606, 0.17677669
  %v2807 = vmul.f32 %v1619, 0.17677669
  %v2808 = vmul.f32 %v1632, 0.17677669
  %v2809 = vmul.f32 %v1645, 0.17677669
  %v2810 = vmul.f32 %v1658, 0.17677669
  %v2811 = vmul.f32 %v1671, 0.17677669
  %v2812 = vmul.f32 %v1684, 0.17677669
  %v2813 = vmul.f32 %v1697, 0.17677669
  %v2814 = vmul.f32 %v1710, 0.17677669
  %v2815 = vmul.f32 %v1723, 0.17677669
  %v2816 = vmul.f32 %v1736, 0.17677669
  %v2817 = vmul.f32 %v1749, 0.17677669
  %v2818 = vmul.f32 %v1762, 0.17677669
  %v2819 = vmul.f32 %v1775, 0.17677669
  %v2820 = vmul.f32 %v1788, 0.17677669
  %v2821 = vmul.f32 %v1801, 0.17677669
  %v2822 = vmul.f32 %v1814, 0.17677669
  %v2823 = vmul.f32 %v1827, 0.17677669
  %v2824 = vmul.f32 %v1840, 0.17677669
  %v2825 = vmul.f32 %v1853, 0.17677669
  %v2826 = vmul.f32 %v1866, 0.17677669
  %v2827 = vmul.f32 %v1879, 0.17677669
  %v2828 = vmul.f32 %v1892, 0.17677669
  %v2829 = vmul.f32 %v1905, 0.17677669
  %v2830 = vmul.f32 %v1918, 0.17677669
  %v2831 = vmul.f32 %v1931, 0.17677669
  %v2832 = vmul.f32 %v1944, 0.17677669
  %v2833 = vmul.f32 %v1957, 0.17677669
  %v2834 = vmul.f32 %v1970, 0.17677669
  %v2835 = vmul.f32 %v1983, 0.17677669
  %v2836 = vmul.f32 %v1996, 0.17677669
  %v2837 = vmul.f32 %v2009, 0.17677669
  %v2838 = vmul.f32 %v2022, 0.17677669
  %v2839 = vmul.f32 %v2035, 0.17677669
  %v2840 = vmul.f32 %v2048, 0.17677669
  %v2841 = vmul.f32 %v2061, 0.17677669
  %v2842 = vmul.f32 %v2074, 0.17677669
  %v2843 = vmul.f32 %v2087, 0.17677669
  %v2844 = vmul.f32 %v2100, 0.17677669
  %v2845 = vmul.f32 %v2113, 0.17677669
  %v2846 = vmul.f32 %v2126, 0.17677669
  %v2847 = vmul.f32 %v2139, 0.17677669
  %v2848 = vmul.f32 %v2152, 0.17677669
  %v2849 = vmul.f32 %v2165, 0.17677669
  %v2850 = vmul.f32 %v2178, 0.17677669
  %v2851 = vmul.f32 %v2191, 0.17677669
  %v2852 = vmul.f32 %v2204, 0.17677669
  %v2853 = vmul.f32 %v2217, 0.17677669
  %v2854 = vmul.f32 %v2230, 0.17677669
  %v2855 = vmul.f32 %v2243, 0.17677669
  %v2856 = vmul.f32 %v2256, 0.17677669
  %v2857 = vmul.f32 %v2269, 0.17677669
  %v2858 = vmul.f32 %v2282, 0.17677669
  %v2859 = vmul.f32 %v2295, 0.17677669
  %v2860 = vmul.f32 %v2308, 0.17677669
  %v2861 = vmul.f32 %v2321, 0.17677669
  %v2862 = vmul.f32 %v2334, 0.17677669
  %v2863 = vmul.f32 %v2347, 0.17677669
  %v2864 = vmul.f32 %v2360, 0.17677669
  %v2865 = vmul.f32 %v2373, 0.17677669
  %v2866 = vmul.f32 %v2386, 0.17677669
  %v2867 = vmul.f32 %v2399, 0.17677669
  %v2868 = vmul.f32 %v2412, 0.17677669
  %v2869 = vmul.f32 %v2425, 0.17677669
  %v2870 = vmul.f32 %v2438, 0.17677669
  %v2871 = vmul.f32 %v2451, 0.17677669
  %v2872 = vmul.f32 %v2464, 0.17677669
  %v2873 = vmul.f32 %v2477, 0.17677669
  %v2874 = vmul.f32 %v2490, 0.17677669
  %v2875 = vmul.f32 %v2503, 0.17677669
  %v2876 = vmul.f32 %v2516, 0.17677669
  %v2877 = vmul.f32 %v2529, 0.17677669
  %v2878 = vmul.f32 %v2542, 0.17677669
  %v2879 = vmul.f32 %v2555, 0.17677669
  %v2880 = vmul.f32 %v2568, 0.17677669
  %v2881 = vmul.f32 %v2581, 0.17677669
  %v2882 = vmul.f32 %v2594, 0.17677669
  %v2883 = vmul.f32 %v2607, 0.17677669
  %v2884 = vmul.f32 %v2620, 0.17677669
  %v2885 = vmul.f32 %v2633, 0.17677669
  %v2886 = vmul.f32 %v2646, 0.17677669
  %v2887 = vmul.f32 %v2659, 0.17677669
  %v2888 = vmul.f32 %v2672, 0.17677669
  %v2889 = vmul.f32 %v2685, 0.17677669
  %v2890 = vmul.f32 %v2698, 0.17677669
  %v2891 = vmul.f32 %v2711, 0.17677669
  %v2892 = vmul.f32 %v2724, 0.17677669
  %v2893 = vmul.f32 %v2737, 0.17677669
  %v2894 = vmul.f32 %v2750, 0.17677669
  %v2895 = vsel %vm878, %v2751, -inf
  %v2896 = vsel %vm878, %v2752, -inf
  %v2897 = vmax.f32 %v2895, %v2896
  %v2898 = vsel %vm878, %v2753, -inf
  %v2899 = vmax.f32 %v2897, %v2898
  %v2900 = vsel %vm878, %v2754, -inf
  %v2901 = vmax.f32 %v2899, %v2900
  %v2902 = vsel %vm878, %v2755, -inf
  %v2903 = vmax.f32 %v2901, %v2902
  %v2904 = vsel %vm878, %v2756, -inf
  %v2905 = vmax.f32 %v2903, %v2904
  %v2906 = vsel %vm878, %v2757, -inf
  %v2907 = vmax.f32 %v2905, %v2906
  %v2908 = vsel %vm878, %v2758, -inf
  %v2909 = vmax.f32 %v2907, %v2908
  %v2910 = vsel %vm878, %v2759, -inf
  %v2911 = vmax.f32 %v2909, %v2910
  %v2912 = vsel %vm878, %v2760, -inf
  %v2913 = vmax.f32 %v2911, %v2912
  %v2914 = vsel %vm878, %v2761, -inf
  %v2915 = vmax.f32 %v2913, %v2914
  %v2916 = vsel %vm878, %v2762, -inf
  %v2917 = vmax.f32 %v2915, %v2916
  %v2918 = vsel %vm878, %v2763, -inf
  %v2919 = vsel %vm878, %v2764, -inf
  %v2920 = vmax.f32 %v2918, %v2919
  %v2921 = vsel %vm878, %v2765, -inf
  %v2922 = vmax.f32 %v2920, %v2921
  %v2923 = vsel %vm878, %v2766, -inf
  %v2924 = vmax.f32 %v2922, %v2923
  %v2925 = vsel %vm878, %v2767, -inf
  %v2926 = vmax.f32 %v2924, %v2925
  %v2927 = vsel %vm878, %v2768, -inf
  %v2928 = vmax.f32 %v2926, %v2927
  %v2929 = vsel %vm878, %v2769, -inf
  %v2930 = vmax.f32 %v2928, %v2929
  %v2931 = vsel %vm878, %v2770, -inf
  %v2932 = vmax.f32 %v2930, %v2931
  %v2933 = vsel %vm878, %v2771, -inf
  %v2934 = vmax.f32 %v2932, %v2933
  %v2935 = vsel %vm878, %v2772, -inf
  %v2936 = vmax.f32 %v2934, %v2935
  %v2937 = vsel %vm878, %v2773, -inf
  %v2938 = vmax.f32 %v2936, %v2937
  %v2939 = vsel %vm878, %v2774, -inf
  %v2940 = vmax.f32 %v2938, %v2939
  %v2941 = vsel %vm878, %v2775, -inf
  %v2942 = vsel %vm878, %v2776, -inf
  %v2943 = vmax.f32 %v2941, %v2942
  %v2944 = vsel %vm878, %v2777, -inf
  %v2945 = vmax.f32 %v2943, %v2944
  %v2946 = vsel %vm878, %v2778, -inf
  %v2947 = vmax.f32 %v2945, %v2946
  %v2948 = vsel %vm878, %v2779, -inf
  %v2949 = vmax.f32 %v2947, %v2948
  %v2950 = vsel %vm878, %v2780, -inf
  %v2951 = vmax.f32 %v2949, %v2950
  %v2952 = vsel %vm878, %v2781, -inf
  %v2953 = vmax.f32 %v2951, %v2952
  %v2954 = vsel %vm878, %v2782, -inf
  %v2955 = vmax.f32 %v2953, %v2954
  %v2956 = vsel %vm878, %v2783, -inf
  %v2957 = vmax.f32 %v2955, %v2956
  %v2958 = vsel %vm878, %v2784, -inf
  %v2959 = vmax.f32 %v2957, %v2958
  %v2960 = vsel %vm878, %v2785, -inf
  %v2961 = vmax.f32 %v2959, %v2960
  %v2962 = vsel %vm878, %v2786, -inf
  %v2963 = vmax.f32 %v2961, %v2962
  %v2964 = vsel %vm878, %v2787, -inf
  %v2965 = vsel %vm878, %v2788, -inf
  %v2966 = vmax.f32 %v2964, %v2965
  %v2967 = vsel %vm878, %v2789, -inf
  %v2968 = vmax.f32 %v2966, %v2967
  %v2969 = vsel %vm878, %v2790, -inf
  %v2970 = vmax.f32 %v2968, %v2969
  %v2971 = vsel %vm878, %v2791, -inf
  %v2972 = vmax.f32 %v2970, %v2971
  %v2973 = vsel %vm878, %v2792, -inf
  %v2974 = vmax.f32 %v2972, %v2973
  %v2975 = vsel %vm878, %v2793, -inf
  %v2976 = vmax.f32 %v2974, %v2975
  %v2977 = vsel %vm878, %v2794, -inf
  %v2978 = vmax.f32 %v2976, %v2977
  %v2979 = vsel %vm878, %v2795, -inf
  %v2980 = vmax.f32 %v2978, %v2979
  %v2981 = vsel %vm878, %v2796, -inf
  %v2982 = vmax.f32 %v2980, %v2981
  %v2983 = vsel %vm878, %v2797, -inf
  %v2984 = vmax.f32 %v2982, %v2983
  %v2985 = vsel %vm878, %v2798, -inf
  %v2986 = vmax.f32 %v2984, %v2985
  %v2987 = vsel %vm878, %v2799, -inf
  %v2988 = vsel %vm878, %v2800, -inf
  %v2989 = vmax.f32 %v2987, %v2988
  %v2990 = vsel %vm878, %v2801, -inf
  %v2991 = vmax.f32 %v2989, %v2990
  %v2992 = vsel %vm878, %v2802, -inf
  %v2993 = vmax.f32 %v2991, %v2992
  %v2994 = vsel %vm878, %v2803, -inf
  %v2995 = vmax.f32 %v2993, %v2994
  %v2996 = vsel %vm878, %v2804, -inf
  %v2997 = vmax.f32 %v2995, %v2996
  %v2998 = vsel %vm878, %v2805, -inf
  %v2999 = vmax.f32 %v2997, %v2998
  %v3000 = vsel %vm878, %v2806, -inf
  %v3001 = vmax.f32 %v2999, %v3000
  %v3002 = vsel %vm878, %v2807, -inf
  %v3003 = vmax.f32 %v3001, %v3002
  %v3004 = vsel %vm878, %v2808, -inf
  %v3005 = vmax.f32 %v3003, %v3004
  %v3006 = vsel %vm878, %v2809, -inf
  %v3007 = vmax.f32 %v3005, %v3006
  %v3008 = vsel %vm878, %v2810, -inf
  %v3009 = vmax.f32 %v3007, %v3008
  %v3010 = vsel %vm878, %v2811, -inf
  %v3011 = vsel %vm878, %v2812, -inf
  %v3012 = vmax.f32 %v3010, %v3011
  %v3013 = vsel %vm878, %v2813, -inf
  %v3014 = vmax.f32 %v3012, %v3013
  %v3015 = vsel %vm878, %v2814, -inf
  %v3016 = vmax.f32 %v3014, %v3015
  %v3017 = vsel %vm878, %v2815, -inf
  %v3018 = vmax.f32 %v3016, %v3017
  %v3019 = vsel %vm878, %v2816, -inf
  %v3020 = vmax.f32 %v3018, %v3019
  %v3021 = vsel %vm878, %v2817, -inf
  %v3022 = vmax.f32 %v3020, %v3021
  %v3023 = vsel %vm878, %v2818, -inf
  %v3024 = vmax.f32 %v3022, %v3023
  %v3025 = vsel %vm878, %v2819, -inf
  %v3026 = vmax.f32 %v3024, %v3025
  %v3027 = vsel %vm878, %v2820, -inf
  %v3028 = vmax.f32 %v3026, %v3027
  %v3029 = vsel %vm878, %v2821, -inf
  %v3030 = vmax.f32 %v3028, %v3029
  %v3031 = vsel %vm878, %v2822, -inf
  %v3032 = vmax.f32 %v3030, %v3031
  %v3033 = vsel %vm878, %v2823, -inf
  %v3034 = vsel %vm878, %v2824, -inf
  %v3035 = vmax.f32 %v3033, %v3034
  %v3036 = vsel %vm878, %v2825, -inf
  %v3037 = vmax.f32 %v3035, %v3036
  %v3038 = vsel %vm878, %v2826, -inf
  %v3039 = vmax.f32 %v3037, %v3038
  %v3040 = vsel %vm878, %v2827, -inf
  %v3041 = vmax.f32 %v3039, %v3040
  %v3042 = vsel %vm878, %v2828, -inf
  %v3043 = vmax.f32 %v3041, %v3042
  %v3044 = vsel %vm878, %v2829, -inf
  %v3045 = vmax.f32 %v3043, %v3044
  %v3046 = vsel %vm878, %v2830, -inf
  %v3047 = vmax.f32 %v3045, %v3046
  %v3048 = vsel %vm878, %v2831, -inf
  %v3049 = vmax.f32 %v3047, %v3048
  %v3050 = vsel %vm878, %v2832, -inf
  %v3051 = vmax.f32 %v3049, %v3050
  %v3052 = vsel %vm878, %v2833, -inf
  %v3053 = vmax.f32 %v3051, %v3052
  %v3054 = vsel %vm878, %v2834, -inf
  %v3055 = vmax.f32 %v3053, %v3054
  %v3056 = vsel %vm878, %v2835, -inf
  %v3057 = vsel %vm878, %v2836, -inf
  %v3058 = vmax.f32 %v3056, %v3057
  %v3059 = vsel %vm878, %v2837, -inf
  %v3060 = vmax.f32 %v3058, %v3059
  %v3061 = vsel %vm878, %v2838, -inf
  %v3062 = vmax.f32 %v3060, %v3061
  %v3063 = vsel %vm878, %v2839, -inf
  %v3064 = vmax.f32 %v3062, %v3063
  %v3065 = vsel %vm878, %v2840, -inf
  %v3066 = vmax.f32 %v3064, %v3065
  %v3067 = vsel %vm878, %v2841, -inf
  %v3068 = vmax.f32 %v3066, %v3067
  %v3069 = vsel %vm878, %v2842, -inf
  %v3070 = vmax.f32 %v3068, %v3069
  %v3071 = vsel %vm878, %v2843, -inf
  %v3072 = vmax.f32 %v3070, %v3071
  %v3073 = vsel %vm878, %v2844, -inf
  %v3074 = vmax.f32 %v3072, %v3073
  %v3075 = vsel %vm878, %v2845, -inf
  %v3076 = vmax.f32 %v3074, %v3075
  %v3077 = vsel %vm878, %v2846, -inf
  %v3078 = vmax.f32 %v3076, %v3077
  %v3079 = vsel %vm878, %v2847, -inf
  %v3080 = vsel %vm878, %v2848, -inf
  %v3081 = vmax.f32 %v3079, %v3080
  %v3082 = vsel %vm878, %v2849, -inf
  %v3083 = vmax.f32 %v3081, %v3082
  %v3084 = vsel %vm878, %v2850, -inf
  %v3085 = vmax.f32 %v3083, %v3084
  %v3086 = vsel %vm878, %v2851, -inf
  %v3087 = vmax.f32 %v3085, %v3086
  %v3088 = vsel %vm878, %v2852, -inf
  %v3089 = vmax.f32 %v3087, %v3088
  %v3090 = vsel %vm878, %v2853, -inf
  %v3091 = vmax.f32 %v3089, %v3090
  %v3092 = vsel %vm878, %v2854, -inf
  %v3093 = vmax.f32 %v3091, %v3092
  %v3094 = vsel %vm878, %v2855, -inf
  %v3095 = vmax.f32 %v3093, %v3094
  %v3096 = vsel %vm878, %v2856, -inf
  %v3097 = vmax.f32 %v3095, %v3096
  %v3098 = vsel %vm878, %v2857, -inf
  %v3099 = vmax.f32 %v3097, %v3098
  %v3100 = vsel %vm878, %v2858, -inf
  %v3101 = vmax.f32 %v3099, %v3100
  %v3102 = vsel %vm878, %v2859, -inf
  %v3103 = vsel %vm878, %v2860, -inf
  %v3104 = vmax.f32 %v3102, %v3103
  %v3105 = vsel %vm878, %v2861, -inf
  %v3106 = vmax.f32 %v3104, %v3105
  %v3107 = vsel %vm878, %v2862, -inf
  %v3108 = vmax.f32 %v3106, %v3107
  %v3109 = vsel %vm878, %v2863, -inf
  %v3110 = vmax.f32 %v3108, %v3109
  %v3111 = vsel %vm878, %v2864, -inf
  %v3112 = vmax.f32 %v3110, %v3111
  %v3113 = vsel %vm878, %v2865, -inf
  %v3114 = vmax.f32 %v3112, %v3113
  %v3115 = vsel %vm878, %v2866, -inf
  %v3116 = vmax.f32 %v3114, %v3115
  %v3117 = vsel %vm878, %v2867, -inf
  %v3118 = vmax.f32 %v3116, %v3117
  %v3119 = vsel %vm878, %v2868, -inf
  %v3120 = vmax.f32 %v3118, %v3119
  %v3121 = vsel %vm878, %v2869, -inf
  %v3122 = vmax.f32 %v3120, %v3121
  %v3123 = vsel %vm878, %v2870, -inf
  %v3124 = vmax.f32 %v3122, %v3123
  %v3125 = vsel %vm878, %v2871, -inf
  %v3126 = vsel %vm878, %v2872, -inf
  %v3127 = vmax.f32 %v3125, %v3126
  %v3128 = vsel %vm878, %v2873, -inf
  %v3129 = vmax.f32 %v3127, %v3128
  %v3130 = vsel %vm878, %v2874, -inf
  %v3131 = vmax.f32 %v3129, %v3130
  %v3132 = vsel %vm878, %v2875, -inf
  %v3133 = vmax.f32 %v3131, %v3132
  %v3134 = vsel %vm878, %v2876, -inf
  %v3135 = vmax.f32 %v3133, %v3134
  %v3136 = vsel %vm878, %v2877, -inf
  %v3137 = vmax.f32 %v3135, %v3136
  %v3138 = vsel %vm878, %v2878, -inf
  %v3139 = vmax.f32 %v3137, %v3138
  %v3140 = vsel %vm878, %v2879, -inf
  %v3141 = vmax.f32 %v3139, %v3140
  %v3142 = vsel %vm878, %v2880, -inf
  %v3143 = vmax.f32 %v3141, %v3142
  %v3144 = vsel %vm878, %v2881, -inf
  %v3145 = vmax.f32 %v3143, %v3144
  %v3146 = vsel %vm878, %v2882, -inf
  %v3147 = vmax.f32 %v3145, %v3146
  %v3148 = vsel %vm878, %v2883, -inf
  %v3149 = vsel %vm878, %v2884, -inf
  %v3150 = vmax.f32 %v3148, %v3149
  %v3151 = vsel %vm878, %v2885, -inf
  %v3152 = vmax.f32 %v3150, %v3151
  %v3153 = vsel %vm878, %v2886, -inf
  %v3154 = vmax.f32 %v3152, %v3153
  %v3155 = vsel %vm878, %v2887, -inf
  %v3156 = vmax.f32 %v3154, %v3155
  %v3157 = vsel %vm878, %v2888, -inf
  %v3158 = vmax.f32 %v3156, %v3157
  %v3159 = vsel %vm878, %v2889, -inf
  %v3160 = vmax.f32 %v3158, %v3159
  %v3161 = vsel %vm878, %v2890, -inf
  %v3162 = vmax.f32 %v3160, %v3161
  %v3163 = vsel %vm878, %v2891, -inf
  %v3164 = vmax.f32 %v3162, %v3163
  %v3165 = vsel %vm878, %v2892, -inf
  %v3166 = vmax.f32 %v3164, %v3165
  %v3167 = vsel %vm878, %v2893, -inf
  %v3168 = vmax.f32 %v3166, %v3167
  %v3169 = vsel %vm878, %v2894, -inf
  %v3170 = vmax.f32 %v3168, %v3169
  %v3171 = vsub.f32 %v2751, %v2917
  %v3172 = vsub.f32 %v2752, %v2917
  %v3173 = vsub.f32 %v2753, %v2917
  %v3174 = vsub.f32 %v2754, %v2917
  %v3175 = vsub.f32 %v2755, %v2917
  %v3176 = vsub.f32 %v2756, %v2917
  %v3177 = vsub.f32 %v2757, %v2917
  %v3178 = vsub.f32 %v2758, %v2917
  %v3179 = vsub.f32 %v2759, %v2917
  %v3180 = vsub.f32 %v2760, %v2917
  %v3181 = vsub.f32 %v2761, %v2917
  %v3182 = vsub.f32 %v2762, %v2917
  %v3183 = vsub.f32 %v2763, %v2940
  %v3184 = vsub.f32 %v2764, %v2940
  %v3185 = vsub.f32 %v2765, %v2940
  %v3186 = vsub.f32 %v2766, %v2940
  %v3187 = vsub.f32 %v2767, %v2940
  %v3188 = vsub.f32 %v2768, %v2940
  %v3189 = vsub.f32 %v2769, %v2940
  %v3190 = vsub.f32 %v2770, %v2940
  %v3191 = vsub.f32 %v2771, %v2940
  %v3192 = vsub.f32 %v2772, %v2940
  %v3193 = vsub.f32 %v2773, %v2940
  %v3194 = vsub.f32 %v2774, %v2940
  %v3195 = vsub.f32 %v2775, %v2963
  %v3196 = vsub.f32 %v2776, %v2963
  %v3197 = vsub.f32 %v2777, %v2963
  %v3198 = vsub.f32 %v2778, %v2963
  %v3199 = vsub.f32 %v2779, %v2963
  %v3200 = vsub.f32 %v2780, %v2963
  %v3201 = vsub.f32 %v2781, %v2963
  %v3202 = vsub.f32 %v2782, %v2963
  %v3203 = vsub.f32 %v2783, %v2963
  %v3204 = vsub.f32 %v2784, %v2963
  %v3205 = vsub.f32 %v2785, %v2963
  %v3206 = vsub.f32 %v2786, %v2963
  %v3207 = vsub.f32 %v2787, %v2986
  %v3208 = vsub.f32 %v2788, %v2986
  %v3209 = vsub.f32 %v2789, %v2986
  %v3210 = vsub.f32 %v2790, %v2986
  %v3211 = vsub.f32 %v2791, %v2986
  %v3212 = vsub.f32 %v2792, %v2986
  %v3213 = vsub.f32 %v2793, %v2986
  %v3214 = vsub.f32 %v2794, %v2986
  %v3215 = vsub.f32 %v2795, %v2986
  %v3216 = vsub.f32 %v2796, %v2986
  %v3217 = vsub.f32 %v2797, %v2986
  %v3218 = vsub.f32 %v2798, %v2986
  %v3219 = vsub.f32 %v2799, %v3009
  %v3220 = vsub.f32 %v2800, %v3009
  %v3221 = vsub.f32 %v2801, %v3009
  %v3222 = vsub.f32 %v2802, %v3009
  %v3223 = vsub.f32 %v2803, %v3009
  %v3224 = vsub.f32 %v2804, %v3009
  %v3225 = vsub.f32 %v2805, %v3009
  %v3226 = vsub.f32 %v2806, %v3009
  %v3227 = vsub.f32 %v2807, %v3009
  %v3228 = vsub.f32 %v2808, %v3009
  %v3229 = vsub.f32 %v2809, %v3009
  %v3230 = vsub.f32 %v2810, %v3009
  %v3231 = vsub.f32 %v2811, %v3032
  %v3232 = vsub.f32 %v2812, %v3032
  %v3233 = vsub.f32 %v2813, %v3032
  %v3234 = vsub.f32 %v2814, %v3032
  %v3235 = vsub.f32 %v2815, %v3032
  %v3236 = vsub.f32 %v2816, %v3032
  %v3237 = vsub.f32 %v2817, %v3032
  %v3238 = vsub.f32 %v2818, %v3032
  %v3239 = vsub.f32 %v2819, %v3032
  %v3240 = vsub.f32 %v2820, %v3032
  %v3241 = vsub.f32 %v2821, %v3032
  %v3242 = vsub.f32 %v2822, %v3032
  %v3243 = vsub.f32 %v2823, %v3055
  %v3244 = vsub.f32 %v2824, %v3055
  %v3245 = vsub.f32 %v2825, %v3055
  %v3246 = vsub.f32 %v2826, %v3055
  %v3247 = vsub.f32 %v2827, %v3055
  %v3248 = vsub.f32 %v2828, %v3055
  %v3249 = vsub.f32 %v2829, %v3055
  %v3250 = vsub.f32 %v2830, %v3055
  %v3251 = vsub.f32 %v2831, %v3055
  %v3252 = vsub.f32 %v2832, %v3055
  %v3253 = vsub.f32 %v2833, %v3055
  %v3254 = vsub.f32 %v2834, %v3055
  %v3255 = vsub.f32 %v2835, %v3078
  %v3256 = vsub.f32 %v2836, %v3078
  %v3257 = vsub.f32 %v2837, %v3078
  %v3258 = vsub.f32 %v2838, %v3078
  %v3259 = vsub.f32 %v2839, %v3078
  %v3260 = vsub.f32 %v2840, %v3078
  %v3261 = vsub.f32 %v2841, %v3078
  %v3262 = vsub.f32 %v2842, %v3078
  %v3263 = vsub.f32 %v2843, %v3078
  %v3264 = vsub.f32 %v2844, %v3078
  %v3265 = vsub.f32 %v2845, %v3078
  %v3266 = vsub.f32 %v2846, %v3078
  %v3267 = vsub.f32 %v2847, %v3101
  %v3268 = vsub.f32 %v2848, %v3101
  %v3269 = vsub.f32 %v2849, %v3101
  %v3270 = vsub.f32 %v2850, %v3101
  %v3271 = vsub.f32 %v2851, %v3101
  %v3272 = vsub.f32 %v2852, %v3101
  %v3273 = vsub.f32 %v2853, %v3101
  %v3274 = vsub.f32 %v2854, %v3101
  %v3275 = vsub.f32 %v2855, %v3101
  %v3276 = vsub.f32 %v2856, %v3101
  %v3277 = vsub.f32 %v2857, %v3101
  %v3278 = vsub.f32 %v2858, %v3101
  %v3279 = vsub.f32 %v2859, %v3124
  %v3280 = vsub.f32 %v2860, %v3124
  %v3281 = vsub.f32 %v2861, %v3124
  %v3282 = vsub.f32 %v2862, %v3124
  %v3283 = vsub.f32 %v2863, %v3124
  %v3284 = vsub.f32 %v2864, %v3124
  %v3285 = vsub.f32 %v2865, %v3124
  %v3286 = vsub.f32 %v2866, %v3124
  %v3287 = vsub.f32 %v2867, %v3124
  %v3288 = vsub.f32 %v2868, %v3124
  %v3289 = vsub.f32 %v2869, %v3124
  %v3290 = vsub.f32 %v2870, %v3124
  %v3291 = vsub.f32 %v2871, %v3147
  %v3292 = vsub.f32 %v2872, %v3147
  %v3293 = vsub.f32 %v2873, %v3147
  %v3294 = vsub.f32 %v2874, %v3147
  %v3295 = vsub.f32 %v2875, %v3147
  %v3296 = vsub.f32 %v2876, %v3147
  %v3297 = vsub.f32 %v2877, %v3147
  %v3298 = vsub.f32 %v2878, %v3147
  %v3299 = vsub.f32 %v2879, %v3147
  %v3300 = vsub.f32 %v2880, %v3147
  %v3301 = vsub.f32 %v2881, %v3147
  %v3302 = vsub.f32 %v2882, %v3147
  %v3303 = vsub.f32 %v2883, %v3170
  %v3304 = vsub.f32 %v2884, %v3170
  %v3305 = vsub.f32 %v2885, %v3170
  %v3306 = vsub.f32 %v2886, %v3170
  %v3307 = vsub.f32 %v2887, %v3170
  %v3308 = vsub.f32 %v2888, %v3170
  %v3309 = vsub.f32 %v2889, %v3170
  %v3310 = vsub.f32 %v2890, %v3170
  %v3311 = vsub.f32 %v2891, %v3170
  %v3312 = vsub.f32 %v2892, %v3170
  %v3313 = vsub.f32 %v2893, %v3170
  %v3314 = vsub.f32 %v2894, %v3170
  %v3315 = vmul.f32 %v3171, 1.442695
  %v3316 = vpow.pop %v3315
  %v3317 = vmul.f32 %v3172, 1.442695
  %v3318 = vpow.pop %v3317
  %v3319 = vmul.f32 %v3173, 1.442695
  %v3320 = vpow.pop %v3319
  %v3321 = vmul.f32 %v3174, 1.442695
  %v3322 = vpow.pop %v3321
  %v3323 = vmul.f32 %v3175, 1.442695
  %v3324 = vpow.pop %v3323
  %v3325 = vmul.f32 %v3176, 1.442695
  %v3326 = vpow.pop %v3325
  %v3327 = vmul.f32 %v3177, 1.442695
  %v3328 = vpow.pop %v3327
  %v3329 = vmul.f32 %v3178, 1.442695
  %v3330 = vpow.pop %v3329
  %v3331 = vmul.f32 %v3179, 1.442695
  %v3332 = vpow.pop %v3331
  %v3333 = vmul.f32 %v3180, 1.442695
  %v3334 = vpow.pop %v3333
  %v3335 = vmul.f32 %v3181, 1.442695
  %v3336 = vpow.pop %v3335
  %v3337 = vmul.f32 %v3182, 1.442695
  %v3338 = vpow.pop %v3337
  %v3339 = vmul.f32 %v3183, 1.442695
  %v3340 = vpow.pop %v3339
  %v3341 = vmul.f32 %v3184, 1.442695
  %v3342 = vpow.pop %v3341
  %v3343 = vmul.f32 %v3185, 1.442695
  %v3344 = vpow.pop %v3343
  %v3345 = vmul.f32 %v3186, 1.442695
  %v3346 = vpow.pop %v3345
  %v3347 = vmul.f32 %v3187, 1.442695
  %v3348 = vpow.pop %v3347
  %v3349 = vmul.f32 %v3188, 1.442695
  %v3350 = vpow.pop %v3349
  %v3351 = vmul.f32 %v3189, 1.442695
  %v3352 = vpow.pop %v3351
  %v3353 = vmul.f32 %v3190, 1.442695
  %v3354 = vpow.pop %v3353
  %v3355 = vmul.f32 %v3191, 1.442695
  %v3356 = vpow.pop %v3355
  %v3357 = vmul.f32 %v3192, 1.442695
  %v3358 = vpow.pop %v3357
  %v3359 = vmul.f32 %v3193, 1.442695
  %v3360 = vpow.pop %v3359
  %v3361 = vmul.f32 %v3194, 1.442695
  %v3362 = vpow.pop %v3361
  %v3363 = vmul.f32 %v3195, 1.442695
  %v3364 = vpow.pop %v3363
  %v3365 = vmul.f32 %v3196, 1.442695
  %v3366 = vpow.pop %v3365
  %v3367 = vmul.f32 %v3197, 1.442695
  %v3368 = vpow.pop %v3367
  %v3369 = vmul.f32 %v3198, 1.442695
  %v3370 = vpow.pop %v3369
  %v3371 = vmul.f32 %v3199, 1.442695
  %v3372 = vpow.pop %v3371
  %v3373 = vmul.f32 %v3200, 1.442695
  %v3374 = vpow.pop %v3373
  %v3375 = vmul.f32 %v3201, 1.442695
  %v3376 = vpow.pop %v3375
  %v3377 = vmul.f32 %v3202, 1.442695
  %v3378 = vpow.pop %v3377
  %v3379 = vmul.f32 %v3203, 1.442695
  %v3380 = vpow.pop %v3379
  %v3381 = vmul.f32 %v3204, 1.442695
  %v3382 = vpow.pop %v3381
  %v3383 = vmul.f32 %v3205, 1.442695
  %v3384 = vpow.pop %v3383
  %v3385 = vmul.f32 %v3206, 1.442695
  %v3386 = vpow.pop %v3385
  %v3387 = vmul.f32 %v3207, 1.442695
  %v3388 = vpow.pop %v3387
  %v3389 = vmul.f32 %v3208, 1.442695
  %v3390 = vpow.pop %v3389
  %v3391 = vmul.f32 %v3209, 1.442695
  %v3392 = vpow.pop %v3391
  %v3393 = vmul.f32 %v3210, 1.442695
  %v3394 = vpow.pop %v3393
  %v3395 = vmul.f32 %v3211, 1.442695
  %v3396 = vpow.pop %v3395
  %v3397 = vmul.f32 %v3212, 1.442695
  %v3398 = vpow.pop %v3397
  %v3399 = vmul.f32 %v3213, 1.442695
  %v3400 = vpow.pop %v3399
  %v3401 = vmul.f32 %v3214, 1.442695
  %v3402 = vpow.pop %v3401
  %v3403 = vmul.f32 %v3215, 1.442695
  %v3404 = vpow.pop %v3403
  %v3405 = vmul.f32 %v3216, 1.442695
  %v3406 = vpow.pop %v3405
  %v3407 = vmul.f32 %v3217, 1.442695
  %v3408 = vpow.pop %v3407
  %v3409 = vmul.f32 %v3218, 1.442695
  %v3410 = vpow.pop %v3409
  %v3411 = vmul.f32 %v3219, 1.442695
  %v3412 = vpow.pop %v3411
  %v3413 = vmul.f32 %v3220, 1.442695
  %v3414 = vpow.pop %v3413
  %v3415 = vmul.f32 %v3221, 1.442695
  %v3416 = vpow.pop %v3415
  %v3417 = vmul.f32 %v3222, 1.442695
  %v3418 = vpow.pop %v3417
  %v3419 = vmul.f32 %v3223, 1.442695
  %v3420 = vpow.pop %v3419
  %v3421 = vmul.f32 %v3224, 1.442695
  %v3422 = vpow.pop %v3421
  %v3423 = vmul.f32 %v3225, 1.442695
  %v3424 = vpow.pop %v3423
  %v3425 = vmul.f32 %v3226, 1.442695
  %v3426 = vpow.pop %v3425
  %v3427 = vmul.f32 %v3227, 1.442695
  %v3428 = vpow.pop %v3427
  %v3429 = vmul.f32 %v3228, 1.442695
  %v3430 = vpow.pop %v3429
  %v3431 = vmul.f32 %v3229, 1.442695
  %v3432 = vpow.pop %v3431
  %v3433 = vmul.f32 %v3230, 1.442695
  %v3434 = vpow.pop %v3433
  %v3435 = vmul.f32 %v3231, 1.442695
  %v3436 = vpow.pop %v3435
  %v3437 = vmul.f32 %v3232, 1.442695
  %v3438 = vpow.pop %v3437
  %v3439 = vmul.f32 %v3233, 1.442695
  %v3440 = vpow.pop %v3439
  %v3441 = vmul.f32 %v3234, 1.442695
  %v3442 = vpow.pop %v3441
  %v3443 = vmul.f32 %v3235, 1.442695
  %v3444 = vpow.pop %v3443
  %v3445 = vmul.f32 %v3236, 1.442695
  %v3446 = vpow.pop %v3445
  %v3447 = vmul.f32 %v3237, 1.442695
  %v3448 = vpow.pop %v3447
  %v3449 = vmul.f32 %v3238, 1.442695
  %v3450 = vpow.pop %v3449
  %v3451 = vmul.f32 %v3239, 1.442695
  %v3452 = vpow.pop %v3451
  %v3453 = vmul.f32 %v3240, 1.442695
  %v3454 = vpow.pop %v3453
  %v3455 = vmul.f32 %v3241, 1.442695
  %v3456 = vpow.pop %v3455
  %v3457 = vmul.f32 %v3242, 1.442695
  %v3458 = vpow.pop %v3457
  %v3459 = vmul.f32 %v3243, 1.442695
  %v3460 = vpow.pop %v3459
  %v3461 = vmul.f32 %v3244, 1.442695
  %v3462 = vpow.pop %v3461
  %v3463 = vmul.f32 %v3245, 1.442695
  %v3464 = vpow.pop %v3463
  %v3465 = vmul.f32 %v3246, 1.442695
  %v3466 = vpow.pop %v3465
  %v3467 = vmul.f32 %v3247, 1.442695
  %v3468 = vpow.pop %v3467
  %v3469 = vmul.f32 %v3248, 1.442695
  %v3470 = vpow.pop %v3469
  %v3471 = vmul.f32 %v3249, 1.442695
  %v3472 = vpow.pop %v3471
  %v3473 = vmul.f32 %v3250, 1.442695
  %v3474 = vpow.pop %v3473
  %v3475 = vmul.f32 %v3251, 1.442695
  %v3476 = vpow.pop %v3475
  %v3477 = vmul.f32 %v3252, 1.442695
  %v3478 = vpow.pop %v3477
  %v3479 = vmul.f32 %v3253, 1.442695
  %v3480 = vpow.pop %v3479
  %v3481 = vmul.f32 %v3254, 1.442695
  %v3482 = vpow.pop %v3481
  %v3483 = vmul.f32 %v3255, 1.442695
  %v3484 = vpow.pop %v3483
  %v3485 = vmul.f32 %v3256, 1.442695
  %v3486 = vpow.pop %v3485
  %v3487 = vmul.f32 %v3257, 1.442695
  %v3488 = vpow.pop %v3487
  %v3489 = vmul.f32 %v3258, 1.442695
  %v3490 = vpow.pop %v3489
  %v3491 = vmul.f32 %v3259, 1.442695
  %v3492 = vpow.pop %v3491
  %v3493 = vmul.f32 %v3260, 1.442695
  %v3494 = vpow.pop %v3493
  %v3495 = vmul.f32 %v3261, 1.442695
  %v3496 = vpow.pop %v3495
  %v3497 = vmul.f32 %v3262, 1.442695
  %v3498 = vpow.pop %v3497
  %v3499 = vmul.f32 %v3263, 1.442695
  %v3500 = vpow.pop %v3499
  %v3501 = vmul.f32 %v3264, 1.442695
  %v3502 = vpow.pop %v3501
  %v3503 = vmul.f32 %v3265, 1.442695
  %v3504 = vpow.pop %v3503
  %v3505 = vmul.f32 %v3266, 1.442695
  %v3506 = vpow.pop %v3505
  %v3507 = vmul.f32 %v3267, 1.442695
  %v3508 = vpow.pop %v3507
  %v3509 = vmul.f32 %v3268, 1.442695
  %v3510 = vpow.pop %v3509
  %v3511 = vmul.f32 %v3269, 1.442695
  %v3512 = vpow.pop %v3511
  %v3513 = vmul.f32 %v3270, 1.442695
  %v3514 = vpow.pop %v3513
  %v3515 = vmul.f32 %v3271, 1.442695
  %v3516 = vpow.pop %v3515
  %v3517 = vmul.f32 %v3272, 1.442695
  %v3518 = vpow.pop %v3517
  %v3519 = vmul.f32 %v3273, 1.442695
  %v3520 = vpow.pop %v3519
  %v3521 = vmul.f32 %v3274, 1.442695
  %v3522 = vpow.pop %v3521
  %v3523 = vmul.f32 %v3275, 1.442695
  %v3524 = vpow.pop %v3523
  %v3525 = vmul.f32 %v3276, 1.442695
  %v3526 = vpow.pop %v3525
  %v3527 = vmul.f32 %v3277, 1.442695
  %v3528 = vpow.pop %v3527
  %v3529 = vmul.f32 %v3278, 1.442695
  %v3530 = vpow.pop %v3529
  %v3531 = vmul.f32 %v3279, 1.442695
  %v3532 = vpow.pop %v3531
  %v3533 = vmul.f32 %v3280, 1.442695
  %v3534 = vpow.pop %v3533
  %v3535 = vmul.f32 %v3281, 1.442695
  %v3536 = vpow.pop %v3535
  %v3537 = vmul.f32 %v3282, 1.442695
  %v3538 = vpow.pop %v3537
  %v3539 = vmul.f32 %v3283, 1.442695
  %v3540 = vpow.pop %v3539
  %v3541 = vmul.f32 %v3284, 1.442695
  %v3542 = vpow.pop %v3541
  %v3543 = vmul.f32 %v3285, 1.442695
  %v3544 = vpow.pop %v3543
  %v3545 = vmul.f32 %v3286, 1.442695
  %v3546 = vpow.pop %v3545
  %v3547 = vmul.f32 %v3287, 1.442695
  %v3548 = vpow.pop %v3547
  %v3549 = vmul.f32 %v3288, 1.442695
  %v3550 = vpow.pop %v3549
  %v3551 = vmul.f32 %v3289, 1.442695
  %v3552 = vpow.pop %v3551
  %v3553 = vmul.f32 %v3290, 1.442695
  %v3554 = vpow.pop %v3553
  %v3555 = vmul.f32 %v3291, 1.442695
  %v3556 = vpow.pop %v3555
  %v3557 = vmul.f32 %v3292, 1.442695
  %v3558 = vpow.pop %v3557
  %v3559 = vmul.f32 %v3293, 1.442695
  %v3560 = vpow.pop %v3559
  %v3561 = vmul.f32 %v3294, 1.442695
  %v3562 = vpow.pop %v3561
  %v3563 = vmul.f32 %v3295, 1.442695
  %v3564 = vpow.pop %v3563
  %v3565 = vmul.f32 %v3296, 1.442695
  %v3566 = vpow.pop %v3565
  %v3567 = vmul.f32 %v3297, 1.442695
  %v3568 = vpow.pop %v3567
  %v3569 = vmul.f32 %v3298, 1.442695
  %v3570 = vpow.pop %v3569
  %v3571 = vmul.f32 %v3299, 1.442695
  %v3572 = vpow.pop %v3571
  %v3573 = vmul.f32 %v3300, 1.442695
  %v3574 = vpow.pop %v3573
  %v3575 = vmul.f32 %v3301, 1.442695
  %v3576 = vpow.pop %v3575
  %v3577 = vmul.f32 %v3302, 1.442695
  %v3578 = vpow.pop %v3577
  %v3579 = vmul.f32 %v3303, 1.442695
  %v3580 = vpow.pop %v3579
  %v3581 = vmul.f32 %v3304, 1.442695
  %v3582 = vpow.pop %v3581
  %v3583 = vmul.f32 %v3305, 1.442695
  %v3584 = vpow.pop %v3583
  %v3585 = vmul.f32 %v3306, 1.442695
  %v3586 = vpow.pop %v3585
  %v3587 = vmul.f32 %v3307, 1.442695
  %v3588 = vpow.pop %v3587
  %v3589 = vmul.f32 %v3308, 1.442695
  %v3590 = vpow.pop %v3589
  %v3591 = vmul.f32 %v3309, 1.442695
  %v3592 = vpow.pop %v3591
  %v3593 = vmul.f32 %v3310, 1.442695
  %v3594 = vpow.pop %v3593
  %v3595 = vmul.f32 %v3311, 1.442695
  %v3596 = vpow.pop %v3595
  %v3597 = vmul.f32 %v3312, 1.442695
  %v3598 = vpow.pop %v3597
  %v3599 = vmul.f32 %v3313, 1.442695
  %v3600 = vpow.pop %v3599
  %v3601 = vmul.f32 %v3314, 1.442695
  %v3602 = vpow.pop %v3601
  %v3747 = vrot.slane %v3318, 7
  %vm3748 = vcmask 1041409
  %v3749 = vsel %vm3748, %v3747, %v3316
  %v3750 = vrot.slane %v3320, 6
  %vm3751 = vcmask 1042434
  %v3752 = vsel %vm3751, %v3750, %v3749
  %v3753 = vrot.slane %v3322, 5
  %vm3754 = vcmask 1043459
  %v3755 = vsel %vm3754, %v3753, %v3752
  %v3756 = vrot.slane %v3324, 4
  %vm3757 = vcmask 1044484
  %v3758 = vsel %vm3757, %v3756, %v3755
  %v3759 = vrot.slane %v3326, 3
  %vm3760 = vcmask 1045509
  %v3761 = vsel %vm3760, %v3759, %v3758
  %v3762 = vrot.slane %v3328, 2
  %vm3763 = vcmask 1046534
  %v3764 = vsel %vm3763, %v3762, %v3761
  %v3765 = vrot.slane %v3330, 1
  %vm3766 = vcmask 1047559
  %v3767 = vsel %vm3766, %v3765, %v3764
  %v3768 = vrot.slane %v3334, 7
  %v3769 = vsel %vm3748, %v3768, %v3332
  %v3770 = vrot.slane %v3336, 6
  %v3771 = vsel %vm3751, %v3770, %v3769
  %v3772 = vrot.slane %v3338, 5
  %v3773 = vsel %vm3754, %v3772, %v3771
  %v3774 = vrot.slane %v3342, 7
  %v3775 = vsel %vm3748, %v3774, %v3340
  %v3776 = vrot.slane %v3344, 6
  %v3777 = vsel %vm3751, %v3776, %v3775
  %v3778 = vrot.slane %v3346, 5
  %v3779 = vsel %vm3754, %v3778, %v3777
  %v3780 = vrot.slane %v3348, 4
  %v3781 = vsel %vm3757, %v3780, %v3779
  %v3782 = vrot.slane %v3350, 3
  %v3783 = vsel %vm3760, %v3782, %v3781
  %v3784 = vrot.slane %v3352, 2
  %v3785 = vsel %vm3763, %v3784, %v3783
  %v3786 = vrot.slane %v3354, 1
  %v3787 = vsel %vm3766, %v3786, %v3785
  %v3788 = vrot.slane %v3358, 7
  %v3789 = vsel %vm3748, %v3788, %v3356
  %v3790 = vrot.slane %v3360, 6
  %v3791 = vsel %vm3751, %v3790, %v3789
  %v3792 = vrot.slane %v3362, 5
  %v3793 = vsel %vm3754, %v3792, %v3791
  %v3794 = vrot.slane %v3366, 7
  %v3795 = vsel %vm3748, %v3794, %v3364
  %v3796 = vrot.slane %v3368, 6
  %v3797 = vsel %vm3751, %v3796, %v3795
  %v3798 = vrot.slane %v3370, 5
  %v3799 = vsel %vm3754, %v3798, %v3797
  %v3800 = vrot.slane %v3372, 4
  %v3801 = vsel %vm3757, %v3800, %v3799
  %v3802 = vrot.slane %v3374, 3
  %v3803 = vsel %vm3760, %v3802, %v3801
  %v3804 = vrot.slane %v3376, 2
  %v3805 = vsel %vm3763, %v3804, %v3803
  %v3806 = vrot.slane %v3378, 1
  %v3807 = vsel %vm3766, %v3806, %v3805
  %v3808 = vrot.slane %v3382, 7
  %v3809 = vsel %vm3748, %v3808, %v3380
  %v3810 = vrot.slane %v3384, 6
  %v3811 = vsel %vm3751, %v3810, %v3809
  %v3812 = vrot.slane %v3386, 5
  %v3813 = vsel %vm3754, %v3812, %v3811
  %v3814 = vrot.slane %v3390, 7
  %v3815 = vsel %vm3748, %v3814, %v3388
  %v3816 = vrot.slane %v3392, 6
  %v3817 = vsel %vm3751, %v3816, %v3815
  %v3818 = vrot.slane %v3394, 5
  %v3819 = vsel %vm3754, %v3818, %v3817
  %v3820 = vrot.slane %v3396, 4
  %v3821 = vsel %vm3757, %v3820, %v3819
  %v3822 = vrot.slane %v3398, 3
  %v3823 = vsel %vm3760, %v3822, %v3821
  %v3824 = vrot.slane %v3400, 2
  %v3825 = vsel %vm3763, %v3824, %v3823
  %v3826 = vrot.slane %v3402, 1
  %v3827 = vsel %vm3766, %v3826, %v3825
  %v3828 = vrot.slane %v3406, 7
  %v3829 = vsel %vm3748, %v3828, %v3404
  %v3830 = vrot.slane %v3408, 6
  %v3831 = vsel %vm3751, %v3830, %v3829
  %v3832 = vrot.slane %v3410, 5
  %v3833 = vsel %vm3754, %v3832, %v3831
  %v3834 = vrot.slane %v3414, 7
  %v3835 = vsel %vm3748, %v3834, %v3412
  %v3836 = vrot.slane %v3416, 6
  %v3837 = vsel %vm3751, %v3836, %v3835
  %v3838 = vrot.slane %v3418, 5
  %v3839 = vsel %vm3754, %v3838, %v3837
  %v3840 = vrot.slane %v3420, 4
  %v3841 = vsel %vm3757, %v3840, %v3839
  %v3842 = vrot.slane %v3422, 3
  %v3843 = vsel %vm3760, %v3842, %v3841
  %v3844 = vrot.slane %v3424, 2
  %v3845 = vsel %vm3763, %v3844, %v3843
  %v3846 = vrot.slane %v3426, 1
  %v3847 = vsel %vm3766, %v3846, %v3845
  %v3848 = vrot.slane %v3430, 7
  %v3849 = vsel %vm3748, %v3848, %v3428
  %v3850 = vrot.slane %v3432, 6
  %v3851 = vsel %vm3751, %v3850, %v3849
  %v3852 = vrot.slane %v3434, 5
  %v3853 = vsel %vm3754, %v3852, %v3851
  %v3854 = vrot.slane %v3438, 7
  %v3855 = vsel %vm3748, %v3854, %v3436
  %v3856 = vrot.slane %v3440, 6
  %v3857 = vsel %vm3751, %v3856, %v3855
  %v3858 = vrot.slane %v3442, 5
  %v3859 = vsel %vm3754, %v3858, %v3857
  %v3860 = vrot.slane %v3444, 4
  %v3861 = vsel %vm3757, %v3860, %v3859
  %v3862 = vrot.slane %v3446, 3
  %v3863 = vsel %vm3760, %v3862, %v3861
  %v3864 = vrot.slane %v3448, 2
  %v3865 = vsel %vm3763, %v3864, %v3863
  %v3866 = vrot.slane %v3450, 1
  %v3867 = vsel %vm3766, %v3866, %v3865
  %v3868 = vrot.slane %v3454, 7
  %v3869 = vsel %vm3748, %v3868, %v3452
  %v3870 = vrot.slane %v3456, 6
  %v3871 = vsel %vm3751, %v3870, %v3869
  %v3872 = vrot.slane %v3458, 5
  %v3873 = vsel %vm3754, %v3872, %v3871
  %v3874 = vrot.slane %v3462, 7
  %v3875 = vsel %vm3748, %v3874, %v3460
  %v3876 = vrot.slane %v3464, 6
  %v3877 = vsel %vm3751, %v3876, %v3875
  %v3878 = vrot.slane %v3466, 5
  %v3879 = vsel %vm3754, %v3878, %v3877
  %v3880 = vrot.slane %v3468, 4
  %v3881 = vsel %vm3757, %v3880, %v3879
  %v3882 = vrot.slane %v3470, 3
  %v3883 = vsel %vm3760, %v3882, %v3881
  %v3884 = vrot.slane %v3472, 2
  %v3885 = vsel %vm3763, %v3884, %v3883
  %v3886 = vrot.slane %v3474, 1
  %v3887 = vsel %vm3766, %v3886, %v3885
  %v3888 = vrot.slane %v3478, 7
  %v3889 = vsel %vm3748, %v3888, %v3476
  %v3890 = vrot.slane %v3480, 6
  %v3891 = vsel %vm3751, %v3890, %v3889
  %v3892 = vrot.slane %v3482, 5
  %v3893 = vsel %vm3754, %v3892, %v3891
  %v3894 = vrot.slane %v3486, 7
  %v3895 = vsel %vm3748, %v3894, %v3484
  %v3896 = vrot.slane %v3488, 6
  %v3897 = vsel %vm3751, %v3896, %v3895
  %v3898 = vrot.slane %v3490, 5
  %v3899 = vsel %vm3754, %v3898, %v3897
  %v3900 = vrot.slane %v3492, 4
  %v3901 = vsel %vm3757, %v3900, %v3899
  %v3902 = vrot.slane %v3494, 3
  %v3903 = vsel %vm3760, %v3902, %v3901
  %v3904 = vrot.slane %v3496, 2
  %v3905 = vsel %vm3763, %v3904, %v3903
  %v3906 = vrot.slane %v3498, 1
  %v3907 = vsel %vm3766, %v3906, %v3905
  %v3908 = vrot.slane %v3502, 7
  %v3909 = vsel %vm3748, %v3908, %v3500
  %v3910 = vrot.slane %v3504, 6
  %v3911 = vsel %vm3751, %v3910, %v3909
  %v3912 = vrot.slane %v3506, 5
  %v3913 = vsel %vm3754, %v3912, %v3911
  %v3914 = vrot.slane %v3510, 7
  %v3915 = vsel %vm3748, %v3914, %v3508
  %v3916 = vrot.slane %v3512, 6
  %v3917 = vsel %vm3751, %v3916, %v3915
  %v3918 = vrot.slane %v3514, 5
  %v3919 = vsel %vm3754, %v3918, %v3917
  %v3920 = vrot.slane %v3516, 4
  %v3921 = vsel %vm3757, %v3920, %v3919
  %v3922 = vrot.slane %v3518, 3
  %v3923 = vsel %vm3760, %v3922, %v3921
  %v3924 = vrot.slane %v3520, 2
  %v3925 = vsel %vm3763, %v3924, %v3923
  %v3926 = vrot.slane %v3522, 1
  %v3927 = vsel %vm3766, %v3926, %v3925
  %v3928 = vrot.slane %v3526, 7
  %v3929 = vsel %vm3748, %v3928, %v3524
  %v3930 = vrot.slane %v3528, 6
  %v3931 = vsel %vm3751, %v3930, %v3929
  %v3932 = vrot.slane %v3530, 5
  %v3933 = vsel %vm3754, %v3932, %v3931
  %v3934 = vrot.slane %v3534, 7
  %v3935 = vsel %vm3748, %v3934, %v3532
  %v3936 = vrot.slane %v3536, 6
  %v3937 = vsel %vm3751, %v3936, %v3935
  %v3938 = vrot.slane %v3538, 5
  %v3939 = vsel %vm3754, %v3938, %v3937
  %v3940 = vrot.slane %v3540, 4
  %v3941 = vsel %vm3757, %v3940, %v3939
  %v3942 = vrot.slane %v3542, 3
  %v3943 = vsel %vm3760, %v3942, %v3941
  %v3944 = vrot.slane %v3544, 2
  %v3945 = vsel %vm3763, %v3944, %v3943
  %v3946 = vrot.slane %v3546, 1
  %v3947 = vsel %vm3766, %v3946, %v3945
  %v3948 = vrot.slane %v3550, 7
  %v3949 = vsel %vm3748, %v3948, %v3548
  %v3950 = vrot.slane %v3552, 6
  %v3951 = vsel %vm3751, %v3950, %v3949
  %v3952 = vrot.slane %v3554, 5
  %v3953 = vsel %vm3754, %v3952, %v3951
  %v3954 = vrot.slane %v3558, 7
  %v3955 = vsel %vm3748, %v3954, %v3556
  %v3956 = vrot.slane %v3560, 6
  %v3957 = vsel %vm3751, %v3956, %v3955
  %v3958 = vrot.slane %v3562, 5
  %v3959 = vsel %vm3754, %v3958, %v3957
  %v3960 = vrot.slane %v3564, 4
  %v3961 = vsel %vm3757, %v3960, %v3959
  %v3962 = vrot.slane %v3566, 3
  %v3963 = vsel %vm3760, %v3962, %v3961
  %v3964 = vrot.slane %v3568, 2
  %v3965 = vsel %vm3763, %v3964, %v3963
  %v3966 = vrot.slane %v3570, 1
  %v3967 = vsel %vm3766, %v3966, %v3965
  %v3968 = vrot.slane %v3574, 7
  %v3969 = vsel %vm3748, %v3968, %v3572
  %v3970 = vrot.slane %v3576, 6
  %v3971 = vsel %vm3751, %v3970, %v3969
  %v3972 = vrot.slane %v3578, 5
  %v3973 = vsel %vm3754, %v3972, %v3971
  %v3974 = vrot.slane %v3582, 7
  %v3975 = vsel %vm3748, %v3974, %v3580
  %v3976 = vrot.slane %v3584, 6
  %v3977 = vsel %vm3751, %v3976, %v3975
  %v3978 = vrot.slane %v3586, 5
  %v3979 = vsel %vm3754, %v3978, %v3977
  %v3980 = vrot.slane %v3588, 4
  %v3981 = vsel %vm3757, %v3980, %v3979
  %v3982 = vrot.slane %v3590, 3
  %v3983 = vsel %vm3760, %v3982, %v3981
  %v3984 = vrot.slane %v3592, 2
  %v3985 = vsel %vm3763, %v3984, %v3983
  %v3986 = vrot.slane %v3594, 1
  %v3987 = vsel %vm3766, %v3986, %v3985
  %v3988 = vrot.slane %v3598, 7
  %v3989 = vsel %vm3748, %v3988, %v3596
  %v3990 = vrot.slane %v3600, 6
  %v3991 = vsel %vm3751, %v3990, %v3989
  %v3992 = vrot.slane %v3602, 5
  %v3993 = vsel %vm3754, %v3992, %v3991
  %v4018 = vsel %vm878, %v3767, 0.0
  %vm4019 = vcmask 60416
  %v4020 = vsel %vm4019, %v3773, 0.0
  %v4021 = vadd.f32 %v4018, %v4020
  %v4022 = vrot.slane %v4021, 4
  %v4023 = vadd.f32 %v4021, %v4022
  %v4024 = vrot.slane %v4023, 2
  %v4025 = vadd.f32 %v4023, %v4024
  %v4026 = vrot.slane %v4025, 1
  %v4027 = vadd.f32 %v4025, %v4026
  %v4028 = vsel %vm878, %v3787, 0.0
  %v4029 = vsel %vm4019, %v3793, 0.0
  %v4030 = vadd.f32 %v4028, %v4029
  %v4031 = vrot.slane %v4030, 4
  %v4032 = vadd.f32 %v4030, %v4031
  %v4033 = vrot.slane %v4032, 2
  %v4034 = vadd.f32 %v4032, %v4033
  %v4035 = vrot.slane %v4034, 1
  %v4036 = vadd.f32 %v4034, %v4035
  %v4037 = vsel %vm878, %v3807, 0.0
  %v4038 = vsel %vm4019, %v3813, 0.0
  %v4039 = vadd.f32 %v4037, %v4038
  %v4040 = vrot.slane %v4039, 4
  %v4041 = vadd.f32 %v4039, %v4040
  %v4042 = vrot.slane %v4041, 2
  %v4043 = vadd.f32 %v4041, %v4042
  %v4044 = vrot.slane %v4043, 1
  %v4045 = vadd.f32 %v4043, %v4044
  %v4046 = vsel %vm878, %v3827, 0.0
  %v4047 = vsel %vm4019, %v3833, 0.0
  %v4048 = vadd.f32 %v4046, %v4047
  %v4049 = vrot.slane %v4048, 4
  %v4050 = vadd.f32 %v4048, %v4049
  %v4051 = vrot.slane %v4050, 2
  %v4052 = vadd.f32 %v4050, %v4051
  %v4053 = vrot.slane %v4052, 1
  %v4054 = vadd.f32 %v4052, %v4053
  %v4055 = vsel %vm878, %v3847, 0.0
  %v4056 = vsel %vm4019, %v3853, 0.0
  %v4057 = vadd.f32 %v4055, %v4056
  %v4058 = vrot.slane %v4057, 4
  %v4059 = vadd.f32 %v4057, %v4058
  %v4060 = vrot.slane %v4059, 2
  %v4061 = vadd.f32 %v4059, %v4060
  %v4062 = vrot.slane %v4061, 1
  %v4063 = vadd.f32 %v4061, %v4062
  %v4064 = vsel %vm878, %v3867, 0.0
  %v4065 = vsel %vm4019, %v3873, 0.0
  %v4066 = vadd.f32 %v4064, %v4065
  %v4067 = vrot.slane %v4066, 4
  %v4068 = vadd.f32 %v4066, %v4067
  %v4069 = vrot.slane %v4068, 2
  %v4070 = vadd.f32 %v4068, %v4069
  %v4071 = vrot.slane %v4070, 1
  %v4072 = vadd.f32 %v4070, %v4071
  %v4073 = vsel %vm878, %v3887, 0.0
  %v4074 = vsel %vm4019, %v3893, 0.0
  %v4075 = vadd.f32 %v4073, %v4074
  %v4076 = vrot.slane %v4075, 4
  %v4077 = vadd.f32 %v4075, %v4076
  %v4078 = vrot.slane %v4077, 2
  %v4079 = vadd.f32 %v4077, %v4078
  %v4080 = vrot.slane %v4079, 1
  %v4081 = vadd.f32 %v4079, %v4080
  %v4082 = vsel %vm878, %v3907, 0.0
  %v4083 = vsel %vm4019, %v3913, 0.0
  %v4084 = vadd.f32 %v4082, %v4083
  %v4085 = vrot.slane %v4084, 4
  %v4086 = vadd.f32 %v4084, %v4085
  %v4087 = vrot.slane %v4086, 2
  %v4088 = vadd.f32 %v4086, %v4087
  %v4089 = vrot.slane %v4088, 1
  %v4090 = vadd.f32 %v4088, %v4089
  %v4091 = vsel %vm878, %v3927, 0.0
  %v4092 = vsel %vm4019, %v3933, 0.0
  %v4093 = vadd.f32 %v4091, %v4092
  %v4094 = vrot.slane %v4093, 4
  %v4095 = vadd.f32 %v4093, %v4094
  %v4096 = vrot.slane %v4095, 2
  %v4097 = vadd.f32 %v4095, %v4096
  %v4098 = vrot.slane %v4097, 1
  %v4099 = vadd.f32 %v4097, %v4098
  %v4100 = vsel %vm878, %v3947, 0.0
  %v4101 = vsel %vm4019, %v3953, 0.0
  %v4102 = vadd.f32 %v4100, %v4101
  %v4103 = vrot.slane %v4102, 4
  %v4104 = vadd.f32 %v4102, %v4103
  %v4105 = vrot.slane %v4104, 2
  %v4106 = vadd.f32 %v4104, %v4105
  %v4107 = vrot.slane %v4106, 1
  %v4108 = vadd.f32 %v4106, %v4107
  %v4109 = vsel %vm878, %v3967, 0.0
  %v4110 = vsel %vm4019, %v3973, 0.0
  %v4111 = vadd.f32 %v4109, %v4110
  %v4112 = vrot.slane %v4111, 4
  %v4113 = vadd.f32 %v4111, %v4112
  %v4114 = vrot.slane %v4113, 2
  %v4115 = vadd.f32 %v4113, %v4114
  %v4116 = vrot.slane %v4115, 1
  %v4117 = vadd.f32 %v4115, %v4116
  %v4118 = vsel %vm878, %v3987, 0.0
  %v4119 = vsel %vm4019, %v3993, 0.0
  %v4120 = vadd.f32 %v4118, %v4119
  %v4121 = vrot.slane %v4120, 4
  %v4122 = vadd.f32 %v4120, %v4121
  %v4123 = vrot.slane %v4122, 2
  %v4124 = vadd.f32 %v4122, %v4123
  %v4125 = vrot.slane %v4124, 1
  %v4126 = vadd.f32 %v4124, %v4125
  %v4127 = vlaneseq
  %v4128 = vshrl.u32 %v4127, 7
  %v4129 = vsub.s32 0, %v4128
  %v4130 = vrot.slane %v3316, %v4129
  %v4131 = vlaneseq
  %v4132 = vshrl.u32 %v4131, 7
  %v4133 = vsub.s32 0, %v4132
  %v4134 = vrot.slane %v3318, %v4133
  %v4135 = vlaneseq
  %v4136 = vshrl.u32 %v4135, 7
  %v4137 = vsub.s32 0, %v4136
  %v4138 = vrot.slane %v3320, %v4137
  %v4139 = vlaneseq
  %v4140 = vshrl.u32 %v4139, 7
  %v4141 = vsub.s32 0, %v4140
  %v4142 = vrot.slane %v3322, %v4141
  %v4143 = vlaneseq
  %v4144 = vshrl.u32 %v4143, 7
  %v4145 = vsub.s32 0, %v4144
  %v4146 = vrot.slane %v3324, %v4145
  %v4147 = vlaneseq
  %v4148 = vshrl.u32 %v4147, 7
  %v4149 = vsub.s32 0, %v4148
  %v4150 = vrot.slane %v3326, %v4149
  %v4151 = vlaneseq
  %v4152 = vshrl.u32 %v4151, 7
  %v4153 = vsub.s32 0, %v4152
  %v4154 = vrot.slane %v3328, %v4153
  %v4155 = vlaneseq
  %v4156 = vshrl.u32 %v4155, 7
  %v4157 = vsub.s32 0, %v4156
  %v4158 = vrot.slane %v3330, %v4157
  %v4159 = vlaneseq
  %v4160 = vshrl.u32 %v4159, 7
  %v4161 = vsub.s32 0, %v4160
  %v4162 = vrot.slane %v3332, %v4161
  %v4163 = vlaneseq
  %v4164 = vshrl.u32 %v4163, 7
  %v4165 = vsub.s32 0, %v4164
  %v4166 = vrot.slane %v3334, %v4165
  %v4167 = vlaneseq
  %v4168 = vshrl.u32 %v4167, 7
  %v4169 = vsub.s32 0, %v4168
  %v4170 = vrot.slane %v3336, %v4169
  %v4171 = vlaneseq
  %v4172 = vshrl.u32 %v4171, 7
  %v4173 = vsub.s32 0, %v4172
  %v4174 = vrot.slane %v3338, %v4173
  %v4175 = vlaneseq
  %v4176 = vshrl.u32 %v4175, 7
  %v4177 = vsub.s32 0, %v4176
  %v4178 = vrot.slane %v3340, %v4177
  %v4179 = vlaneseq
  %v4180 = vshrl.u32 %v4179, 7
  %v4181 = vsub.s32 0, %v4180
  %v4182 = vrot.slane %v3342, %v4181
  %v4183 = vlaneseq
  %v4184 = vshrl.u32 %v4183, 7
  %v4185 = vsub.s32 0, %v4184
  %v4186 = vrot.slane %v3344, %v4185
  %v4187 = vlaneseq
  %v4188 = vshrl.u32 %v4187, 7
  %v4189 = vsub.s32 0, %v4188
  %v4190 = vrot.slane %v3346, %v4189
  %v4191 = vlaneseq
  %v4192 = vshrl.u32 %v4191, 7
  %v4193 = vsub.s32 0, %v4192
  %v4194 = vrot.slane %v3348, %v4193
  %v4195 = vlaneseq
  %v4196 = vshrl.u32 %v4195, 7
  %v4197 = vsub.s32 0, %v4196
  %v4198 = vrot.slane %v3350, %v4197
  %v4199 = vlaneseq
  %v4200 = vshrl.u32 %v4199, 7
  %v4201 = vsub.s32 0, %v4200
  %v4202 = vrot.slane %v3352, %v4201
  %v4203 = vlaneseq
  %v4204 = vshrl.u32 %v4203, 7
  %v4205 = vsub.s32 0, %v4204
  %v4206 = vrot.slane %v3354, %v4205
  %v4207 = vlaneseq
  %v4208 = vshrl.u32 %v4207, 7
  %v4209 = vsub.s32 0, %v4208
  %v4210 = vrot.slane %v3356, %v4209
  %v4211 = vlaneseq
  %v4212 = vshrl.u32 %v4211, 7
  %v4213 = vsub.s32 0, %v4212
  %v4214 = vrot.slane %v3358, %v4213
  %v4215 = vlaneseq
  %v4216 = vshrl.u32 %v4215, 7
  %v4217 = vsub.s32 0, %v4216
  %v4218 = vrot.slane %v3360, %v4217
  %v4219 = vlaneseq
  %v4220 = vshrl.u32 %v4219, 7
  %v4221 = vsub.s32 0, %v4220
  %v4222 = vrot.slane %v3362, %v4221
  %v4223 = vlaneseq
  %v4224 = vshrl.u32 %v4223, 7
  %v4225 = vsub.s32 0, %v4224
  %v4226 = vrot.slane %v3364, %v4225
  %v4227 = vlaneseq
  %v4228 = vshrl.u32 %v4227, 7
  %v4229 = vsub.s32 0, %v4228
  %v4230 = vrot.slane %v3366, %v4229
  %v4231 = vlaneseq
  %v4232 = vshrl.u32 %v4231, 7
  %v4233 = vsub.s32 0, %v4232
  %v4234 = vrot.slane %v3368, %v4233
  %v4235 = vlaneseq
  %v4236 = vshrl.u32 %v4235, 7
  %v4237 = vsub.s32 0, %v4236
  %v4238 = vrot.slane %v3370, %v4237
  %v4239 = vlaneseq
  %v4240 = vshrl.u32 %v4239, 7
  %v4241 = vsub.s32 0, %v4240
  %v4242 = vrot.slane %v3372, %v4241
  %v4243 = vlaneseq
  %v4244 = vshrl.u32 %v4243, 7
  %v4245 = vsub.s32 0, %v4244
  %v4246 = vrot.slane %v3374, %v4245
  %v4247 = vlaneseq
  %v4248 = vshrl.u32 %v4247, 7
  %v4249 = vsub.s32 0, %v4248
  %v4250 = vrot.slane %v3376, %v4249
  %v4251 = vlaneseq
  %v4252 = vshrl.u32 %v4251, 7
  %v4253 = vsub.s32 0, %v4252
  %v4254 = vrot.slane %v3378, %v4253
  %v4255 = vlaneseq
  %v4256 = vshrl.u32 %v4255, 7
  %v4257 = vsub.s32 0, %v4256
  %v4258 = vrot.slane %v3380, %v4257
  %v4259 = vlaneseq
  %v4260 = vshrl.u32 %v4259, 7
  %v4261 = vsub.s32 0, %v4260
  %v4262 = vrot.slane %v3382, %v4261
  %v4263 = vlaneseq
  %v4264 = vshrl.u32 %v4263, 7
  %v4265 = vsub.s32 0, %v4264
  %v4266 = vrot.slane %v3384, %v4265
  %v4267 = vlaneseq
  %v4268 = vshrl.u32 %v4267, 7
  %v4269 = vsub.s32 0, %v4268
  %v4270 = vrot.slane %v3386, %v4269
  %v4271 = vlaneseq
  %v4272 = vshrl.u32 %v4271, 7
  %v4273 = vsub.s32 0, %v4272
  %v4274 = vrot.slane %v3388, %v4273
  %v4275 = vlaneseq
  %v4276 = vshrl.u32 %v4275, 7
  %v4277 = vsub.s32 0, %v4276
  %v4278 = vrot.slane %v3390, %v4277
  %v4279 = vlaneseq
  %v4280 = vshrl.u32 %v4279, 7
  %v4281 = vsub.s32 0, %v4280
  %v4282 = vrot.slane %v3392, %v4281
  %v4283 = vlaneseq
  %v4284 = vshrl.u32 %v4283, 7
  %v4285 = vsub.s32 0, %v4284
  %v4286 = vrot.slane %v3394, %v4285
  %v4287 = vlaneseq
  %v4288 = vshrl.u32 %v4287, 7
  %v4289 = vsub.s32 0, %v4288
  %v4290 = vrot.slane %v3396, %v4289
  %v4291 = vlaneseq
  %v4292 = vshrl.u32 %v4291, 7
  %v4293 = vsub.s32 0, %v4292
  %v4294 = vrot.slane %v3398, %v4293
  %v4295 = vlaneseq
  %v4296 = vshrl.u32 %v4295, 7
  %v4297 = vsub.s32 0, %v4296
  %v4298 = vrot.slane %v3400, %v4297
  %v4299 = vlaneseq
  %v4300 = vshrl.u32 %v4299, 7
  %v4301 = vsub.s32 0, %v4300
  %v4302 = vrot.slane %v3402, %v4301
  %v4303 = vlaneseq
  %v4304 = vshrl.u32 %v4303, 7
  %v4305 = vsub.s32 0, %v4304
  %v4306 = vrot.slane %v3404, %v4305
  %v4307 = vlaneseq
  %v4308 = vshrl.u32 %v4307, 7
  %v4309 = vsub.s32 0, %v4308
  %v4310 = vrot.slane %v3406, %v4309
  %v4311 = vlaneseq
  %v4312 = vshrl.u32 %v4311, 7
  %v4313 = vsub.s32 0, %v4312
  %v4314 = vrot.slane %v3408, %v4313
  %v4315 = vlaneseq
  %v4316 = vshrl.u32 %v4315, 7
  %v4317 = vsub.s32 0, %v4316
  %v4318 = vrot.slane %v3410, %v4317
  %v4319 = vlaneseq
  %v4320 = vshrl.u32 %v4319, 7
  %v4321 = vsub.s32 0, %v4320
  %v4322 = vrot.slane %v3412, %v4321
  %v4323 = vlaneseq
  %v4324 = vshrl.u32 %v4323, 7
  %v4325 = vsub.s32 0, %v4324
  %v4326 = vrot.slane %v3414, %v4325
  %v4327 = vlaneseq
  %v4328 = vshrl.u32 %v4327, 7
  %v4329 = vsub.s32 0, %v4328
  %v4330 = vrot.slane %v3416, %v4329
  %v4331 = vlaneseq
  %v4332 = vshrl.u32 %v4331, 7
  %v4333 = vsub.s32 0, %v4332
  %v4334 = vrot.slane %v3418, %v4333
  %v4335 = vlaneseq
  %v4336 = vshrl.u32 %v4335, 7
  %v4337 = vsub.s32 0, %v4336
  %v4338 = vrot.slane %v3420, %v4337
  %v4339 = vlaneseq
  %v4340 = vshrl.u32 %v4339, 7
  %v4341 = vsub.s32 0, %v4340
  %v4342 = vrot.slane %v3422, %v4341
  %v4343 = vlaneseq
  %v4344 = vshrl.u32 %v4343, 7
  %v4345 = vsub.s32 0, %v4344
  %v4346 = vrot.slane %v3424, %v4345
  %v4347 = vlaneseq
  %v4348 = vshrl.u32 %v4347, 7
  %v4349 = vsub.s32 0, %v4348
  %v4350 = vrot.slane %v3426, %v4349
  %v4351 = vlaneseq
  %v4352 = vshrl.u32 %v4351, 7
  %v4353 = vsub.s32 0, %v4352
  %v4354 = vrot.slane %v3428, %v4353
  %v4355 = vlaneseq
  %v4356 = vshrl.u32 %v4355, 7
  %v4357 = vsub.s32 0, %v4356
  %v4358 = vrot.slane %v3430, %v4357
  %v4359 = vlaneseq
  %v4360 = vshrl.u32 %v4359, 7
  %v4361 = vsub.s32 0, %v4360
  %v4362 = vrot.slane %v3432, %v4361
  %v4363 = vlaneseq
  %v4364 = vshrl.u32 %v4363, 7
  %v4365 = vsub.s32 0, %v4364
  %v4366 = vrot.slane %v3434, %v4365
  %v4367 = vlaneseq
  %v4368 = vshrl.u32 %v4367, 7
  %v4369 = vsub.s32 0, %v4368
  %v4370 = vrot.slane %v3436, %v4369
  %v4371 = vlaneseq
  %v4372 = vshrl.u32 %v4371, 7
  %v4373 = vsub.s32 0, %v4372
  %v4374 = vrot.slane %v3438, %v4373
  %v4375 = vlaneseq
  %v4376 = vshrl.u32 %v4375, 7
  %v4377 = vsub.s32 0, %v4376
  %v4378 = vrot.slane %v3440, %v4377
  %v4379 = vlaneseq
  %v4380 = vshrl.u32 %v4379, 7
  %v4381 = vsub.s32 0, %v4380
  %v4382 = vrot.slane %v3442, %v4381
  %v4383 = vlaneseq
  %v4384 = vshrl.u32 %v4383, 7
  %v4385 = vsub.s32 0, %v4384
  %v4386 = vrot.slane %v3444, %v4385
  %v4387 = vlaneseq
  %v4388 = vshrl.u32 %v4387, 7
  %v4389 = vsub.s32 0, %v4388
  %v4390 = vrot.slane %v3446, %v4389
  %v4391 = vlaneseq
  %v4392 = vshrl.u32 %v4391, 7
  %v4393 = vsub.s32 0, %v4392
  %v4394 = vrot.slane %v3448, %v4393
  %v4395 = vlaneseq
  %v4396 = vshrl.u32 %v4395, 7
  %v4397 = vsub.s32 0, %v4396
  %v4398 = vrot.slane %v3450, %v4397
  %v4399 = vlaneseq
  %v4400 = vshrl.u32 %v4399, 7
  %v4401 = vsub.s32 0, %v4400
  %v4402 = vrot.slane %v3452, %v4401
  %v4403 = vlaneseq
  %v4404 = vshrl.u32 %v4403, 7
  %v4405 = vsub.s32 0, %v4404
  %v4406 = vrot.slane %v3454, %v4405
  %v4407 = vlaneseq
  %v4408 = vshrl.u32 %v4407, 7
  %v4409 = vsub.s32 0, %v4408
  %v4410 = vrot.slane %v3456, %v4409
  %v4411 = vlaneseq
  %v4412 = vshrl.u32 %v4411, 7
  %v4413 = vsub.s32 0, %v4412
  %v4414 = vrot.slane %v3458, %v4413
  %v4415 = vlaneseq
  %v4416 = vshrl.u32 %v4415, 7
  %v4417 = vsub.s32 0, %v4416
  %v4418 = vrot.slane %v3460, %v4417
  %v4419 = vlaneseq
  %v4420 = vshrl.u32 %v4419, 7
  %v4421 = vsub.s32 0, %v4420
  %v4422 = vrot.slane %v3462, %v4421
  %v4423 = vlaneseq
  %v4424 = vshrl.u32 %v4423, 7
  %v4425 = vsub.s32 0, %v4424
  %v4426 = vrot.slane %v3464, %v4425
  %v4427 = vlaneseq
  %v4428 = vshrl.u32 %v4427, 7
  %v4429 = vsub.s32 0, %v4428
  %v4430 = vrot.slane %v3466, %v4429
  %v4431 = vlaneseq
  %v4432 = vshrl.u32 %v4431, 7
  %v4433 = vsub.s32 0, %v4432
  %v4434 = vrot.slane %v3468, %v4433
  %v4435 = vlaneseq
  %v4436 = vshrl.u32 %v4435, 7
  %v4437 = vsub.s32 0, %v4436
  %v4438 = vrot.slane %v3470, %v4437
  %v4439 = vlaneseq
  %v4440 = vshrl.u32 %v4439, 7
  %v4441 = vsub.s32 0, %v4440
  %v4442 = vrot.slane %v3472, %v4441
  %v4443 = vlaneseq
  %v4444 = vshrl.u32 %v4443, 7
  %v4445 = vsub.s32 0, %v4444
  %v4446 = vrot.slane %v3474, %v4445
  %v4447 = vlaneseq
  %v4448 = vshrl.u32 %v4447, 7
  %v4449 = vsub.s32 0, %v4448
  %v4450 = vrot.slane %v3476, %v4449
  %v4451 = vlaneseq
  %v4452 = vshrl.u32 %v4451, 7
  %v4453 = vsub.s32 0, %v4452
  %v4454 = vrot.slane %v3478, %v4453
  %v4455 = vlaneseq
  %v4456 = vshrl.u32 %v4455, 7
  %v4457 = vsub.s32 0, %v4456
  %v4458 = vrot.slane %v3480, %v4457
  %v4459 = vlaneseq
  %v4460 = vshrl.u32 %v4459, 7
  %v4461 = vsub.s32 0, %v4460
  %v4462 = vrot.slane %v3482, %v4461
  %v4463 = vlaneseq
  %v4464 = vshrl.u32 %v4463, 7
  %v4465 = vsub.s32 0, %v4464
  %v4466 = vrot.slane %v3484, %v4465
  %v4467 = vlaneseq
  %v4468 = vshrl.u32 %v4467, 7
  %v4469 = vsub.s32 0, %v4468
  %v4470 = vrot.slane %v3486, %v4469
  %v4471 = vlaneseq
  %v4472 = vshrl.u32 %v4471, 7
  %v4473 = vsub.s32 0, %v4472
  %v4474 = vrot.slane %v3488, %v4473
  %v4475 = vlaneseq
  %v4476 = vshrl.u32 %v4475, 7
  %v4477 = vsub.s32 0, %v4476
  %v4478 = vrot.slane %v3490, %v4477
  %v4479 = vlaneseq
  %v4480 = vshrl.u32 %v4479, 7
  %v4481 = vsub.s32 0, %v4480
  %v4482 = vrot.slane %v3492, %v4481
  %v4483 = vlaneseq
  %v4484 = vshrl.u32 %v4483, 7
  %v4485 = vsub.s32 0, %v4484
  %v4486 = vrot.slane %v3494, %v4485
  %v4487 = vlaneseq
  %v4488 = vshrl.u32 %v4487, 7
  %v4489 = vsub.s32 0, %v4488
  %v4490 = vrot.slane %v3496, %v4489
  %v4491 = vlaneseq
  %v4492 = vshrl.u32 %v4491, 7
  %v4493 = vsub.s32 0, %v4492
  %v4494 = vrot.slane %v3498, %v4493
  %v4495 = vlaneseq
  %v4496 = vshrl.u32 %v4495, 7
  %v4497 = vsub.s32 0, %v4496
  %v4498 = vrot.slane %v3500, %v4497
  %v4499 = vlaneseq
  %v4500 = vshrl.u32 %v4499, 7
  %v4501 = vsub.s32 0, %v4500
  %v4502 = vrot.slane %v3502, %v4501
  %v4503 = vlaneseq
  %v4504 = vshrl.u32 %v4503, 7
  %v4505 = vsub.s32 0, %v4504
  %v4506 = vrot.slane %v3504, %v4505
  %v4507 = vlaneseq
  %v4508 = vshrl.u32 %v4507, 7
  %v4509 = vsub.s32 0, %v4508
  %v4510 = vrot.slane %v3506, %v4509
  %v4511 = vlaneseq
  %v4512 = vshrl.u32 %v4511, 7
  %v4513 = vsub.s32 0, %v4512
  %v4514 = vrot.slane %v3508, %v4513
  %v4515 = vlaneseq
  %v4516 = vshrl.u32 %v4515, 7
  %v4517 = vsub.s32 0, %v4516
  %v4518 = vrot.slane %v3510, %v4517
  %v4519 = vlaneseq
  %v4520 = vshrl.u32 %v4519, 7
  %v4521 = vsub.s32 0, %v4520
  %v4522 = vrot.slane %v3512, %v4521
  %v4523 = vlaneseq
  %v4524 = vshrl.u32 %v4523, 7
  %v4525 = vsub.s32 0, %v4524
  %v4526 = vrot.slane %v3514, %v4525
  %v4527 = vlaneseq
  %v4528 = vshrl.u32 %v4527, 7
  %v4529 = vsub.s32 0, %v4528
  %v4530 = vrot.slane %v3516, %v4529
  %v4531 = vlaneseq
  %v4532 = vshrl.u32 %v4531, 7
  %v4533 = vsub.s32 0, %v4532
  %v4534 = vrot.slane %v3518, %v4533
  %v4535 = vlaneseq
  %v4536 = vshrl.u32 %v4535, 7
  %v4537 = vsub.s32 0, %v4536
  %v4538 = vrot.slane %v3520, %v4537
  %v4539 = vlaneseq
  %v4540 = vshrl.u32 %v4539, 7
  %v4541 = vsub.s32 0, %v4540
  %v4542 = vrot.slane %v3522, %v4541
  %v4543 = vlaneseq
  %v4544 = vshrl.u32 %v4543, 7
  %v4545 = vsub.s32 0, %v4544
  %v4546 = vrot.slane %v3524, %v4545
  %v4547 = vlaneseq
  %v4548 = vshrl.u32 %v4547, 7
  %v4549 = vsub.s32 0, %v4548
  %v4550 = vrot.slane %v3526, %v4549
  %v4551 = vlaneseq
  %v4552 = vshrl.u32 %v4551, 7
  %v4553 = vsub.s32 0, %v4552
  %v4554 = vrot.slane %v3528, %v4553
  %v4555 = vlaneseq
  %v4556 = vshrl.u32 %v4555, 7
  %v4557 = vsub.s32 0, %v4556
  %v4558 = vrot.slane %v3530, %v4557
  %v4559 = vlaneseq
  %v4560 = vshrl.u32 %v4559, 7
  %v4561 = vsub.s32 0, %v4560
  %v4562 = vrot.slane %v3532, %v4561
  %v4563 = vlaneseq
  %v4564 = vshrl.u32 %v4563, 7
  %v4565 = vsub.s32 0, %v4564
  %v4566 = vrot.slane %v3534, %v4565
  %v4567 = vlaneseq
  %v4568 = vshrl.u32 %v4567, 7
  %v4569 = vsub.s32 0, %v4568
  %v4570 = vrot.slane %v3536, %v4569
  %v4571 = vlaneseq
  %v4572 = vshrl.u32 %v4571, 7
  %v4573 = vsub.s32 0, %v4572
  %v4574 = vrot.slane %v3538, %v4573
  %v4575 = vlaneseq
  %v4576 = vshrl.u32 %v4575, 7
  %v4577 = vsub.s32 0, %v4576
  %v4578 = vrot.slane %v3540, %v4577
  %v4579 = vlaneseq
  %v4580 = vshrl.u32 %v4579, 7
  %v4581 = vsub.s32 0, %v4580
  %v4582 = vrot.slane %v3542, %v4581
  %v4583 = vlaneseq
  %v4584 = vshrl.u32 %v4583, 7
  %v4585 = vsub.s32 0, %v4584
  %v4586 = vrot.slane %v3544, %v4585
  %v4587 = vlaneseq
  %v4588 = vshrl.u32 %v4587, 7
  %v4589 = vsub.s32 0, %v4588
  %v4590 = vrot.slane %v3546, %v4589
  %v4591 = vlaneseq
  %v4592 = vshrl.u32 %v4591, 7
  %v4593 = vsub.s32 0, %v4592
  %v4594 = vrot.slane %v3548, %v4593
  %v4595 = vlaneseq
  %v4596 = vshrl.u32 %v4595, 7
  %v4597 = vsub.s32 0, %v4596
  %v4598 = vrot.slane %v3550, %v4597
  %v4599 = vlaneseq
  %v4600 = vshrl.u32 %v4599, 7
  %v4601 = vsub.s32 0, %v4600
  %v4602 = vrot.slane %v3552, %v4601
  %v4603 = vlaneseq
  %v4604 = vshrl.u32 %v4603, 7
  %v4605 = vsub.s32 0, %v4604
  %v4606 = vrot.slane %v3554, %v4605
  %v4607 = vlaneseq
  %v4608 = vshrl.u32 %v4607, 7
  %v4609 = vsub.s32 0, %v4608
  %v4610 = vrot.slane %v3556, %v4609
  %v4611 = vlaneseq
  %v4612 = vshrl.u32 %v4611, 7
  %v4613 = vsub.s32 0, %v4612
  %v4614 = vrot.slane %v3558, %v4613
  %v4615 = vlaneseq
  %v4616 = vshrl.u32 %v4615, 7
  %v4617 = vsub.s32 0, %v4616
  %v4618 = vrot.slane %v3560, %v4617
  %v4619 = vlaneseq
  %v4620 = vshrl.u32 %v4619, 7
  %v4621 = vsub.s32 0, %v4620
  %v4622 = vrot.slane %v3562, %v4621
  %v4623 = vlaneseq
  %v4624 = vshrl.u32 %v4623, 7
  %v4625 = vsub.s32 0, %v4624
  %v4626 = vrot.slane %v3564, %v4625
  %v4627 = vlaneseq
  %v4628 = vshrl.u32 %v4627, 7
  %v4629 = vsub.s32 0, %v4628
  %v4630 = vrot.slane %v3566, %v4629
  %v4631 = vlaneseq
  %v4632 = vshrl.u32 %v4631, 7
  %v4633 = vsub.s32 0, %v4632
  %v4634 = vrot.slane %v3568, %v4633
  %v4635 = vlaneseq
  %v4636 = vshrl.u32 %v4635, 7
  %v4637 = vsub.s32 0, %v4636
  %v4638 = vrot.slane %v3570, %v4637
  %v4639 = vlaneseq
  %v4640 = vshrl.u32 %v4639, 7
  %v4641 = vsub.s32 0, %v4640
  %v4642 = vrot.slane %v3572, %v4641
  %v4643 = vlaneseq
  %v4644 = vshrl.u32 %v4643, 7
  %v4645 = vsub.s32 0, %v4644
  %v4646 = vrot.slane %v3574, %v4645
  %v4647 = vlaneseq
  %v4648 = vshrl.u32 %v4647, 7
  %v4649 = vsub.s32 0, %v4648
  %v4650 = vrot.slane %v3576, %v4649
  %v4651 = vlaneseq
  %v4652 = vshrl.u32 %v4651, 7
  %v4653 = vsub.s32 0, %v4652
  %v4654 = vrot.slane %v3578, %v4653
  %v4655 = vlaneseq
  %v4656 = vshrl.u32 %v4655, 7
  %v4657 = vsub.s32 0, %v4656
  %v4658 = vrot.slane %v3580, %v4657
  %v4659 = vlaneseq
  %v4660 = vshrl.u32 %v4659, 7
  %v4661 = vsub.s32 0, %v4660
  %v4662 = vrot.slane %v3582, %v4661
  %v4663 = vlaneseq
  %v4664 = vshrl.u32 %v4663, 7
  %v4665 = vsub.s32 0, %v4664
  %v4666 = vrot.slane %v3584, %v4665
  %v4667 = vlaneseq
  %v4668 = vshrl.u32 %v4667, 7
  %v4669 = vsub.s32 0, %v4668
  %v4670 = vrot.slane %v3586, %v4669
  %v4671 = vlaneseq
  %v4672 = vshrl.u32 %v4671, 7
  %v4673 = vsub.s32 0, %v4672
  %v4674 = vrot.slane %v3588, %v4673
  %v4675 = vlaneseq
  %v4676 = vshrl.u32 %v4675, 7
  %v4677 = vsub.s32 0, %v4676
  %v4678 = vrot.slane %v3590, %v4677
  %v4679 = vlaneseq
  %v4680 = vshrl.u32 %v4679, 7
  %v4681 = vsub.s32 0, %v4680
  %v4682 = vrot.slane %v3592, %v4681
  %v4683 = vlaneseq
  %v4684 = vshrl.u32 %v4683, 7
  %v4685 = vsub.s32 0, %v4684
  %v4686 = vrot.slane %v3594, %v4685
  %v4687 = vlaneseq
  %v4688 = vshrl.u32 %v4687, 7
  %v4689 = vsub.s32 0, %v4688
  %v4690 = vrot.slane %v3596, %v4689
  %v4691 = vlaneseq
  %v4692 = vshrl.u32 %v4691, 7
  %v4693 = vsub.s32 0, %v4692
  %v4694 = vrot.slane %v3598, %v4693
  %v4695 = vlaneseq
  %v4696 = vshrl.u32 %v4695, 7
  %v4697 = vsub.s32 0, %v4696
  %v4698 = vrot.slane %v3600, %v4697
  %v4699 = vlaneseq
  %v4700 = vshrl.u32 %v4699, 7
  %v4701 = vsub.s32 0, %v4700
  %v4702 = vrot.slane %v3602, %v4701
  %v4703 = vmul.f32 %v4130, %v254
  %v4704 = vmul.f32 %v4130, %v255
  %v4705 = vmul.f32 %v4130, %v256
  %v4706 = vmul.f32 %v4130, %v257
  %v4707 = vmul.f32 %v4134, %v258
  %v4708 = vmul.f32 %v4134, %v259
  %v4709 = vmul.f32 %v4134, %v260
  %v4710 = vmul.f32 %v4134, %v261
  %v4711 = vmul.f32 %v4138, %v262
  %v4712 = vmul.f32 %v4138, %v263
  %v4713 = vmul.f32 %v4138, %v264
  %v4714 = vmul.f32 %v4138, %v265
  %v4715 = vmul.f32 %v4142, %v266
  %v4716 = vmul.f32 %v4142, %v267
  %v4717 = vmul.f32 %v4142, %v268
  %v4718 = vmul.f32 %v4142, %v269
  %v4719 = vmul.f32 %v4146, %v270
  %v4720 = vmul.f32 %v4146, %v271
  %v4721 = vmul.f32 %v4146, %v272
  %v4722 = vmul.f32 %v4146, %v273
  %v4723 = vmul.f32 %v4150, %v274
  %v4724 = vmul.f32 %v4150, %v275
  %v4725 = vmul.f32 %v4150, %v276
  %v4726 = vmul.f32 %v4150, %v277
  %v4727 = vmul.f32 %v4154, %v278
  %v4728 = vmul.f32 %v4154, %v279
  %v4729 = vmul.f32 %v4154, %v280
  %v4730 = vmul.f32 %v4154, %v281
  %v4731 = vmul.f32 %v4158, %v282
  %v4732 = vmul.f32 %v4158, %v283
  %v4733 = vmul.f32 %v4158, %v284
  %v4734 = vmul.f32 %v4158, %v285
  %v4735 = vmul.f32 %v4162, %v286
  %v4736 = vmul.f32 %v4162, %v287
  %v4737 = vmul.f32 %v4162, %v288
  %v4738 = vmul.f32 %v4162, %v289
  %v4739 = vmul.f32 %v4166, %v290
  %v4740 = vmul.f32 %v4166, %v291
  %v4741 = vmul.f32 %v4166, %v292
  %v4742 = vmul.f32 %v4166, %v293
  %v4743 = vmul.f32 %v4170, %v294
  %v4744 = vmul.f32 %v4170, %v295
  %v4745 = vmul.f32 %v4170, %v296
  %v4746 = vmul.f32 %v4170, %v297
  %v4747 = vmul.f32 %v4174, %v298
  %v4748 = vmul.f32 %v4174, %v299
  %v4749 = vmul.f32 %v4174, %v300
  %v4750 = vmul.f32 %v4174, %v301
  %v4751 = vmul.f32 %v4178, %v254
  %v4752 = vmul.f32 %v4178, %v255
  %v4753 = vmul.f32 %v4178, %v256
  %v4754 = vmul.f32 %v4178, %v257
  %v4755 = vmul.f32 %v4182, %v258
  %v4756 = vmul.f32 %v4182, %v259
  %v4757 = vmul.f32 %v4182, %v260
  %v4758 = vmul.f32 %v4182, %v261
  %v4759 = vmul.f32 %v4186, %v262
  %v4760 = vmul.f32 %v4186, %v263
  %v4761 = vmul.f32 %v4186, %v264
  %v4762 = vmul.f32 %v4186, %v265
  %v4763 = vmul.f32 %v4190, %v266
  %v4764 = vmul.f32 %v4190, %v267
  %v4765 = vmul.f32 %v4190, %v268
  %v4766 = vmul.f32 %v4190, %v269
  %v4767 = vmul.f32 %v4194, %v270
  %v4768 = vmul.f32 %v4194, %v271
  %v4769 = vmul.f32 %v4194, %v272
  %v4770 = vmul.f32 %v4194, %v273
  %v4771 = vmul.f32 %v4198, %v274
  %v4772 = vmul.f32 %v4198, %v275
  %v4773 = vmul.f32 %v4198, %v276
  %v4774 = vmul.f32 %v4198, %v277
  %v4775 = vmul.f32 %v4202, %v278
  %v4776 = vmul.f32 %v4202, %v279
  %v4777 = vmul.f32 %v4202, %v280
  %v4778 = vmul.f32 %v4202, %v281
  %v4779 = vmul.f32 %v4206, %v282
  %v4780 = vmul.f32 %v4206, %v283
  %v4781 = vmul.f32 %v4206, %v284
  %v4782 = vmul.f32 %v4206, %v285
  %v4783 = vmul.f32 %v4210, %v286
  %v4784 = vmul.f32 %v4210, %v287
  %v4785 = vmul.f32 %v4210, %v288
  %v4786 = vmul.f32 %v4210, %v289
  %v4787 = vmul.f32 %v4214, %v290
  %v4788 = vmul.f32 %v4214, %v291
  %v4789 = vmul.f32 %v4214, %v292
  %v4790 = vmul.f32 %v4214, %v293
  %v4791 = vmul.f32 %v4218, %v294
  %v4792 = vmul.f32 %v4218, %v295
  %v4793 = vmul.f32 %v4218, %v296
  %v4794 = vmul.f32 %v4218, %v297
  %v4795 = vmul.f32 %v4222, %v298
  %v4796 = vmul.f32 %v4222, %v299
  %v4797 = vmul.f32 %v4222, %v300
  %v4798 = vmul.f32 %v4222, %v301
  %v4799 = vmul.f32 %v4226, %v254
  %v4800 = vmul.f32 %v4226, %v255
  %v4801 = vmul.f32 %v4226, %v256
  %v4802 = vmul.f32 %v4226, %v257
  %v4803 = vmul.f32 %v4230, %v258
  %v4804 = vmul.f32 %v4230, %v259
  %v4805 = vmul.f32 %v4230, %v260
  %v4806 = vmul.f32 %v4230, %v261
  %v4807 = vmul.f32 %v4234, %v262
  %v4808 = vmul.f32 %v4234, %v263
  %v4809 = vmul.f32 %v4234, %v264
  %v4810 = vmul.f32 %v4234, %v265
  %v4811 = vmul.f32 %v4238, %v266
  %v4812 = vmul.f32 %v4238, %v267
  %v4813 = vmul.f32 %v4238, %v268
  %v4814 = vmul.f32 %v4238, %v269
  %v4815 = vmul.f32 %v4242, %v270
  %v4816 = vmul.f32 %v4242, %v271
  %v4817 = vmul.f32 %v4242, %v272
  %v4818 = vmul.f32 %v4242, %v273
  %v4819 = vmul.f32 %v4246, %v274
  %v4820 = vmul.f32 %v4246, %v275
  %v4821 = vmul.f32 %v4246, %v276
  %v4822 = vmul.f32 %v4246, %v277
  %v4823 = vmul.f32 %v4250, %v278
  %v4824 = vmul.f32 %v4250, %v279
  %v4825 = vmul.f32 %v4250, %v280
  %v4826 = vmul.f32 %v4250, %v281
  %v4827 = vmul.f32 %v4254, %v282
  %v4828 = vmul.f32 %v4254, %v283
  %v4829 = vmul.f32 %v4254, %v284
  %v4830 = vmul.f32 %v4254, %v285
  %v4831 = vmul.f32 %v4258, %v286
  %v4832 = vmul.f32 %v4258, %v287
  %v4833 = vmul.f32 %v4258, %v288
  %v4834 = vmul.f32 %v4258, %v289
  %v4835 = vmul.f32 %v4262, %v290
  %v4836 = vmul.f32 %v4262, %v291
  %v4837 = vmul.f32 %v4262, %v292
  %v4838 = vmul.f32 %v4262, %v293
  %v4839 = vmul.f32 %v4266, %v294
  %v4840 = vmul.f32 %v4266, %v295
  %v4841 = vmul.f32 %v4266, %v296
  %v4842 = vmul.f32 %v4266, %v297
  %v4843 = vmul.f32 %v4270, %v298
  %v4844 = vmul.f32 %v4270, %v299
  %v4845 = vmul.f32 %v4270, %v300
  %v4846 = vmul.f32 %v4270, %v301
  %v4847 = vmul.f32 %v4274, %v254
  %v4848 = vmul.f32 %v4274, %v255
  %v4849 = vmul.f32 %v4274, %v256
  %v4850 = vmul.f32 %v4274, %v257
  %v4851 = vmul.f32 %v4278, %v258
  %v4852 = vmul.f32 %v4278, %v259
  %v4853 = vmul.f32 %v4278, %v260
  %v4854 = vmul.f32 %v4278, %v261
  %v4855 = vmul.f32 %v4282, %v262
  %v4856 = vmul.f32 %v4282, %v263
  %v4857 = vmul.f32 %v4282, %v264
  %v4858 = vmul.f32 %v4282, %v265
  %v4859 = vmul.f32 %v4286, %v266
  %v4860 = vmul.f32 %v4286, %v267
  %v4861 = vmul.f32 %v4286, %v268
  %v4862 = vmul.f32 %v4286, %v269
  %v4863 = vmul.f32 %v4290, %v270
  %v4864 = vmul.f32 %v4290, %v271
  %v4865 = vmul.f32 %v4290, %v272
  %v4866 = vmul.f32 %v4290, %v273
  %v4867 = vmul.f32 %v4294, %v274
  %v4868 = vmul.f32 %v4294, %v275
  %v4869 = vmul.f32 %v4294, %v276
  %v4870 = vmul.f32 %v4294, %v277
  %v4871 = vmul.f32 %v4298, %v278
  %v4872 = vmul.f32 %v4298, %v279
  %v4873 = vmul.f32 %v4298, %v280
  %v4874 = vmul.f32 %v4298, %v281
  %v4875 = vmul.f32 %v4302, %v282
  %v4876 = vmul.f32 %v4302, %v283
  %v4877 = vmul.f32 %v4302, %v284
  %v4878 = vmul.f32 %v4302, %v285
  %v4879 = vmul.f32 %v4306, %v286
  %v4880 = vmul.f32 %v4306, %v287
  %v4881 = vmul.f32 %v4306, %v288
  %v4882 = vmul.f32 %v4306, %v289
  %v4883 = vmul.f32 %v4310, %v290
  %v4884 = vmul.f32 %v4310, %v291
  %v4885 = vmul.f32 %v4310, %v292
  %v4886 = vmul.f32 %v4310, %v293
  %v4887 = vmul.f32 %v4314, %v294
  %v4888 = vmul.f32 %v4314, %v295
  %v4889 = vmul.f32 %v4314, %v296
  %v4890 = vmul.f32 %v4314, %v297
  %v4891 = vmul.f32 %v4318, %v298
  %v4892 = vmul.f32 %v4318, %v299
  %v4893 = vmul.f32 %v4318, %v300
  %v4894 = vmul.f32 %v4318, %v301
  %v4895 = vmul.f32 %v4322, %v254
  %v4896 = vmul.f32 %v4322, %v255
  %v4897 = vmul.f32 %v4322, %v256
  %v4898 = vmul.f32 %v4322, %v257
  %v4899 = vmul.f32 %v4326, %v258
  %v4900 = vmul.f32 %v4326, %v259
  %v4901 = vmul.f32 %v4326, %v260
  %v4902 = vmul.f32 %v4326, %v261
  %v4903 = vmul.f32 %v4330, %v262
  %v4904 = vmul.f32 %v4330, %v263
  %v4905 = vmul.f32 %v4330, %v264
  %v4906 = vmul.f32 %v4330, %v265
  %v4907 = vmul.f32 %v4334, %v266
  %v4908 = vmul.f32 %v4334, %v267
  %v4909 = vmul.f32 %v4334, %v268
  %v4910 = vmul.f32 %v4334, %v269
  %v4911 = vmul.f32 %v4338, %v270
  %v4912 = vmul.f32 %v4338, %v271
  %v4913 = vmul.f32 %v4338, %v272
  %v4914 = vmul.f32 %v4338, %v273
  %v4915 = vmul.f32 %v4342, %v274
  %v4916 = vmul.f32 %v4342, %v275
  %v4917 = vmul.f32 %v4342, %v276
  %v4918 = vmul.f32 %v4342, %v277
  %v4919 = vmul.f32 %v4346, %v278
  %v4920 = vmul.f32 %v4346, %v279
  %v4921 = vmul.f32 %v4346, %v280
  %v4922 = vmul.f32 %v4346, %v281
  %v4923 = vmul.f32 %v4350, %v282
  %v4924 = vmul.f32 %v4350, %v283
  %v4925 = vmul.f32 %v4350, %v284
  %v4926 = vmul.f32 %v4350, %v285
  %v4927 = vmul.f32 %v4354, %v286
  %v4928 = vmul.f32 %v4354, %v287
  %v4929 = vmul.f32 %v4354, %v288
  %v4930 = vmul.f32 %v4354, %v289
  %v4931 = vmul.f32 %v4358, %v290
  %v4932 = vmul.f32 %v4358, %v291
  %v4933 = vmul.f32 %v4358, %v292
  %v4934 = vmul.f32 %v4358, %v293
  %v4935 = vmul.f32 %v4362, %v294
  %v4936 = vmul.f32 %v4362, %v295
  %v4937 = vmul.f32 %v4362, %v296
  %v4938 = vmul.f32 %v4362, %v297
  %v4939 = vmul.f32 %v4366, %v298
  %v4940 = vmul.f32 %v4366, %v299
  %v4941 = vmul.f32 %v4366, %v300
  %v4942 = vmul.f32 %v4366, %v301
  %v4943 = vmul.f32 %v4370, %v254
  %v4944 = vmul.f32 %v4370, %v255
  %v4945 = vmul.f32 %v4370, %v256
  %v4946 = vmul.f32 %v4370, %v257
  %v4947 = vmul.f32 %v4374, %v258
  %v4948 = vmul.f32 %v4374, %v259
  %v4949 = vmul.f32 %v4374, %v260
  %v4950 = vmul.f32 %v4374, %v261
  %v4951 = vmul.f32 %v4378, %v262
  %v4952 = vmul.f32 %v4378, %v263
  %v4953 = vmul.f32 %v4378, %v264
  %v4954 = vmul.f32 %v4378, %v265
  %v4955 = vmul.f32 %v4382, %v266
  %v4956 = vmul.f32 %v4382, %v267
  %v4957 = vmul.f32 %v4382, %v268
  %v4958 = vmul.f32 %v4382, %v269
  %v4959 = vmul.f32 %v4386, %v270
  %v4960 = vmul.f32 %v4386, %v271
  %v4961 = vmul.f32 %v4386, %v272
  %v4962 = vmul.f32 %v4386, %v273
  %v4963 = vmul.f32 %v4390, %v274
  %v4964 = vmul.f32 %v4390, %v275
  %v4965 = vmul.f32 %v4390, %v276
  %v4966 = vmul.f32 %v4390, %v277
  %v4967 = vmul.f32 %v4394, %v278
  %v4968 = vmul.f32 %v4394, %v279
  %v4969 = vmul.f32 %v4394, %v280
  %v4970 = vmul.f32 %v4394, %v281
  %v4971 = vmul.f32 %v4398, %v282
  %v4972 = vmul.f32 %v4398, %v283
  %v4973 = vmul.f32 %v4398, %v284
  %v4974 = vmul.f32 %v4398, %v285
  %v4975 = vmul.f32 %v4402, %v286
  %v4976 = vmul.f32 %v4402, %v287
  %v4977 = vmul.f32 %v4402, %v288
  %v4978 = vmul.f32 %v4402, %v289
  %v4979 = vmul.f32 %v4406, %v290
  %v4980 = vmul.f32 %v4406, %v291
  %v4981 = vmul.f32 %v4406, %v292
  %v4982 = vmul.f32 %v4406, %v293
  %v4983 = vmul.f32 %v4410, %v294
  %v4984 = vmul.f32 %v4410, %v295
  %v4985 = vmul.f32 %v4410, %v296
  %v4986 = vmul.f32 %v4410, %v297
  %v4987 = vmul.f32 %v4414, %v298
  %v4988 = vmul.f32 %v4414, %v299
  %v4989 = vmul.f32 %v4414, %v300
  %v4990 = vmul.f32 %v4414, %v301
  %v4991 = vmul.f32 %v4418, %v254
  %v4992 = vmul.f32 %v4418, %v255
  %v4993 = vmul.f32 %v4418, %v256
  %v4994 = vmul.f32 %v4418, %v257
  %v4995 = vmul.f32 %v4422, %v258
  %v4996 = vmul.f32 %v4422, %v259
  %v4997 = vmul.f32 %v4422, %v260
  %v4998 = vmul.f32 %v4422, %v261
  %v4999 = vmul.f32 %v4426, %v262
  %v5000 = vmul.f32 %v4426, %v263
  %v5001 = vmul.f32 %v4426, %v264
  %v5002 = vmul.f32 %v4426, %v265
  %v5003 = vmul.f32 %v4430, %v266
  %v5004 = vmul.f32 %v4430, %v267
  %v5005 = vmul.f32 %v4430, %v268
  %v5006 = vmul.f32 %v4430, %v269
  %v5007 = vmul.f32 %v4434, %v270
  %v5008 = vmul.f32 %v4434, %v271
  %v5009 = vmul.f32 %v4434, %v272
  %v5010 = vmul.f32 %v4434, %v273
  %v5011 = vmul.f32 %v4438, %v274
  %v5012 = vmul.f32 %v4438, %v275
  %v5013 = vmul.f32 %v4438, %v276
  %v5014 = vmul.f32 %v4438, %v277
  %v5015 = vmul.f32 %v4442, %v278
  %v5016 = vmul.f32 %v4442, %v279
  %v5017 = vmul.f32 %v4442, %v280
  %v5018 = vmul.f32 %v4442, %v281
  %v5019 = vmul.f32 %v4446, %v282
  %v5020 = vmul.f32 %v4446, %v283
  %v5021 = vmul.f32 %v4446, %v284
  %v5022 = vmul.f32 %v4446, %v285
  %v5023 = vmul.f32 %v4450, %v286
  %v5024 = vmul.f32 %v4450, %v287
  %v5025 = vmul.f32 %v4450, %v288
  %v5026 = vmul.f32 %v4450, %v289
  %v5027 = vmul.f32 %v4454, %v290
  %v5028 = vmul.f32 %v4454, %v291
  %v5029 = vmul.f32 %v4454, %v292
  %v5030 = vmul.f32 %v4454, %v293
  %v5031 = vmul.f32 %v4458, %v294
  %v5032 = vmul.f32 %v4458, %v295
  %v5033 = vmul.f32 %v4458, %v296
  %v5034 = vmul.f32 %v4458, %v297
  %v5035 = vmul.f32 %v4462, %v298
  %v5036 = vmul.f32 %v4462, %v299
  %v5037 = vmul.f32 %v4462, %v300
  %v5038 = vmul.f32 %v4462, %v301
  %v5039 = vmul.f32 %v4466, %v254
  %v5040 = vmul.f32 %v4466, %v255
  %v5041 = vmul.f32 %v4466, %v256
  %v5042 = vmul.f32 %v4466, %v257
  %v5043 = vmul.f32 %v4470, %v258
  %v5044 = vmul.f32 %v4470, %v259
  %v5045 = vmul.f32 %v4470, %v260
  %v5046 = vmul.f32 %v4470, %v261
  %v5047 = vmul.f32 %v4474, %v262
  %v5048 = vmul.f32 %v4474, %v263
  %v5049 = vmul.f32 %v4474, %v264
  %v5050 = vmul.f32 %v4474, %v265
  %v5051 = vmul.f32 %v4478, %v266
  %v5052 = vmul.f32 %v4478, %v267
  %v5053 = vmul.f32 %v4478, %v268
  %v5054 = vmul.f32 %v4478, %v269
  %v5055 = vmul.f32 %v4482, %v270
  %v5056 = vmul.f32 %v4482, %v271
  %v5057 = vmul.f32 %v4482, %v272
  %v5058 = vmul.f32 %v4482, %v273
  %v5059 = vmul.f32 %v4486, %v274
  %v5060 = vmul.f32 %v4486, %v275
  %v5061 = vmul.f32 %v4486, %v276
  %v5062 = vmul.f32 %v4486, %v277
  %v5063 = vmul.f32 %v4490, %v278
  %v5064 = vmul.f32 %v4490, %v279
  %v5065 = vmul.f32 %v4490, %v280
  %v5066 = vmul.f32 %v4490, %v281
  %v5067 = vmul.f32 %v4494, %v282
  %v5068 = vmul.f32 %v4494, %v283
  %v5069 = vmul.f32 %v4494, %v284
  %v5070 = vmul.f32 %v4494, %v285
  %v5071 = vmul.f32 %v4498, %v286
  %v5072 = vmul.f32 %v4498, %v287
  %v5073 = vmul.f32 %v4498, %v288
  %v5074 = vmul.f32 %v4498, %v289
  %v5075 = vmul.f32 %v4502, %v290
  %v5076 = vmul.f32 %v4502, %v291
  %v5077 = vmul.f32 %v4502, %v292
  %v5078 = vmul.f32 %v4502, %v293
  %v5079 = vmul.f32 %v4506, %v294
  %v5080 = vmul.f32 %v4506, %v295
  %v5081 = vmul.f32 %v4506, %v296
  %v5082 = vmul.f32 %v4506, %v297
  %v5083 = vmul.f32 %v4510, %v298
  %v5084 = vmul.f32 %v4510, %v299
  %v5085 = vmul.f32 %v4510, %v300
  %v5086 = vmul.f32 %v4510, %v301
  %v5087 = vmul.f32 %v4514, %v254
  %v5088 = vmul.f32 %v4514, %v255
  %v5089 = vmul.f32 %v4514, %v256
  %v5090 = vmul.f32 %v4514, %v257
  %v5091 = vmul.f32 %v4518, %v258
  %v5092 = vmul.f32 %v4518, %v259
  %v5093 = vmul.f32 %v4518, %v260
  %v5094 = vmul.f32 %v4518, %v261
  %v5095 = vmul.f32 %v4522, %v262
  %v5096 = vmul.f32 %v4522, %v263
  %v5097 = vmul.f32 %v4522, %v264
  %v5098 = vmul.f32 %v4522, %v265
  %v5099 = vmul.f32 %v4526, %v266
  %v5100 = vmul.f32 %v4526, %v267
  %v5101 = vmul.f32 %v4526, %v268
  %v5102 = vmul.f32 %v4526, %v269
  %v5103 = vmul.f32 %v4530, %v270
  %v5104 = vmul.f32 %v4530, %v271
  %v5105 = vmul.f32 %v4530, %v272
  %v5106 = vmul.f32 %v4530, %v273
  %v5107 = vmul.f32 %v4534, %v274
  %v5108 = vmul.f32 %v4534, %v275
  %v5109 = vmul.f32 %v4534, %v276
  %v5110 = vmul.f32 %v4534, %v277
  %v5111 = vmul.f32 %v4538, %v278
  %v5112 = vmul.f32 %v4538, %v279
  %v5113 = vmul.f32 %v4538, %v280
  %v5114 = vmul.f32 %v4538, %v281
  %v5115 = vmul.f32 %v4542, %v282
  %v5116 = vmul.f32 %v4542, %v283
  %v5117 = vmul.f32 %v4542, %v284
  %v5118 = vmul.f32 %v4542, %v285
  %v5119 = vmul.f32 %v4546, %v286
  %v5120 = vmul.f32 %v4546, %v287
  %v5121 = vmul.f32 %v4546, %v288
  %v5122 = vmul.f32 %v4546, %v289
  %v5123 = vmul.f32 %v4550, %v290
  %v5124 = vmul.f32 %v4550, %v291
  %v5125 = vmul.f32 %v4550, %v292
  %v5126 = vmul.f32 %v4550, %v293
  %v5127 = vmul.f32 %v4554, %v294
  %v5128 = vmul.f32 %v4554, %v295
  %v5129 = vmul.f32 %v4554, %v296
  %v5130 = vmul.f32 %v4554, %v297
  %v5131 = vmul.f32 %v4558, %v298
  %v5132 = vmul.f32 %v4558, %v299
  %v5133 = vmul.f32 %v4558, %v300
  %v5134 = vmul.f32 %v4558, %v301
  %v5135 = vmul.f32 %v4562, %v254
  %v5136 = vmul.f32 %v4562, %v255
  %v5137 = vmul.f32 %v4562, %v256
  %v5138 = vmul.f32 %v4562, %v257
  %v5139 = vmul.f32 %v4566, %v258
  %v5140 = vmul.f32 %v4566, %v259
  %v5141 = vmul.f32 %v4566, %v260
  %v5142 = vmul.f32 %v4566, %v261
  %v5143 = vmul.f32 %v4570, %v262
  %v5144 = vmul.f32 %v4570, %v263
  %v5145 = vmul.f32 %v4570, %v264
  %v5146 = vmul.f32 %v4570, %v265
  %v5147 = vmul.f32 %v4574, %v266
  %v5148 = vmul.f32 %v4574, %v267
  %v5149 = vmul.f32 %v4574, %v268
  %v5150 = vmul.f32 %v4574, %v269
  %v5151 = vmul.f32 %v4578, %v270
  %v5152 = vmul.f32 %v4578, %v271
  %v5153 = vmul.f32 %v4578, %v272
  %v5154 = vmul.f32 %v4578, %v273
  %v5155 = vmul.f32 %v4582, %v274
  %v5156 = vmul.f32 %v4582, %v275
  %v5157 = vmul.f32 %v4582, %v276
  %v5158 = vmul.f32 %v4582, %v277
  %v5159 = vmul.f32 %v4586, %v278
  %v5160 = vmul.f32 %v4586, %v279
  %v5161 = vmul.f32 %v4586, %v280
  %v5162 = vmul.f32 %v4586, %v281
  %v5163 = vmul.f32 %v4590, %v282
  %v5164 = vmul.f32 %v4590, %v283
  %v5165 = vmul.f32 %v4590, %v284
  %v5166 = vmul.f32 %v4590, %v285
  %v5167 = vmul.f32 %v4594, %v286
  %v5168 = vmul.f32 %v4594, %v287
  %v5169 = vmul.f32 %v4594, %v288
  %v5170 = vmul.f32 %v4594, %v289
  %v5171 = vmul.f32 %v4598, %v290
  %v5172 = vmul.f32 %v4598, %v291
  %v5173 = vmul.f32 %v4598, %v292
  %v5174 = vmul.f32 %v4598, %v293
  %v5175 = vmul.f32 %v4602, %v294
  %v5176 = vmul.f32 %v4602, %v295
  %v5177 = vmul.f32 %v4602, %v296
  %v5178 = vmul.f32 %v4602, %v297
  %v5179 = vmul.f32 %v4606, %v298
  %v5180 = vmul.f32 %v4606, %v299
  %v5181 = vmul.f32 %v4606, %v300
  %v5182 = vmul.f32 %v4606, %v301
  %v5183 = vmul.f32 %v4610, %v254
  %v5184 = vmul.f32 %v4610, %v255
  %v5185 = vmul.f32 %v4610, %v256
  %v5186 = vmul.f32 %v4610, %v257
  %v5187 = vmul.f32 %v4614, %v258
  %v5188 = vmul.f32 %v4614, %v259
  %v5189 = vmul.f32 %v4614, %v260
  %v5190 = vmul.f32 %v4614, %v261
  %v5191 = vmul.f32 %v4618, %v262
  %v5192 = vmul.f32 %v4618, %v263
  %v5193 = vmul.f32 %v4618, %v264
  %v5194 = vmul.f32 %v4618, %v265
  %v5195 = vmul.f32 %v4622, %v266
  %v5196 = vmul.f32 %v4622, %v267
  %v5197 = vmul.f32 %v4622, %v268
  %v5198 = vmul.f32 %v4622, %v269
  %v5199 = vmul.f32 %v4626, %v270
  %v5200 = vmul.f32 %v4626, %v271
  %v5201 = vmul.f32 %v4626, %v272
  %v5202 = vmul.f32 %v4626, %v273
  %v5203 = vmul.f32 %v4630, %v274
  %v5204 = vmul.f32 %v4630, %v275
  %v5205 = vmul.f32 %v4630, %v276
  %v5206 = vmul.f32 %v4630, %v277
  %v5207 = vmul.f32 %v4634, %v278
  %v5208 = vmul.f32 %v4634, %v279
  %v5209 = vmul.f32 %v4634, %v280
  %v5210 = vmul.f32 %v4634, %v281
  %v5211 = vmul.f32 %v4638, %v282
  %v5212 = vmul.f32 %v4638, %v283
  %v5213 = vmul.f32 %v4638, %v284
  %v5214 = vmul.f32 %v4638, %v285
  %v5215 = vmul.f32 %v4642, %v286
  %v5216 = vmul.f32 %v4642, %v287
  %v5217 = vmul.f32 %v4642, %v288
  %v5218 = vmul.f32 %v4642, %v289
  %v5219 = vmul.f32 %v4646, %v290
  %v5220 = vmul.f32 %v4646, %v291
  %v5221 = vmul.f32 %v4646, %v292
  %v5222 = vmul.f32 %v4646, %v293
  %v5223 = vmul.f32 %v4650, %v294
  %v5224 = vmul.f32 %v4650, %v295
  %v5225 = vmul.f32 %v4650, %v296
  %v5226 = vmul.f32 %v4650, %v297
  %v5227 = vmul.f32 %v4654, %v298
  %v5228 = vmul.f32 %v4654, %v299
  %v5229 = vmul.f32 %v4654, %v300
  %v5230 = vmul.f32 %v4654, %v301
  %v5231 = vmul.f32 %v4658, %v254
  %v5232 = vmul.f32 %v4658, %v255
  %v5233 = vmul.f32 %v4658, %v256
  %v5234 = vmul.f32 %v4658, %v257
  %v5235 = vmul.f32 %v4662, %v258
  %v5236 = vmul.f32 %v4662, %v259
  %v5237 = vmul.f32 %v4662, %v260
  %v5238 = vmul.f32 %v4662, %v261
  %v5239 = vmul.f32 %v4666, %v262
  %v5240 = vmul.f32 %v4666, %v263
  %v5241 = vmul.f32 %v4666, %v264
  %v5242 = vmul.f32 %v4666, %v265
  %v5243 = vmul.f32 %v4670, %v266
  %v5244 = vmul.f32 %v4670, %v267
  %v5245 = vmul.f32 %v4670, %v268
  %v5246 = vmul.f32 %v4670, %v269
  %v5247 = vmul.f32 %v4674, %v270
  %v5248 = vmul.f32 %v4674, %v271
  %v5249 = vmul.f32 %v4674, %v272
  %v5250 = vmul.f32 %v4674, %v273
  %v5251 = vmul.f32 %v4678, %v274
  %v5252 = vmul.f32 %v4678, %v275
  %v5253 = vmul.f32 %v4678, %v276
  %v5254 = vmul.f32 %v4678, %v277
  %v5255 = vmul.f32 %v4682, %v278
  %v5256 = vmul.f32 %v4682, %v279
  %v5257 = vmul.f32 %v4682, %v280
  %v5258 = vmul.f32 %v4682, %v281
  %v5259 = vmul.f32 %v4686, %v282
  %v5260 = vmul.f32 %v4686, %v283
  %v5261 = vmul.f32 %v4686, %v284
  %v5262 = vmul.f32 %v4686, %v285
  %v5263 = vmul.f32 %v4690, %v286
  %v5264 = vmul.f32 %v4690, %v287
  %v5265 = vmul.f32 %v4690, %v288
  %v5266 = vmul.f32 %v4690, %v289
  %v5267 = vmul.f32 %v4694, %v290
  %v5268 = vmul.f32 %v4694, %v291
  %v5269 = vmul.f32 %v4694, %v292
  %v5270 = vmul.f32 %v4694, %v293
  %v5271 = vmul.f32 %v4698, %v294
  %v5272 = vmul.f32 %v4698, %v295
  %v5273 = vmul.f32 %v4698, %v296
  %v5274 = vmul.f32 %v4698, %v297
  %v5275 = vmul.f32 %v4702, %v298
  %v5276 = vmul.f32 %v4702, %v299
  %v5277 = vmul.f32 %v4702, %v300
  %v5278 = vmul.f32 %v4702, %v301
  %v5279 = vsel %vm878, %v4703, 0.0
  %v5280 = vsel %vm878, %v4707, 0.0
  %v5281 = vadd.f32 %v5279, %v5280
  %v5282 = vsel %vm878, %v4711, 0.0
  %v5283 = vadd.f32 %v5281, %v5282
  %v5284 = vsel %vm878, %v4715, 0.0
  %v5285 = vadd.f32 %v5283, %v5284
  %v5286 = vsel %vm878, %v4719, 0.0
  %v5287 = vadd.f32 %v5285, %v5286
  %v5288 = vsel %vm878, %v4723, 0.0
  %v5289 = vadd.f32 %v5287, %v5288
  %v5290 = vsel %vm878, %v4727, 0.0
  %v5291 = vadd.f32 %v5289, %v5290
  %v5292 = vsel %vm878, %v4731, 0.0
  %v5293 = vadd.f32 %v5291, %v5292
  %v5294 = vsel %vm878, %v4735, 0.0
  %v5295 = vadd.f32 %v5293, %v5294
  %v5296 = vsel %vm878, %v4739, 0.0
  %v5297 = vadd.f32 %v5295, %v5296
  %v5298 = vsel %vm878, %v4743, 0.0
  %v5299 = vadd.f32 %v5297, %v5298
  %v5300 = vsel %vm878, %v4747, 0.0
  %v5301 = vadd.f32 %v5299, %v5300
  %v5302 = vsel %vm878, %v4704, 0.0
  %v5303 = vsel %vm878, %v4708, 0.0
  %v5304 = vadd.f32 %v5302, %v5303
  %v5305 = vsel %vm878, %v4712, 0.0
  %v5306 = vadd.f32 %v5304, %v5305
  %v5307 = vsel %vm878, %v4716, 0.0
  %v5308 = vadd.f32 %v5306, %v5307
  %v5309 = vsel %vm878, %v4720, 0.0
  %v5310 = vadd.f32 %v5308, %v5309
  %v5311 = vsel %vm878, %v4724, 0.0
  %v5312 = vadd.f32 %v5310, %v5311
  %v5313 = vsel %vm878, %v4728, 0.0
  %v5314 = vadd.f32 %v5312, %v5313
  %v5315 = vsel %vm878, %v4732, 0.0
  %v5316 = vadd.f32 %v5314, %v5315
  %v5317 = vsel %vm878, %v4736, 0.0
  %v5318 = vadd.f32 %v5316, %v5317
  %v5319 = vsel %vm878, %v4740, 0.0
  %v5320 = vadd.f32 %v5318, %v5319
  %v5321 = vsel %vm878, %v4744, 0.0
  %v5322 = vadd.f32 %v5320, %v5321
  %v5323 = vsel %vm878, %v4748, 0.0
  %v5324 = vadd.f32 %v5322, %v5323
  %v5325 = vsel %vm878, %v4705, 0.0
  %v5326 = vsel %vm878, %v4709, 0.0
  %v5327 = vadd.f32 %v5325, %v5326
  %v5328 = vsel %vm878, %v4713, 0.0
  %v5329 = vadd.f32 %v5327, %v5328
  %v5330 = vsel %vm878, %v4717, 0.0
  %v5331 = vadd.f32 %v5329, %v5330
  %v5332 = vsel %vm878, %v4721, 0.0
  %v5333 = vadd.f32 %v5331, %v5332
  %v5334 = vsel %vm878, %v4725, 0.0
  %v5335 = vadd.f32 %v5333, %v5334
  %v5336 = vsel %vm878, %v4729, 0.0
  %v5337 = vadd.f32 %v5335, %v5336
  %v5338 = vsel %vm878, %v4733, 0.0
  %v5339 = vadd.f32 %v5337, %v5338
  %v5340 = vsel %vm878, %v4737, 0.0
  %v5341 = vadd.f32 %v5339, %v5340
  %v5342 = vsel %vm878, %v4741, 0.0
  %v5343 = vadd.f32 %v5341, %v5342
  %v5344 = vsel %vm878, %v4745, 0.0
  %v5345 = vadd.f32 %v5343, %v5344
  %v5346 = vsel %vm878, %v4749, 0.0
  %v5347 = vadd.f32 %v5345, %v5346
  %v5348 = vsel %vm878, %v4706, 0.0
  %v5349 = vsel %vm878, %v4710, 0.0
  %v5350 = vadd.f32 %v5348, %v5349
  %v5351 = vsel %vm878, %v4714, 0.0
  %v5352 = vadd.f32 %v5350, %v5351
  %v5353 = vsel %vm878, %v4718, 0.0
  %v5354 = vadd.f32 %v5352, %v5353
  %v5355 = vsel %vm878, %v4722, 0.0
  %v5356 = vadd.f32 %v5354, %v5355
  %v5357 = vsel %vm878, %v4726, 0.0
  %v5358 = vadd.f32 %v5356, %v5357
  %v5359 = vsel %vm878, %v4730, 0.0
  %v5360 = vadd.f32 %v5358, %v5359
  %v5361 = vsel %vm878, %v4734, 0.0
  %v5362 = vadd.f32 %v5360, %v5361
  %v5363 = vsel %vm878, %v4738, 0.0
  %v5364 = vadd.f32 %v5362, %v5363
  %v5365 = vsel %vm878, %v4742, 0.0
  %v5366 = vadd.f32 %v5364, %v5365
  %v5367 = vsel %vm878, %v4746, 0.0
  %v5368 = vadd.f32 %v5366, %v5367
  %v5369 = vsel %vm878, %v4750, 0.0
  %v5370 = vadd.f32 %v5368, %v5369
  %v5371 = vsel %vm878, %v4751, 0.0
  %v5372 = vsel %vm878, %v4755, 0.0
  %v5373 = vadd.f32 %v5371, %v5372
  %v5374 = vsel %vm878, %v4759, 0.0
  %v5375 = vadd.f32 %v5373, %v5374
  %v5376 = vsel %vm878, %v4763, 0.0
  %v5377 = vadd.f32 %v5375, %v5376
  %v5378 = vsel %vm878, %v4767, 0.0
  %v5379 = vadd.f32 %v5377, %v5378
  %v5380 = vsel %vm878, %v4771, 0.0
  %v5381 = vadd.f32 %v5379, %v5380
  %v5382 = vsel %vm878, %v4775, 0.0
  %v5383 = vadd.f32 %v5381, %v5382
  %v5384 = vsel %vm878, %v4779, 0.0
  %v5385 = vadd.f32 %v5383, %v5384
  %v5386 = vsel %vm878, %v4783, 0.0
  %v5387 = vadd.f32 %v5385, %v5386
  %v5388 = vsel %vm878, %v4787, 0.0
  %v5389 = vadd.f32 %v5387, %v5388
  %v5390 = vsel %vm878, %v4791, 0.0
  %v5391 = vadd.f32 %v5389, %v5390
  %v5392 = vsel %vm878, %v4795, 0.0
  %v5393 = vadd.f32 %v5391, %v5392
  %v5394 = vsel %vm878, %v4752, 0.0
  %v5395 = vsel %vm878, %v4756, 0.0
  %v5396 = vadd.f32 %v5394, %v5395
  %v5397 = vsel %vm878, %v4760, 0.0
  %v5398 = vadd.f32 %v5396, %v5397
  %v5399 = vsel %vm878, %v4764, 0.0
  %v5400 = vadd.f32 %v5398, %v5399
  %v5401 = vsel %vm878, %v4768, 0.0
  %v5402 = vadd.f32 %v5400, %v5401
  %v5403 = vsel %vm878, %v4772, 0.0
  %v5404 = vadd.f32 %v5402, %v5403
  %v5405 = vsel %vm878, %v4776, 0.0
  %v5406 = vadd.f32 %v5404, %v5405
  %v5407 = vsel %vm878, %v4780, 0.0
  %v5408 = vadd.f32 %v5406, %v5407
  %v5409 = vsel %vm878, %v4784, 0.0
  %v5410 = vadd.f32 %v5408, %v5409
  %v5411 = vsel %vm878, %v4788, 0.0
  %v5412 = vadd.f32 %v5410, %v5411
  %v5413 = vsel %vm878, %v4792, 0.0
  %v5414 = vadd.f32 %v5412, %v5413
  %v5415 = vsel %vm878, %v4796, 0.0
  %v5416 = vadd.f32 %v5414, %v5415
  %v5417 = vsel %vm878, %v4753, 0.0
  %v5418 = vsel %vm878, %v4757, 0.0
  %v5419 = vadd.f32 %v5417, %v5418
  %v5420 = vsel %vm878, %v4761, 0.0
  %v5421 = vadd.f32 %v5419, %v5420
  %v5422 = vsel %vm878, %v4765, 0.0
  %v5423 = vadd.f32 %v5421, %v5422
  %v5424 = vsel %vm878, %v4769, 0.0
  %v5425 = vadd.f32 %v5423, %v5424
  %v5426 = vsel %vm878, %v4773, 0.0
  %v5427 = vadd.f32 %v5425, %v5426
  %v5428 = vsel %vm878, %v4777, 0.0
  %v5429 = vadd.f32 %v5427, %v5428
  %v5430 = vsel %vm878, %v4781, 0.0
  %v5431 = vadd.f32 %v5429, %v5430
  %v5432 = vsel %vm878, %v4785, 0.0
  %v5433 = vadd.f32 %v5431, %v5432
  %v5434 = vsel %vm878, %v4789, 0.0
  %v5435 = vadd.f32 %v5433, %v5434
  %v5436 = vsel %vm878, %v4793, 0.0
  %v5437 = vadd.f32 %v5435, %v5436
  %v5438 = vsel %vm878, %v4797, 0.0
  %v5439 = vadd.f32 %v5437, %v5438
  %v5440 = vsel %vm878, %v4754, 0.0
  %v5441 = vsel %vm878, %v4758, 0.0
  %v5442 = vadd.f32 %v5440, %v5441
  %v5443 = vsel %vm878, %v4762, 0.0
  %v5444 = vadd.f32 %v5442, %v5443
  %v5445 = vsel %vm878, %v4766, 0.0
  %v5446 = vadd.f32 %v5444, %v5445
  %v5447 = vsel %vm878, %v4770, 0.0
  %v5448 = vadd.f32 %v5446, %v5447
  %v5449 = vsel %vm878, %v4774, 0.0
  %v5450 = vadd.f32 %v5448, %v5449
  %v5451 = vsel %vm878, %v4778, 0.0
  %v5452 = vadd.f32 %v5450, %v5451
  %v5453 = vsel %vm878, %v4782, 0.0
  %v5454 = vadd.f32 %v5452, %v5453
  %v5455 = vsel %vm878, %v4786, 0.0
  %v5456 = vadd.f32 %v5454, %v5455
  %v5457 = vsel %vm878, %v4790, 0.0
  %v5458 = vadd.f32 %v5456, %v5457
  %v5459 = vsel %vm878, %v4794, 0.0
  %v5460 = vadd.f32 %v5458, %v5459
  %v5461 = vsel %vm878, %v4798, 0.0
  %v5462 = vadd.f32 %v5460, %v5461
  %v5463 = vsel %vm878, %v4799, 0.0
  %v5464 = vsel %vm878, %v4803, 0.0
  %v5465 = vadd.f32 %v5463, %v5464
  %v5466 = vsel %vm878, %v4807, 0.0
  %v5467 = vadd.f32 %v5465, %v5466
  %v5468 = vsel %vm878, %v4811, 0.0
  %v5469 = vadd.f32 %v5467, %v5468
  %v5470 = vsel %vm878, %v4815, 0.0
  %v5471 = vadd.f32 %v5469, %v5470
  %v5472 = vsel %vm878, %v4819, 0.0
  %v5473 = vadd.f32 %v5471, %v5472
  %v5474 = vsel %vm878, %v4823, 0.0
  %v5475 = vadd.f32 %v5473, %v5474
  %v5476 = vsel %vm878, %v4827, 0.0
  %v5477 = vadd.f32 %v5475, %v5476
  %v5478 = vsel %vm878, %v4831, 0.0
  %v5479 = vadd.f32 %v5477, %v5478
  %v5480 = vsel %vm878, %v4835, 0.0
  %v5481 = vadd.f32 %v5479, %v5480
  %v5482 = vsel %vm878, %v4839, 0.0
  %v5483 = vadd.f32 %v5481, %v5482
  %v5484 = vsel %vm878, %v4843, 0.0
  %v5485 = vadd.f32 %v5483, %v5484
  %v5486 = vsel %vm878, %v4800, 0.0
  %v5487 = vsel %vm878, %v4804, 0.0
  %v5488 = vadd.f32 %v5486, %v5487
  %v5489 = vsel %vm878, %v4808, 0.0
  %v5490 = vadd.f32 %v5488, %v5489
  %v5491 = vsel %vm878, %v4812, 0.0
  %v5492 = vadd.f32 %v5490, %v5491
  %v5493 = vsel %vm878, %v4816, 0.0
  %v5494 = vadd.f32 %v5492, %v5493
  %v5495 = vsel %vm878, %v4820, 0.0
  %v5496 = vadd.f32 %v5494, %v5495
  %v5497 = vsel %vm878, %v4824, 0.0
  %v5498 = vadd.f32 %v5496, %v5497
  %v5499 = vsel %vm878, %v4828, 0.0
  %v5500 = vadd.f32 %v5498, %v5499
  %v5501 = vsel %vm878, %v4832, 0.0
  %v5502 = vadd.f32 %v5500, %v5501
  %v5503 = vsel %vm878, %v4836, 0.0
  %v5504 = vadd.f32 %v5502, %v5503
  %v5505 = vsel %vm878, %v4840, 0.0
  %v5506 = vadd.f32 %v5504, %v5505
  %v5507 = vsel %vm878, %v4844, 0.0
  %v5508 = vadd.f32 %v5506, %v5507
  %v5509 = vsel %vm878, %v4801, 0.0
  %v5510 = vsel %vm878, %v4805, 0.0
  %v5511 = vadd.f32 %v5509, %v5510
  %v5512 = vsel %vm878, %v4809, 0.0
  %v5513 = vadd.f32 %v5511, %v5512
  %v5514 = vsel %vm878, %v4813, 0.0
  %v5515 = vadd.f32 %v5513, %v5514
  %v5516 = vsel %vm878, %v4817, 0.0
  %v5517 = vadd.f32 %v5515, %v5516
  %v5518 = vsel %vm878, %v4821, 0.0
  %v5519 = vadd.f32 %v5517, %v5518
  %v5520 = vsel %vm878, %v4825, 0.0
  %v5521 = vadd.f32 %v5519, %v5520
  %v5522 = vsel %vm878, %v4829, 0.0
  %v5523 = vadd.f32 %v5521, %v5522
  %v5524 = vsel %vm878, %v4833, 0.0
  %v5525 = vadd.f32 %v5523, %v5524
  %v5526 = vsel %vm878, %v4837, 0.0
  %v5527 = vadd.f32 %v5525, %v5526
  %v5528 = vsel %vm878, %v4841, 0.0
  %v5529 = vadd.f32 %v5527, %v5528
  %v5530 = vsel %vm878, %v4845, 0.0
  %v5531 = vadd.f32 %v5529, %v5530
  %v5532 = vsel %vm878, %v4802, 0.0
  %v5533 = vsel %vm878, %v4806, 0.0
  %v5534 = vadd.f32 %v5532, %v5533
  %v5535 = vsel %vm878, %v4810, 0.0
  %v5536 = vadd.f32 %v5534, %v5535
  %v5537 = vsel %vm878, %v4814, 0.0
  %v5538 = vadd.f32 %v5536, %v5537
  %v5539 = vsel %vm878, %v4818, 0.0
  %v5540 = vadd.f32 %v5538, %v5539
  %v5541 = vsel %vm878, %v4822, 0.0
  %v5542 = vadd.f32 %v5540, %v5541
  %v5543 = vsel %vm878, %v4826, 0.0
  %v5544 = vadd.f32 %v5542, %v5543
  %v5545 = vsel %vm878, %v4830, 0.0
  %v5546 = vadd.f32 %v5544, %v5545
  %v5547 = vsel %vm878, %v4834, 0.0
  %v5548 = vadd.f32 %v5546, %v5547
  %v5549 = vsel %vm878, %v4838, 0.0
  %v5550 = vadd.f32 %v5548, %v5549
  %v5551 = vsel %vm878, %v4842, 0.0
  %v5552 = vadd.f32 %v5550, %v5551
  %v5553 = vsel %vm878, %v4846, 0.0
  %v5554 = vadd.f32 %v5552, %v5553
  %v5555 = vsel %vm878, %v4847, 0.0
  %v5556 = vsel %vm878, %v4851, 0.0
  %v5557 = vadd.f32 %v5555, %v5556
  %v5558 = vsel %vm878, %v4855, 0.0
  %v5559 = vadd.f32 %v5557, %v5558
  %v5560 = vsel %vm878, %v4859, 0.0
  %v5561 = vadd.f32 %v5559, %v5560
  %v5562 = vsel %vm878, %v4863, 0.0
  %v5563 = vadd.f32 %v5561, %v5562
  %v5564 = vsel %vm878, %v4867, 0.0
  %v5565 = vadd.f32 %v5563, %v5564
  %v5566 = vsel %vm878, %v4871, 0.0
  %v5567 = vadd.f32 %v5565, %v5566
  %v5568 = vsel %vm878, %v4875, 0.0
  %v5569 = vadd.f32 %v5567, %v5568
  %v5570 = vsel %vm878, %v4879, 0.0
  %v5571 = vadd.f32 %v5569, %v5570
  %v5572 = vsel %vm878, %v4883, 0.0
  %v5573 = vadd.f32 %v5571, %v5572
  %v5574 = vsel %vm878, %v4887, 0.0
  %v5575 = vadd.f32 %v5573, %v5574
  %v5576 = vsel %vm878, %v4891, 0.0
  %v5577 = vadd.f32 %v5575, %v5576
  %v5578 = vsel %vm878, %v4848, 0.0
  %v5579 = vsel %vm878, %v4852, 0.0
  %v5580 = vadd.f32 %v5578, %v5579
  %v5581 = vsel %vm878, %v4856, 0.0
  %v5582 = vadd.f32 %v5580, %v5581
  %v5583 = vsel %vm878, %v4860, 0.0
  %v5584 = vadd.f32 %v5582, %v5583
  %v5585 = vsel %vm878, %v4864, 0.0
  %v5586 = vadd.f32 %v5584, %v5585
  %v5587 = vsel %vm878, %v4868, 0.0
  %v5588 = vadd.f32 %v5586, %v5587
  %v5589 = vsel %vm878, %v4872, 0.0
  %v5590 = vadd.f32 %v5588, %v5589
  %v5591 = vsel %vm878, %v4876, 0.0
  %v5592 = vadd.f32 %v5590, %v5591
  %v5593 = vsel %vm878, %v4880, 0.0
  %v5594 = vadd.f32 %v5592, %v5593
  %v5595 = vsel %vm878, %v4884, 0.0
  %v5596 = vadd.f32 %v5594, %v5595
  %v5597 = vsel %vm878, %v4888, 0.0
  %v5598 = vadd.f32 %v5596, %v5597
  %v5599 = vsel %vm878, %v4892, 0.0
  %v5600 = vadd.f32 %v5598, %v5599
  %v5601 = vsel %vm878, %v4849, 0.0
  %v5602 = vsel %vm878, %v4853, 0.0
  %v5603 = vadd.f32 %v5601, %v5602
  %v5604 = vsel %vm878, %v4857, 0.0
  %v5605 = vadd.f32 %v5603, %v5604
  %v5606 = vsel %vm878, %v4861, 0.0
  %v5607 = vadd.f32 %v5605, %v5606
  %v5608 = vsel %vm878, %v4865, 0.0
  %v5609 = vadd.f32 %v5607, %v5608
  %v5610 = vsel %vm878, %v4869, 0.0
  %v5611 = vadd.f32 %v5609, %v5610
  %v5612 = vsel %vm878, %v4873, 0.0
  %v5613 = vadd.f32 %v5611, %v5612
  %v5614 = vsel %vm878, %v4877, 0.0
  %v5615 = vadd.f32 %v5613, %v5614
  %v5616 = vsel %vm878, %v4881, 0.0
  %v5617 = vadd.f32 %v5615, %v5616
  %v5618 = vsel %vm878, %v4885, 0.0
  %v5619 = vadd.f32 %v5617, %v5618
  %v5620 = vsel %vm878, %v4889, 0.0
  %v5621 = vadd.f32 %v5619, %v5620
  %v5622 = vsel %vm878, %v4893, 0.0
  %v5623 = vadd.f32 %v5621, %v5622
  %v5624 = vsel %vm878, %v4850, 0.0
  %v5625 = vsel %vm878, %v4854, 0.0
  %v5626 = vadd.f32 %v5624, %v5625
  %v5627 = vsel %vm878, %v4858, 0.0
  %v5628 = vadd.f32 %v5626, %v5627
  %v5629 = vsel %vm878, %v4862, 0.0
  %v5630 = vadd.f32 %v5628, %v5629
  %v5631 = vsel %vm878, %v4866, 0.0
  %v5632 = vadd.f32 %v5630, %v5631
  %v5633 = vsel %vm878, %v4870, 0.0
  %v5634 = vadd.f32 %v5632, %v5633
  %v5635 = vsel %vm878, %v4874, 0.0
  %v5636 = vadd.f32 %v5634, %v5635
  %v5637 = vsel %vm878, %v4878, 0.0
  %v5638 = vadd.f32 %v5636, %v5637
  %v5639 = vsel %vm878, %v4882, 0.0
  %v5640 = vadd.f32 %v5638, %v5639
  %v5641 = vsel %vm878, %v4886, 0.0
  %v5642 = vadd.f32 %v5640, %v5641
  %v5643 = vsel %vm878, %v4890, 0.0
  %v5644 = vadd.f32 %v5642, %v5643
  %v5645 = vsel %vm878, %v4894, 0.0
  %v5646 = vadd.f32 %v5644, %v5645
  %v5647 = vsel %vm878, %v4895, 0.0
  %v5648 = vsel %vm878, %v4899, 0.0
  %v5649 = vadd.f32 %v5647, %v5648
  %v5650 = vsel %vm878, %v4903, 0.0
  %v5651 = vadd.f32 %v5649, %v5650
  %v5652 = vsel %vm878, %v4907, 0.0
  %v5653 = vadd.f32 %v5651, %v5652
  %v5654 = vsel %vm878, %v4911, 0.0
  %v5655 = vadd.f32 %v5653, %v5654
  %v5656 = vsel %vm878, %v4915, 0.0
  %v5657 = vadd.f32 %v5655, %v5656
  %v5658 = vsel %vm878, %v4919, 0.0
  %v5659 = vadd.f32 %v5657, %v5658
  %v5660 = vsel %vm878, %v4923, 0.0
  %v5661 = vadd.f32 %v5659, %v5660
  %v5662 = vsel %vm878, %v4927, 0.0
  %v5663 = vadd.f32 %v5661, %v5662
  %v5664 = vsel %vm878, %v4931, 0.0
  %v5665 = vadd.f32 %v5663, %v5664
  %v5666 = vsel %vm878, %v4935, 0.0
  %v5667 = vadd.f32 %v5665, %v5666
  %v5668 = vsel %vm878, %v4939, 0.0
  %v5669 = vadd.f32 %v5667, %v5668
  %v5670 = vsel %vm878, %v4896, 0.0
  %v5671 = vsel %vm878, %v4900, 0.0
  %v5672 = vadd.f32 %v5670, %v5671
  %v5673 = vsel %vm878, %v4904, 0.0
  %v5674 = vadd.f32 %v5672, %v5673
  %v5675 = vsel %vm878, %v4908, 0.0
  %v5676 = vadd.f32 %v5674, %v5675
  %v5677 = vsel %vm878, %v4912, 0.0
  %v5678 = vadd.f32 %v5676, %v5677
  %v5679 = vsel %vm878, %v4916, 0.0
  %v5680 = vadd.f32 %v5678, %v5679
  %v5681 = vsel %vm878, %v4920, 0.0
  %v5682 = vadd.f32 %v5680, %v5681
  %v5683 = vsel %vm878, %v4924, 0.0
  %v5684 = vadd.f32 %v5682, %v5683
  %v5685 = vsel %vm878, %v4928, 0.0
  %v5686 = vadd.f32 %v5684, %v5685
  %v5687 = vsel %vm878, %v4932, 0.0
  %v5688 = vadd.f32 %v5686, %v5687
  %v5689 = vsel %vm878, %v4936, 0.0
  %v5690 = vadd.f32 %v5688, %v5689
  %v5691 = vsel %vm878, %v4940, 0.0
  %v5692 = vadd.f32 %v5690, %v5691
  %v5693 = vsel %vm878, %v4897, 0.0
  %v5694 = vsel %vm878, %v4901, 0.0
  %v5695 = vadd.f32 %v5693, %v5694
  %v5696 = vsel %vm878, %v4905, 0.0
  %v5697 = vadd.f32 %v5695, %v5696
  %v5698 = vsel %vm878, %v4909, 0.0
  %v5699 = vadd.f32 %v5697, %v5698
  %v5700 = vsel %vm878, %v4913, 0.0
  %v5701 = vadd.f32 %v5699, %v5700
  %v5702 = vsel %vm878, %v4917, 0.0
  %v5703 = vadd.f32 %v5701, %v5702
  %v5704 = vsel %vm878, %v4921, 0.0
  %v5705 = vadd.f32 %v5703, %v5704
  %v5706 = vsel %vm878, %v4925, 0.0
  %v5707 = vadd.f32 %v5705, %v5706
  %v5708 = vsel %vm878, %v4929, 0.0
  %v5709 = vadd.f32 %v5707, %v5708
  %v5710 = vsel %vm878, %v4933, 0.0
  %v5711 = vadd.f32 %v5709, %v5710
  %v5712 = vsel %vm878, %v4937, 0.0
  %v5713 = vadd.f32 %v5711, %v5712
  %v5714 = vsel %vm878, %v4941, 0.0
  %v5715 = vadd.f32 %v5713, %v5714
  %v5716 = vsel %vm878, %v4898, 0.0
  %v5717 = vsel %vm878, %v4902, 0.0
  %v5718 = vadd.f32 %v5716, %v5717
  %v5719 = vsel %vm878, %v4906, 0.0
  %v5720 = vadd.f32 %v5718, %v5719
  %v5721 = vsel %vm878, %v4910, 0.0
  %v5722 = vadd.f32 %v5720, %v5721
  %v5723 = vsel %vm878, %v4914, 0.0
  %v5724 = vadd.f32 %v5722, %v5723
  %v5725 = vsel %vm878, %v4918, 0.0
  %v5726 = vadd.f32 %v5724, %v5725
  %v5727 = vsel %vm878, %v4922, 0.0
  %v5728 = vadd.f32 %v5726, %v5727
  %v5729 = vsel %vm878, %v4926, 0.0
  %v5730 = vadd.f32 %v5728, %v5729
  %v5731 = vsel %vm878, %v4930, 0.0
  %v5732 = vadd.f32 %v5730, %v5731
  %v5733 = vsel %vm878, %v4934, 0.0
  %v5734 = vadd.f32 %v5732, %v5733
  %v5735 = vsel %vm878, %v4938, 0.0
  %v5736 = vadd.f32 %v5734, %v5735
  %v5737 = vsel %vm878, %v4942, 0.0
  %v5738 = vadd.f32 %v5736, %v5737
  %v5739 = vsel %vm878, %v4943, 0.0
  %v5740 = vsel %vm878, %v4947, 0.0
  %v5741 = vadd.f32 %v5739, %v5740
  %v5742 = vsel %vm878, %v4951, 0.0
  %v5743 = vadd.f32 %v5741, %v5742
  %v5744 = vsel %vm878, %v4955, 0.0
  %v5745 = vadd.f32 %v5743, %v5744
  %v5746 = vsel %vm878, %v4959, 0.0
  %v5747 = vadd.f32 %v5745, %v5746
  %v5748 = vsel %vm878, %v4963, 0.0
  %v5749 = vadd.f32 %v5747, %v5748
  %v5750 = vsel %vm878, %v4967, 0.0
  %v5751 = vadd.f32 %v5749, %v5750
  %v5752 = vsel %vm878, %v4971, 0.0
  %v5753 = vadd.f32 %v5751, %v5752
  %v5754 = vsel %vm878, %v4975, 0.0
  %v5755 = vadd.f32 %v5753, %v5754
  %v5756 = vsel %vm878, %v4979, 0.0
  %v5757 = vadd.f32 %v5755, %v5756
  %v5758 = vsel %vm878, %v4983, 0.0
  %v5759 = vadd.f32 %v5757, %v5758
  %v5760 = vsel %vm878, %v4987, 0.0
  %v5761 = vadd.f32 %v5759, %v5760
  %v5762 = vsel %vm878, %v4944, 0.0
  %v5763 = vsel %vm878, %v4948, 0.0
  %v5764 = vadd.f32 %v5762, %v5763
  %v5765 = vsel %vm878, %v4952, 0.0
  %v5766 = vadd.f32 %v5764, %v5765
  %v5767 = vsel %vm878, %v4956, 0.0
  %v5768 = vadd.f32 %v5766, %v5767
  %v5769 = vsel %vm878, %v4960, 0.0
  %v5770 = vadd.f32 %v5768, %v5769
  %v5771 = vsel %vm878, %v4964, 0.0
  %v5772 = vadd.f32 %v5770, %v5771
  %v5773 = vsel %vm878, %v4968, 0.0
  %v5774 = vadd.f32 %v5772, %v5773
  %v5775 = vsel %vm878, %v4972, 0.0
  %v5776 = vadd.f32 %v5774, %v5775
  %v5777 = vsel %vm878, %v4976, 0.0
  %v5778 = vadd.f32 %v5776, %v5777
  %v5779 = vsel %vm878, %v4980, 0.0
  %v5780 = vadd.f32 %v5778, %v5779
  %v5781 = vsel %vm878, %v4984, 0.0
  %v5782 = vadd.f32 %v5780, %v5781
  %v5783 = vsel %vm878, %v4988, 0.0
  %v5784 = vadd.f32 %v5782, %v5783
  %v5785 = vsel %vm878, %v4945, 0.0
  %v5786 = vsel %vm878, %v4949, 0.0
  %v5787 = vadd.f32 %v5785, %v5786
  %v5788 = vsel %vm878, %v4953, 0.0
  %v5789 = vadd.f32 %v5787, %v5788
  %v5790 = vsel %vm878, %v4957, 0.0
  %v5791 = vadd.f32 %v5789, %v5790
  %v5792 = vsel %vm878, %v4961, 0.0
  %v5793 = vadd.f32 %v5791, %v5792
  %v5794 = vsel %vm878, %v4965, 0.0
  %v5795 = vadd.f32 %v5793, %v5794
  %v5796 = vsel %vm878, %v4969, 0.0
  %v5797 = vadd.f32 %v5795, %v5796
  %v5798 = vsel %vm878, %v4973, 0.0
  %v5799 = vadd.f32 %v5797, %v5798
  %v5800 = vsel %vm878, %v4977, 0.0
  %v5801 = vadd.f32 %v5799, %v5800
  %v5802 = vsel %vm878, %v4981, 0.0
  %v5803 = vadd.f32 %v5801, %v5802
  %v5804 = vsel %vm878, %v4985, 0.0
  %v5805 = vadd.f32 %v5803, %v5804
  %v5806 = vsel %vm878, %v4989, 0.0
  %v5807 = vadd.f32 %v5805, %v5806
  %v5808 = vsel %vm878, %v4946, 0.0
  %v5809 = vsel %vm878, %v4950, 0.0
  %v5810 = vadd.f32 %v5808, %v5809
  %v5811 = vsel %vm878, %v4954, 0.0
  %v5812 = vadd.f32 %v5810, %v5811
  %v5813 = vsel %vm878, %v4958, 0.0
  %v5814 = vadd.f32 %v5812, %v5813
  %v5815 = vsel %vm878, %v4962, 0.0
  %v5816 = vadd.f32 %v5814, %v5815
  %v5817 = vsel %vm878, %v4966, 0.0
  %v5818 = vadd.f32 %v5816, %v5817
  %v5819 = vsel %vm878, %v4970, 0.0
  %v5820 = vadd.f32 %v5818, %v5819
  %v5821 = vsel %vm878, %v4974, 0.0
  %v5822 = vadd.f32 %v5820, %v5821
  %v5823 = vsel %vm878, %v4978, 0.0
  %v5824 = vadd.f32 %v5822, %v5823
  %v5825 = vsel %vm878, %v4982, 0.0
  %v5826 = vadd.f32 %v5824, %v5825
  %v5827 = vsel %vm878, %v4986, 0.0
  %v5828 = vadd.f32 %v5826, %v5827
  %v5829 = vsel %vm878, %v4990, 0.0
  %v5830 = vadd.f32 %v5828, %v5829
  %v5831 = vsel %vm878, %v4991, 0.0
  %v5832 = vsel %vm878, %v4995, 0.0
  %v5833 = vadd.f32 %v5831, %v5832
  %v5834 = vsel %vm878, %v4999, 0.0
  %v5835 = vadd.f32 %v5833, %v5834
  %v5836 = vsel %vm878, %v5003, 0.0
  %v5837 = vadd.f32 %v5835, %v5836
  %v5838 = vsel %vm878, %v5007, 0.0
  %v5839 = vadd.f32 %v5837, %v5838
  %v5840 = vsel %vm878, %v5011, 0.0
  %v5841 = vadd.f32 %v5839, %v5840
  %v5842 = vsel %vm878, %v5015, 0.0
  %v5843 = vadd.f32 %v5841, %v5842
  %v5844 = vsel %vm878, %v5019, 0.0
  %v5845 = vadd.f32 %v5843, %v5844
  %v5846 = vsel %vm878, %v5023, 0.0
  %v5847 = vadd.f32 %v5845, %v5846
  %v5848 = vsel %vm878, %v5027, 0.0
  %v5849 = vadd.f32 %v5847, %v5848
  %v5850 = vsel %vm878, %v5031, 0.0
  %v5851 = vadd.f32 %v5849, %v5850
  %v5852 = vsel %vm878, %v5035, 0.0
  %v5853 = vadd.f32 %v5851, %v5852
  %v5854 = vsel %vm878, %v4992, 0.0
  %v5855 = vsel %vm878, %v4996, 0.0
  %v5856 = vadd.f32 %v5854, %v5855
  %v5857 = vsel %vm878, %v5000, 0.0
  %v5858 = vadd.f32 %v5856, %v5857
  %v5859 = vsel %vm878, %v5004, 0.0
  %v5860 = vadd.f32 %v5858, %v5859
  %v5861 = vsel %vm878, %v5008, 0.0
  %v5862 = vadd.f32 %v5860, %v5861
  %v5863 = vsel %vm878, %v5012, 0.0
  %v5864 = vadd.f32 %v5862, %v5863
  %v5865 = vsel %vm878, %v5016, 0.0
  %v5866 = vadd.f32 %v5864, %v5865
  %v5867 = vsel %vm878, %v5020, 0.0
  %v5868 = vadd.f32 %v5866, %v5867
  %v5869 = vsel %vm878, %v5024, 0.0
  %v5870 = vadd.f32 %v5868, %v5869
  %v5871 = vsel %vm878, %v5028, 0.0
  %v5872 = vadd.f32 %v5870, %v5871
  %v5873 = vsel %vm878, %v5032, 0.0
  %v5874 = vadd.f32 %v5872, %v5873
  %v5875 = vsel %vm878, %v5036, 0.0
  %v5876 = vadd.f32 %v5874, %v5875
  %v5877 = vsel %vm878, %v4993, 0.0
  %v5878 = vsel %vm878, %v4997, 0.0
  %v5879 = vadd.f32 %v5877, %v5878
  %v5880 = vsel %vm878, %v5001, 0.0
  %v5881 = vadd.f32 %v5879, %v5880
  %v5882 = vsel %vm878, %v5005, 0.0
  %v5883 = vadd.f32 %v5881, %v5882
  %v5884 = vsel %vm878, %v5009, 0.0
  %v5885 = vadd.f32 %v5883, %v5884
  %v5886 = vsel %vm878, %v5013, 0.0
  %v5887 = vadd.f32 %v5885, %v5886
  %v5888 = vsel %vm878, %v5017, 0.0
  %v5889 = vadd.f32 %v5887, %v5888
  %v5890 = vsel %vm878, %v5021, 0.0
  %v5891 = vadd.f32 %v5889, %v5890
  %v5892 = vsel %vm878, %v5025, 0.0
  %v5893 = vadd.f32 %v5891, %v5892
  %v5894 = vsel %vm878, %v5029, 0.0
  %v5895 = vadd.f32 %v5893, %v5894
  %v5896 = vsel %vm878, %v5033, 0.0
  %v5897 = vadd.f32 %v5895, %v5896
  %v5898 = vsel %vm878, %v5037, 0.0
  %v5899 = vadd.f32 %v5897, %v5898
  %v5900 = vsel %vm878, %v4994, 0.0
  %v5901 = vsel %vm878, %v4998, 0.0
  %v5902 = vadd.f32 %v5900, %v5901
  %v5903 = vsel %vm878, %v5002, 0.0
  %v5904 = vadd.f32 %v5902, %v5903
  %v5905 = vsel %vm878, %v5006, 0.0
  %v5906 = vadd.f32 %v5904, %v5905
  %v5907 = vsel %vm878, %v5010, 0.0
  %v5908 = vadd.f32 %v5906, %v5907
  %v5909 = vsel %vm878, %v5014, 0.0
  %v5910 = vadd.f32 %v5908, %v5909
  %v5911 = vsel %vm878, %v5018, 0.0
  %v5912 = vadd.f32 %v5910, %v5911
  %v5913 = vsel %vm878, %v5022, 0.0
  %v5914 = vadd.f32 %v5912, %v5913
  %v5915 = vsel %vm878, %v5026, 0.0
  %v5916 = vadd.f32 %v5914, %v5915
  %v5917 = vsel %vm878, %v5030, 0.0
  %v5918 = vadd.f32 %v5916, %v5917
  %v5919 = vsel %vm878, %v5034, 0.0
  %v5920 = vadd.f32 %v5918, %v5919
  %v5921 = vsel %vm878, %v5038, 0.0
  %v5922 = vadd.f32 %v5920, %v5921
  %v5923 = vsel %vm878, %v5039, 0.0
  %v5924 = vsel %vm878, %v5043, 0.0
  %v5925 = vadd.f32 %v5923, %v5924
  %v5926 = vsel %vm878, %v5047, 0.0
  %v5927 = vadd.f32 %v5925, %v5926
  %v5928 = vsel %vm878, %v5051, 0.0
  %v5929 = vadd.f32 %v5927, %v5928
  %v5930 = vsel %vm878, %v5055, 0.0
  %v5931 = vadd.f32 %v5929, %v5930
  %v5932 = vsel %vm878, %v5059, 0.0
  %v5933 = vadd.f32 %v5931, %v5932
  %v5934 = vsel %vm878, %v5063, 0.0
  %v5935 = vadd.f32 %v5933, %v5934
  %v5936 = vsel %vm878, %v5067, 0.0
  %v5937 = vadd.f32 %v5935, %v5936
  %v5938 = vsel %vm878, %v5071, 0.0
  %v5939 = vadd.f32 %v5937, %v5938
  %v5940 = vsel %vm878, %v5075, 0.0
  %v5941 = vadd.f32 %v5939, %v5940
  %v5942 = vsel %vm878, %v5079, 0.0
  %v5943 = vadd.f32 %v5941, %v5942
  %v5944 = vsel %vm878, %v5083, 0.0
  %v5945 = vadd.f32 %v5943, %v5944
  %v5946 = vsel %vm878, %v5040, 0.0
  %v5947 = vsel %vm878, %v5044, 0.0
  %v5948 = vadd.f32 %v5946, %v5947
  %v5949 = vsel %vm878, %v5048, 0.0
  %v5950 = vadd.f32 %v5948, %v5949
  %v5951 = vsel %vm878, %v5052, 0.0
  %v5952 = vadd.f32 %v5950, %v5951
  %v5953 = vsel %vm878, %v5056, 0.0
  %v5954 = vadd.f32 %v5952, %v5953
  %v5955 = vsel %vm878, %v5060, 0.0
  %v5956 = vadd.f32 %v5954, %v5955
  %v5957 = vsel %vm878, %v5064, 0.0
  %v5958 = vadd.f32 %v5956, %v5957
  %v5959 = vsel %vm878, %v5068, 0.0
  %v5960 = vadd.f32 %v5958, %v5959
  %v5961 = vsel %vm878, %v5072, 0.0
  %v5962 = vadd.f32 %v5960, %v5961
  %v5963 = vsel %vm878, %v5076, 0.0
  %v5964 = vadd.f32 %v5962, %v5963
  %v5965 = vsel %vm878, %v5080, 0.0
  %v5966 = vadd.f32 %v5964, %v5965
  %v5967 = vsel %vm878, %v5084, 0.0
  %v5968 = vadd.f32 %v5966, %v5967
  %v5969 = vsel %vm878, %v5041, 0.0
  %v5970 = vsel %vm878, %v5045, 0.0
  %v5971 = vadd.f32 %v5969, %v5970
  %v5972 = vsel %vm878, %v5049, 0.0
  %v5973 = vadd.f32 %v5971, %v5972
  %v5974 = vsel %vm878, %v5053, 0.0
  %v5975 = vadd.f32 %v5973, %v5974
  %v5976 = vsel %vm878, %v5057, 0.0
  %v5977 = vadd.f32 %v5975, %v5976
  %v5978 = vsel %vm878, %v5061, 0.0
  %v5979 = vadd.f32 %v5977, %v5978
  %v5980 = vsel %vm878, %v5065, 0.0
  %v5981 = vadd.f32 %v5979, %v5980
  %v5982 = vsel %vm878, %v5069, 0.0
  %v5983 = vadd.f32 %v5981, %v5982
  %v5984 = vsel %vm878, %v5073, 0.0
  %v5985 = vadd.f32 %v5983, %v5984
  %v5986 = vsel %vm878, %v5077, 0.0
  %v5987 = vadd.f32 %v5985, %v5986
  %v5988 = vsel %vm878, %v5081, 0.0
  %v5989 = vadd.f32 %v5987, %v5988
  %v5990 = vsel %vm878, %v5085, 0.0
  %v5991 = vadd.f32 %v5989, %v5990
  %v5992 = vsel %vm878, %v5042, 0.0
  %v5993 = vsel %vm878, %v5046, 0.0
  %v5994 = vadd.f32 %v5992, %v5993
  %v5995 = vsel %vm878, %v5050, 0.0
  %v5996 = vadd.f32 %v5994, %v5995
  %v5997 = vsel %vm878, %v5054, 0.0
  %v5998 = vadd.f32 %v5996, %v5997
  %v5999 = vsel %vm878, %v5058, 0.0
  %v6000 = vadd.f32 %v5998, %v5999
  %v6001 = vsel %vm878, %v5062, 0.0
  %v6002 = vadd.f32 %v6000, %v6001
  %v6003 = vsel %vm878, %v5066, 0.0
  %v6004 = vadd.f32 %v6002, %v6003
  %v6005 = vsel %vm878, %v5070, 0.0
  %v6006 = vadd.f32 %v6004, %v6005
  %v6007 = vsel %vm878, %v5074, 0.0
  %v6008 = vadd.f32 %v6006, %v6007
  %v6009 = vsel %vm878, %v5078, 0.0
  %v6010 = vadd.f32 %v6008, %v6009
  %v6011 = vsel %vm878, %v5082, 0.0
  %v6012 = vadd.f32 %v6010, %v6011
  %v6013 = vsel %vm878, %v5086, 0.0
  %v6014 = vadd.f32 %v6012, %v6013
  %v6015 = vsel %vm878, %v5087, 0.0
  %v6016 = vsel %vm878, %v5091, 0.0
  %v6017 = vadd.f32 %v6015, %v6016
  %v6018 = vsel %vm878, %v5095, 0.0
  %v6019 = vadd.f32 %v6017, %v6018
  %v6020 = vsel %vm878, %v5099, 0.0
  %v6021 = vadd.f32 %v6019, %v6020
  %v6022 = vsel %vm878, %v5103, 0.0
  %v6023 = vadd.f32 %v6021, %v6022
  %v6024 = vsel %vm878, %v5107, 0.0
  %v6025 = vadd.f32 %v6023, %v6024
  %v6026 = vsel %vm878, %v5111, 0.0
  %v6027 = vadd.f32 %v6025, %v6026
  %v6028 = vsel %vm878, %v5115, 0.0
  %v6029 = vadd.f32 %v6027, %v6028
  %v6030 = vsel %vm878, %v5119, 0.0
  %v6031 = vadd.f32 %v6029, %v6030
  %v6032 = vsel %vm878, %v5123, 0.0
  %v6033 = vadd.f32 %v6031, %v6032
  %v6034 = vsel %vm878, %v5127, 0.0
  %v6035 = vadd.f32 %v6033, %v6034
  %v6036 = vsel %vm878, %v5131, 0.0
  %v6037 = vadd.f32 %v6035, %v6036
  %v6038 = vsel %vm878, %v5088, 0.0
  %v6039 = vsel %vm878, %v5092, 0.0
  %v6040 = vadd.f32 %v6038, %v6039
  %v6041 = vsel %vm878, %v5096, 0.0
  %v6042 = vadd.f32 %v6040, %v6041
  %v6043 = vsel %vm878, %v5100, 0.0
  %v6044 = vadd.f32 %v6042, %v6043
  %v6045 = vsel %vm878, %v5104, 0.0
  %v6046 = vadd.f32 %v6044, %v6045
  %v6047 = vsel %vm878, %v5108, 0.0
  %v6048 = vadd.f32 %v6046, %v6047
  %v6049 = vsel %vm878, %v5112, 0.0
  %v6050 = vadd.f32 %v6048, %v6049
  %v6051 = vsel %vm878, %v5116, 0.0
  %v6052 = vadd.f32 %v6050, %v6051
  %v6053 = vsel %vm878, %v5120, 0.0
  %v6054 = vadd.f32 %v6052, %v6053
  %v6055 = vsel %vm878, %v5124, 0.0
  %v6056 = vadd.f32 %v6054, %v6055
  %v6057 = vsel %vm878, %v5128, 0.0
  %v6058 = vadd.f32 %v6056, %v6057
  %v6059 = vsel %vm878, %v5132, 0.0
  %v6060 = vadd.f32 %v6058, %v6059
  %v6061 = vsel %vm878, %v5089, 0.0
  %v6062 = vsel %vm878, %v5093, 0.0
  %v6063 = vadd.f32 %v6061, %v6062
  %v6064 = vsel %vm878, %v5097, 0.0
  %v6065 = vadd.f32 %v6063, %v6064
  %v6066 = vsel %vm878, %v5101, 0.0
  %v6067 = vadd.f32 %v6065, %v6066
  %v6068 = vsel %vm878, %v5105, 0.0
  %v6069 = vadd.f32 %v6067, %v6068
  %v6070 = vsel %vm878, %v5109, 0.0
  %v6071 = vadd.f32 %v6069, %v6070
  %v6072 = vsel %vm878, %v5113, 0.0
  %v6073 = vadd.f32 %v6071, %v6072
  %v6074 = vsel %vm878, %v5117, 0.0
  %v6075 = vadd.f32 %v6073, %v6074
  %v6076 = vsel %vm878, %v5121, 0.0
  %v6077 = vadd.f32 %v6075, %v6076
  %v6078 = vsel %vm878, %v5125, 0.0
  %v6079 = vadd.f32 %v6077, %v6078
  %v6080 = vsel %vm878, %v5129, 0.0
  %v6081 = vadd.f32 %v6079, %v6080
  %v6082 = vsel %vm878, %v5133, 0.0
  %v6083 = vadd.f32 %v6081, %v6082
  %v6084 = vsel %vm878, %v5090, 0.0
  %v6085 = vsel %vm878, %v5094, 0.0
  %v6086 = vadd.f32 %v6084, %v6085
  %v6087 = vsel %vm878, %v5098, 0.0
  %v6088 = vadd.f32 %v6086, %v6087
  %v6089 = vsel %vm878, %v5102, 0.0
  %v6090 = vadd.f32 %v6088, %v6089
  %v6091 = vsel %vm878, %v5106, 0.0
  %v6092 = vadd.f32 %v6090, %v6091
  %v6093 = vsel %vm878, %v5110, 0.0
  %v6094 = vadd.f32 %v6092, %v6093
  %v6095 = vsel %vm878, %v5114, 0.0
  %v6096 = vadd.f32 %v6094, %v6095
  %v6097 = vsel %vm878, %v5118, 0.0
  %v6098 = vadd.f32 %v6096, %v6097
  %v6099 = vsel %vm878, %v5122, 0.0
  %v6100 = vadd.f32 %v6098, %v6099
  %v6101 = vsel %vm878, %v5126, 0.0
  %v6102 = vadd.f32 %v6100, %v6101
  %v6103 = vsel %vm878, %v5130, 0.0
  %v6104 = vadd.f32 %v6102, %v6103
  %v6105 = vsel %vm878, %v5134, 0.0
  %v6106 = vadd.f32 %v6104, %v6105
  %v6107 = vsel %vm878, %v5135, 0.0
  %v6108 = vsel %vm878, %v5139, 0.0
  %v6109 = vadd.f32 %v6107, %v6108
  %v6110 = vsel %vm878, %v5143, 0.0
  %v6111 = vadd.f32 %v6109, %v6110
  %v6112 = vsel %vm878, %v5147, 0.0
  %v6113 = vadd.f32 %v6111, %v6112
  %v6114 = vsel %vm878, %v5151, 0.0
  %v6115 = vadd.f32 %v6113, %v6114
  %v6116 = vsel %vm878, %v5155, 0.0
  %v6117 = vadd.f32 %v6115, %v6116
  %v6118 = vsel %vm878, %v5159, 0.0
  %v6119 = vadd.f32 %v6117, %v6118
  %v6120 = vsel %vm878, %v5163, 0.0
  %v6121 = vadd.f32 %v6119, %v6120
  %v6122 = vsel %vm878, %v5167, 0.0
  %v6123 = vadd.f32 %v6121, %v6122
  %v6124 = vsel %vm878, %v5171, 0.0
  %v6125 = vadd.f32 %v6123, %v6124
  %v6126 = vsel %vm878, %v5175, 0.0
  %v6127 = vadd.f32 %v6125, %v6126
  %v6128 = vsel %vm878, %v5179, 0.0
  %v6129 = vadd.f32 %v6127, %v6128
  %v6130 = vsel %vm878, %v5136, 0.0
  %v6131 = vsel %vm878, %v5140, 0.0
  %v6132 = vadd.f32 %v6130, %v6131
  %v6133 = vsel %vm878, %v5144, 0.0
  %v6134 = vadd.f32 %v6132, %v6133
  %v6135 = vsel %vm878, %v5148, 0.0
  %v6136 = vadd.f32 %v6134, %v6135
  %v6137 = vsel %vm878, %v5152, 0.0
  %v6138 = vadd.f32 %v6136, %v6137
  %v6139 = vsel %vm878, %v5156, 0.0
  %v6140 = vadd.f32 %v6138, %v6139
  %v6141 = vsel %vm878, %v5160, 0.0
  %v6142 = vadd.f32 %v6140, %v6141
  %v6143 = vsel %vm878, %v5164, 0.0
  %v6144 = vadd.f32 %v6142, %v6143
  %v6145 = vsel %vm878, %v5168, 0.0
  %v6146 = vadd.f32 %v6144, %v6145
  %v6147 = vsel %vm878, %v5172, 0.0
  %v6148 = vadd.f32 %v6146, %v6147
  %v6149 = vsel %vm878, %v5176, 0.0
  %v6150 = vadd.f32 %v6148, %v6149
  %v6151 = vsel %vm878, %v5180, 0.0
  %v6152 = vadd.f32 %v6150, %v6151
  %v6153 = vsel %vm878, %v5137, 0.0
  %v6154 = vsel %vm878, %v5141, 0.0
  %v6155 = vadd.f32 %v6153, %v6154
  %v6156 = vsel %vm878, %v5145, 0.0
  %v6157 = vadd.f32 %v6155, %v6156
  %v6158 = vsel %vm878, %v5149, 0.0
  %v6159 = vadd.f32 %v6157, %v6158
  %v6160 = vsel %vm878, %v5153, 0.0
  %v6161 = vadd.f32 %v6159, %v6160
  %v6162 = vsel %vm878, %v5157, 0.0
  %v6163 = vadd.f32 %v6161, %v6162
  %v6164 = vsel %vm878, %v5161, 0.0
  %v6165 = vadd.f32 %v6163, %v6164
  %v6166 = vsel %vm878, %v5165, 0.0
  %v6167 = vadd.f32 %v6165, %v6166
  %v6168 = vsel %vm878, %v5169, 0.0
  %v6169 = vadd.f32 %v6167, %v6168
  %v6170 = vsel %vm878, %v5173, 0.0
  %v6171 = vadd.f32 %v6169, %v6170
  %v6172 = vsel %vm878, %v5177, 0.0
  %v6173 = vadd.f32 %v6171, %v6172
  %v6174 = vsel %vm878, %v5181, 0.0
  %v6175 = vadd.f32 %v6173, %v6174
  %v6176 = vsel %vm878, %v5138, 0.0
  %v6177 = vsel %vm878, %v5142, 0.0
  %v6178 = vadd.f32 %v6176, %v6177
  %v6179 = vsel %vm878, %v5146, 0.0
  %v6180 = vadd.f32 %v6178, %v6179
  %v6181 = vsel %vm878, %v5150, 0.0
  %v6182 = vadd.f32 %v6180, %v6181
  %v6183 = vsel %vm878, %v5154, 0.0
  %v6184 = vadd.f32 %v6182, %v6183
  %v6185 = vsel %vm878, %v5158, 0.0
  %v6186 = vadd.f32 %v6184, %v6185
  %v6187 = vsel %vm878, %v5162, 0.0
  %v6188 = vadd.f32 %v6186, %v6187
  %v6189 = vsel %vm878, %v5166, 0.0
  %v6190 = vadd.f32 %v6188, %v6189
  %v6191 = vsel %vm878, %v5170, 0.0
  %v6192 = vadd.f32 %v6190, %v6191
  %v6193 = vsel %vm878, %v5174, 0.0
  %v6194 = vadd.f32 %v6192, %v6193
  %v6195 = vsel %vm878, %v5178, 0.0
  %v6196 = vadd.f32 %v6194, %v6195
  %v6197 = vsel %vm878, %v5182, 0.0
  %v6198 = vadd.f32 %v6196, %v6197
  %v6199 = vsel %vm878, %v5183, 0.0
  %v6200 = vsel %vm878, %v5187, 0.0
  %v6201 = vadd.f32 %v6199, %v6200
  %v6202 = vsel %vm878, %v5191, 0.0
  %v6203 = vadd.f32 %v6201, %v6202
  %v6204 = vsel %vm878, %v5195, 0.0
  %v6205 = vadd.f32 %v6203, %v6204
  %v6206 = vsel %vm878, %v5199, 0.0
  %v6207 = vadd.f32 %v6205, %v6206
  %v6208 = vsel %vm878, %v5203, 0.0
  %v6209 = vadd.f32 %v6207, %v6208
  %v6210 = vsel %vm878, %v5207, 0.0
  %v6211 = vadd.f32 %v6209, %v6210
  %v6212 = vsel %vm878, %v5211, 0.0
  %v6213 = vadd.f32 %v6211, %v6212
  %v6214 = vsel %vm878, %v5215, 0.0
  %v6215 = vadd.f32 %v6213, %v6214
  %v6216 = vsel %vm878, %v5219, 0.0
  %v6217 = vadd.f32 %v6215, %v6216
  %v6218 = vsel %vm878, %v5223, 0.0
  %v6219 = vadd.f32 %v6217, %v6218
  %v6220 = vsel %vm878, %v5227, 0.0
  %v6221 = vadd.f32 %v6219, %v6220
  %v6222 = vsel %vm878, %v5184, 0.0
  %v6223 = vsel %vm878, %v5188, 0.0
  %v6224 = vadd.f32 %v6222, %v6223
  %v6225 = vsel %vm878, %v5192, 0.0
  %v6226 = vadd.f32 %v6224, %v6225
  %v6227 = vsel %vm878, %v5196, 0.0
  %v6228 = vadd.f32 %v6226, %v6227
  %v6229 = vsel %vm878, %v5200, 0.0
  %v6230 = vadd.f32 %v6228, %v6229
  %v6231 = vsel %vm878, %v5204, 0.0
  %v6232 = vadd.f32 %v6230, %v6231
  %v6233 = vsel %vm878, %v5208, 0.0
  %v6234 = vadd.f32 %v6232, %v6233
  %v6235 = vsel %vm878, %v5212, 0.0
  %v6236 = vadd.f32 %v6234, %v6235
  %v6237 = vsel %vm878, %v5216, 0.0
  %v6238 = vadd.f32 %v6236, %v6237
  %v6239 = vsel %vm878, %v5220, 0.0
  %v6240 = vadd.f32 %v6238, %v6239
  %v6241 = vsel %vm878, %v5224, 0.0
  %v6242 = vadd.f32 %v6240, %v6241
  %v6243 = vsel %vm878, %v5228, 0.0
  %v6244 = vadd.f32 %v6242, %v6243
  %v6245 = vsel %vm878, %v5185, 0.0
  %v6246 = vsel %vm878, %v5189, 0.0
  %v6247 = vadd.f32 %v6245, %v6246
  %v6248 = vsel %vm878, %v5193, 0.0
  %v6249 = vadd.f32 %v6247, %v6248
  %v6250 = vsel %vm878, %v5197, 0.0
  %v6251 = vadd.f32 %v6249, %v6250
  %v6252 = vsel %vm878, %v5201, 0.0
  %v6253 = vadd.f32 %v6251, %v6252
  %v6254 = vsel %vm878, %v5205, 0.0
  %v6255 = vadd.f32 %v6253, %v6254
  %v6256 = vsel %vm878, %v5209, 0.0
  %v6257 = vadd.f32 %v6255, %v6256
  %v6258 = vsel %vm878, %v5213, 0.0
  %v6259 = vadd.f32 %v6257, %v6258
  %v6260 = vsel %vm878, %v5217, 0.0
  %v6261 = vadd.f32 %v6259, %v6260
  %v6262 = vsel %vm878, %v5221, 0.0
  %v6263 = vadd.f32 %v6261, %v6262
  %v6264 = vsel %vm878, %v5225, 0.0
  %v6265 = vadd.f32 %v6263, %v6264
  %v6266 = vsel %vm878, %v5229, 0.0
  %v6267 = vadd.f32 %v6265, %v6266
  %v6268 = vsel %vm878, %v5186, 0.0
  %v6269 = vsel %vm878, %v5190, 0.0
  %v6270 = vadd.f32 %v6268, %v6269
  %v6271 = vsel %vm878, %v5194, 0.0
  %v6272 = vadd.f32 %v6270, %v6271
  %v6273 = vsel %vm878, %v5198, 0.0
  %v6274 = vadd.f32 %v6272, %v6273
  %v6275 = vsel %vm878, %v5202, 0.0
  %v6276 = vadd.f32 %v6274, %v6275
  %v6277 = vsel %vm878, %v5206, 0.0
  %v6278 = vadd.f32 %v6276, %v6277
  %v6279 = vsel %vm878, %v5210, 0.0
  %v6280 = vadd.f32 %v6278, %v6279
  %v6281 = vsel %vm878, %v5214, 0.0
  %v6282 = vadd.f32 %v6280, %v6281
  %v6283 = vsel %vm878, %v5218, 0.0
  %v6284 = vadd.f32 %v6282, %v6283
  %v6285 = vsel %vm878, %v5222, 0.0
  %v6286 = vadd.f32 %v6284, %v6285
  %v6287 = vsel %vm878, %v5226, 0.0
  %v6288 = vadd.f32 %v6286, %v6287
  %v6289 = vsel %vm878, %v5230, 0.0
  %v6290 = vadd.f32 %v6288, %v6289
  %v6291 = vsel %vm878, %v5231, 0.0
  %v6292 = vsel %vm878, %v5235, 0.0
  %v6293 = vadd.f32 %v6291, %v6292
  %v6294 = vsel %vm878, %v5239, 0.0
  %v6295 = vadd.f32 %v6293, %v6294
  %v6296 = vsel %vm878, %v5243, 0.0
  %v6297 = vadd.f32 %v6295, %v6296
  %v6298 = vsel %vm878, %v5247, 0.0
  %v6299 = vadd.f32 %v6297, %v6298
  %v6300 = vsel %vm878, %v5251, 0.0
  %v6301 = vadd.f32 %v6299, %v6300
  %v6302 = vsel %vm878, %v5255, 0.0
  %v6303 = vadd.f32 %v6301, %v6302
  %v6304 = vsel %vm878, %v5259, 0.0
  %v6305 = vadd.f32 %v6303, %v6304
  %v6306 = vsel %vm878, %v5263, 0.0
  %v6307 = vadd.f32 %v6305, %v6306
  %v6308 = vsel %vm878, %v5267, 0.0
  %v6309 = vadd.f32 %v6307, %v6308
  %v6310 = vsel %vm878, %v5271, 0.0
  %v6311 = vadd.f32 %v6309, %v6310
  %v6312 = vsel %vm878, %v5275, 0.0
  %v6313 = vadd.f32 %v6311, %v6312
  %v6314 = vsel %vm878, %v5232, 0.0
  %v6315 = vsel %vm878, %v5236, 0.0
  %v6316 = vadd.f32 %v6314, %v6315
  %v6317 = vsel %vm878, %v5240, 0.0
  %v6318 = vadd.f32 %v6316, %v6317
  %v6319 = vsel %vm878, %v5244, 0.0
  %v6320 = vadd.f32 %v6318, %v6319
  %v6321 = vsel %vm878, %v5248, 0.0
  %v6322 = vadd.f32 %v6320, %v6321
  %v6323 = vsel %vm878, %v5252, 0.0
  %v6324 = vadd.f32 %v6322, %v6323
  %v6325 = vsel %vm878, %v5256, 0.0
  %v6326 = vadd.f32 %v6324, %v6325
  %v6327 = vsel %vm878, %v5260, 0.0
  %v6328 = vadd.f32 %v6326, %v6327
  %v6329 = vsel %vm878, %v5264, 0.0
  %v6330 = vadd.f32 %v6328, %v6329
  %v6331 = vsel %vm878, %v5268, 0.0
  %v6332 = vadd.f32 %v6330, %v6331
  %v6333 = vsel %vm878, %v5272, 0.0
  %v6334 = vadd.f32 %v6332, %v6333
  %v6335 = vsel %vm878, %v5276, 0.0
  %v6336 = vadd.f32 %v6334, %v6335
  %v6337 = vsel %vm878, %v5233, 0.0
  %v6338 = vsel %vm878, %v5237, 0.0
  %v6339 = vadd.f32 %v6337, %v6338
  %v6340 = vsel %vm878, %v5241, 0.0
  %v6341 = vadd.f32 %v6339, %v6340
  %v6342 = vsel %vm878, %v5245, 0.0
  %v6343 = vadd.f32 %v6341, %v6342
  %v6344 = vsel %vm878, %v5249, 0.0
  %v6345 = vadd.f32 %v6343, %v6344
  %v6346 = vsel %vm878, %v5253, 0.0
  %v6347 = vadd.f32 %v6345, %v6346
  %v6348 = vsel %vm878, %v5257, 0.0
  %v6349 = vadd.f32 %v6347, %v6348
  %v6350 = vsel %vm878, %v5261, 0.0
  %v6351 = vadd.f32 %v6349, %v6350
  %v6352 = vsel %vm878, %v5265, 0.0
  %v6353 = vadd.f32 %v6351, %v6352
  %v6354 = vsel %vm878, %v5269, 0.0
  %v6355 = vadd.f32 %v6353, %v6354
  %v6356 = vsel %vm878, %v5273, 0.0
  %v6357 = vadd.f32 %v6355, %v6356
  %v6358 = vsel %vm878, %v5277, 0.0
  %v6359 = vadd.f32 %v6357, %v6358
  %v6360 = vsel %vm878, %v5234, 0.0
  %v6361 = vsel %vm878, %v5238, 0.0
  %v6362 = vadd.f32 %v6360, %v6361
  %v6363 = vsel %vm878, %v5242, 0.0
  %v6364 = vadd.f32 %v6362, %v6363
  %v6365 = vsel %vm878, %v5246, 0.0
  %v6366 = vadd.f32 %v6364, %v6365
  %v6367 = vsel %vm878, %v5250, 0.0
  %v6368 = vadd.f32 %v6366, %v6367
  %v6369 = vsel %vm878, %v5254, 0.0
  %v6370 = vadd.f32 %v6368, %v6369
  %v6371 = vsel %vm878, %v5258, 0.0
  %v6372 = vadd.f32 %v6370, %v6371
  %v6373 = vsel %vm878, %v5262, 0.0
  %v6374 = vadd.f32 %v6372, %v6373
  %v6375 = vsel %vm878, %v5266, 0.0
  %v6376 = vadd.f32 %v6374, %v6375
  %v6377 = vsel %vm878, %v5270, 0.0
  %v6378 = vadd.f32 %v6376, %v6377
  %v6379 = vsel %vm878, %v5274, 0.0
  %v6380 = vadd.f32 %v6378, %v6379
  %v6381 = vsel %vm878, %v5278, 0.0
  %v6382 = vadd.f32 %v6380, %v6381
  %v6383 = vrcp.pop %v4027
  %v6384 = vrcp.pop %v4036
  %v6385 = vrcp.pop %v4045
  %v6386 = vrcp.pop %v4054
  %v6387 = vrcp.pop %v4063
  %v6388 = vrcp.pop %v4072
  %v6389 = vrcp.pop %v4081
  %v6390 = vrcp.pop %v4090
  %v6391 = vrcp.pop %v4099
  %v6392 = vrcp.pop %v4108
  %v6393 = vrcp.pop %v4117
  %v6394 = vrcp.pop %v4126
  %v6395 = vlaneseq
  %v6396 = vshrl.u32 %v6395, 7
  %v6397 = vsub.s32 0, %v6396
  %v6398 = vrot.slane %v6383, %v6397
  %v6399 = vlaneseq
  %v6400 = vshrl.u32 %v6399, 7
  %v6401 = vsub.s32 0, %v6400
  %v6402 = vrot.slane %v6384, %v6401
  %v6403 = vlaneseq
  %v6404 = vshrl.u32 %v6403, 7
  %v6405 = vsub.s32 0, %v6404
  %v6406 = vrot.slane %v6385, %v6405
  %v6407 = vlaneseq
  %v6408 = vshrl.u32 %v6407, 7
  %v6409 = vsub.s32 0, %v6408
  %v6410 = vrot.slane %v6386, %v6409
  %v6411 = vlaneseq
  %v6412 = vshrl.u32 %v6411, 7
  %v6413 = vsub.s32 0, %v6412
  %v6414 = vrot.slane %v6387, %v6413
  %v6415 = vlaneseq
  %v6416 = vshrl.u32 %v6415, 7
  %v6417 = vsub.s32 0, %v6416
  %v6418 = vrot.slane %v6388, %v6417
  %v6419 = vlaneseq
  %v6420 = vshrl.u32 %v6419, 7
  %v6421 = vsub.s32 0, %v6420
  %v6422 = vrot.slane %v6389, %v6421
  %v6423 = vlaneseq
  %v6424 = vshrl.u32 %v6423, 7
  %v6425 = vsub.s32 0, %v6424
  %v6426 = vrot.slane %v6390, %v6425
  %v6427 = vlaneseq
  %v6428 = vshrl.u32 %v6427, 7
  %v6429 = vsub.s32 0, %v6428
  %v6430 = vrot.slane %v6391, %v6429
  %v6431 = vlaneseq
  %v6432 = vshrl.u32 %v6431, 7
  %v6433 = vsub.s32 0, %v6432
  %v6434 = vrot.slane %v6392, %v6433
  %v6435 = vlaneseq
  %v6436 = vshrl.u32 %v6435, 7
  %v6437 = vsub.s32 0, %v6436
  %v6438 = vrot.slane %v6393, %v6437
  %v6439 = vlaneseq
  %v6440 = vshrl.u32 %v6439, 7
  %v6441 = vsub.s32 0, %v6440
  %v6442 = vrot.slane %v6394, %v6441
  %v6443 = vmul.f32 %v5301, %v6398
  %v6444 = vmul.f32 %v5324, %v6398
  %v6445 = vmul.f32 %v5347, %v6398
  %v6446 = vmul.f32 %v5370, %v6398
  %v6447 = vmul.f32 %v5393, %v6402
  %v6448 = vmul.f32 %v5416, %v6402
  %v6449 = vmul.f32 %v5439, %v6402
  %v6450 = vmul.f32 %v5462, %v6402
  %v6451 = vmul.f32 %v5485, %v6406
  %v6452 = vmul.f32 %v5508, %v6406
  %v6453 = vmul.f32 %v5531, %v6406
  %v6454 = vmul.f32 %v5554, %v6406
  %v6455 = vmul.f32 %v5577, %v6410
  %v6456 = vmul.f32 %v5600, %v6410
  %v6457 = vmul.f32 %v5623, %v6410
  %v6458 = vmul.f32 %v5646, %v6410
  %v6459 = vmul.f32 %v5669, %v6414
  %v6460 = vmul.f32 %v5692, %v6414
  %v6461 = vmul.f32 %v5715, %v6414
  %v6462 = vmul.f32 %v5738, %v6414
  %v6463 = vmul.f32 %v5761, %v6418
  %v6464 = vmul.f32 %v5784, %v6418
  %v6465 = vmul.f32 %v5807, %v6418
  %v6466 = vmul.f32 %v5830, %v6418
  %v6467 = vmul.f32 %v5853, %v6422
  %v6468 = vmul.f32 %v5876, %v6422
  %v6469 = vmul.f32 %v5899, %v6422
  %v6470 = vmul.f32 %v5922, %v6422
  %v6471 = vmul.f32 %v5945, %v6426
  %v6472 = vmul.f32 %v5968, %v6426
  %v6473 = vmul.f32 %v5991, %v6426
  %v6474 = vmul.f32 %v6014, %v6426
  %v6475 = vmul.f32 %v6037, %v6430
  %v6476 = vmul.f32 %v6060, %v6430
  %v6477 = vmul.f32 %v6083, %v6430
  %v6478 = vmul.f32 %v6106, %v6430
  %v6479 = vmul.f32 %v6129, %v6434
  %v6480 = vmul.f32 %v6152, %v6434
  %v6481 = vmul.f32 %v6175, %v6434
  %v6482 = vmul.f32 %v6198, %v6434
  %v6483 = vmul.f32 %v6221, %v6438
  %v6484 = vmul.f32 %v6244, %v6438
  %v6485 = vmul.f32 %v6267, %v6438
  %v6486 = vmul.f32 %v6290, %v6438
  %v6487 = vmul.f32 %v6313, %v6442
  %v6488 = vmul.f32 %v6336, %v6442
  %v6489 = vmul.f32 %v6359, %v6442
  %v6490 = vmul.f32 %v6382, %v6442
  %6491 = vst.msk [vmem:[%s3] sm:$0xff] %vm878, %v6443
  %6492 = vst.msk [vmem:[%s3 + $0x8] sm:$0xff] %vm878, %v6444
  %6493 = vst.msk [vmem:[%s3 + $0x10] sm:$0xff] %vm878, %v6445
  %6494 = vst.msk [vmem:[%s3 + $0x18] sm:$0xff] %vm878, %v6446
  %6495 = vst.msk [vmem:[%s3 + $0x20] sm:$0xff] %vm878, %v6447
  %6496 = vst.msk [vmem:[%s3 + $0x28] sm:$0xff] %vm878, %v6448
  %6497 = vst.msk [vmem:[%s3 + $0x30] sm:$0xff] %vm878, %v6449
  %6498 = vst.msk [vmem:[%s3 + $0x38] sm:$0xff] %vm878, %v6450
  %6499 = vst.msk [vmem:[%s3 + $0x40] sm:$0xff] %vm878, %v6451
  %6500 = vst.msk [vmem:[%s3 + $0x48] sm:$0xff] %vm878, %v6452
  %6501 = vst.msk [vmem:[%s3 + $0x50] sm:$0xff] %vm878, %v6453
  %6502 = vst.msk [vmem:[%s3 + $0x58] sm:$0xff] %vm878, %v6454
  %6503 = vst.msk [vmem:[%s3 + $0x60] sm:$0xff] %vm878, %v6455
  %6504 = vst.msk [vmem:[%s3 + $0x68] sm:$0xff] %vm878, %v6456
  %6505 = vst.msk [vmem:[%s3 + $0x70] sm:$0xff] %vm878, %v6457
  %6506 = vst.msk [vmem:[%s3 + $0x78] sm:$0xff] %vm878, %v6458
  %6507 = vst.msk [vmem:[%s3 + $0x80] sm:$0xff] %vm878, %v6459
  %6508 = vst.msk [vmem:[%s3 + $0x88] sm:$0xff] %vm878, %v6460
  %6509 = vst.msk [vmem:[%s3 + $0x90] sm:$0xff] %vm878, %v6461
  %6510 = vst.msk [vmem:[%s3 + $0x98] sm:$0xff] %vm878, %v6462
  %6511 = vst.msk [vmem:[%s3 + $0xa0] sm:$0xff] %vm878, %v6463
  %6512 = vst.msk [vmem:[%s3 + $0xa8] sm:$0xff] %vm878, %v6464
  %6513 = vst.msk [vmem:[%s3 + $0xb0] sm:$0xff] %vm878, %v6465
  %6514 = vst.msk [vmem:[%s3 + $0xb8] sm:$0xff] %vm878, %v6466
  %6515 = vst.msk [vmem:[%s3 + $0xc0] sm:$0xff] %vm878, %v6467
  %6516 = vst.msk [vmem:[%s3 + $0xc8] sm:$0xff] %vm878, %v6468
  %6517 = vst.msk [vmem:[%s3 + $0xd0] sm:$0xff] %vm878, %v6469
  %6518 = vst.msk [vmem:[%s3 + $0xd8] sm:$0xff] %vm878, %v6470
  %6519 = vst.msk [vmem:[%s3 + $0xe0] sm:$0xff] %vm878, %v6471
  %6520 = vst.msk [vmem:[%s3 + $0xe8] sm:$0xff] %vm878, %v6472
  %6521 = vst.msk [vmem:[%s3 + $0xf0] sm:$0xff] %vm878, %v6473
  %6522 = vst.msk [vmem:[%s3 + $0xf8] sm:$0xff] %vm878, %v6474
  %6523 = vst.msk [vmem:[%s3 + $0x100] sm:$0xff] %vm878, %v6475
  %6524 = vst.msk [vmem:[%s3 + $0x108] sm:$0xff] %vm878, %v6476
  %6525 = vst.msk [vmem:[%s3 + $0x110] sm:$0xff] %vm878, %v6477
  %6526 = vst.msk [vmem:[%s3 + $0x118] sm:$0xff] %vm878, %v6478
  %6527 = vst.msk [vmem:[%s3 + $0x120] sm:$0xff] %vm878, %v6479
  %6528 = vst.msk [vmem:[%s3 + $0x128] sm:$0xff] %vm878, %v6480
  %6529 = vst.msk [vmem:[%s3 + $0x130] sm:$0xff] %vm878, %v6481
  %6530 = vst.msk [vmem:[%s3 + $0x138] sm:$0xff] %vm878, %v6482
  %6531 = vst.msk [vmem:[%s3 + $0x140] sm:$0xff] %vm878, %v6483
  %6532 = vst.msk [vmem:[%s3 + $0x148] sm:$0xff] %vm878, %v6484
  %6533 = vst.msk [vmem:[%s3 + $0x150] sm:$0xff] %vm878, %v6485
  %6534 = vst.msk [vmem:[%s3 + $0x158] sm:$0xff] %vm878, %v6486
  %6535 = vst.msk [vmem:[%s3 + $0x160] sm:$0xff] %vm878, %v6487
  %6536 = vst.msk [vmem:[%s3 + $0x168] sm:$0xff] %vm878, %v6488
  %6537 = vst.msk [vmem:[%s3 + $0x170] sm:$0xff] %vm878, %v6489
  %6538 = vst.msk [vmem:[%s3 + $0x178] sm:$0xff] %vm878, %v6490
  // Predicated region
  $region14: #{tpu_custom_call.1} parent=0 // pred_check
    _
  $region15: #{tpu_custom_call.1} parent=0 // pred_check_branch
    %6540 = sbr.rel (0) target = $region17
  $region16: #{tpu_custom_call.1} parent=0 // pred_region
    _
  $region17: #{tpu_custom_call.1} parent=0 // pred_fallthru
    _
  // Predicated region
  $region18: #{tpu_custom_call.1} parent=0 // pred_check
    _
  $region19: #{tpu_custom_call.1} parent=0 // pred_check_branch
    %6542 = sbr.rel (0) target = $region21
  $region20: #{tpu_custom_call.1} parent=0 // pred_region
    _
  $region21: #{tpu_custom_call.1} parent=0 // pred_fallthru
    _

</llo_original>
